<compile_context>
chip_gen: v5e
topology: v5e:2x2
jax: 0.10.0
libtpu: 0.0.40
codegen_flags: <defaults>
</compile_context>

<pallas_src>
from functools import partial

import numpy as np
import jax
import jax.numpy as jnp
from jax.experimental import pallas as pl
from jax.experimental.pallas import tpu as pltpu


# ----------------------------- helpers --------------------------------------

def _fold_bn(bn, eps=1e-5):
    s = bn["gamma"] / jnp.sqrt(bn["var"] + eps)
    b = bn["beta"] - bn["mean"] * s
    return s, b


def _tap_masks(H, W, k):
    """(k*k, H*W) {0,1} masks: 1 where tap (dy,dx) reads an in-image pixel."""
    p = k // 2
    hh, ww = np.meshgrid(np.arange(H), np.arange(W), indexing="ij")
    rows = []
    for dy in range(k):
        for dx in range(k):
            m = ((hh + dy - p >= 0) & (hh + dy - p < H) &
                 (ww + dx - p >= 0) & (ww + dx - p < W))
            rows.append(m.reshape(-1))
    return jnp.asarray(np.stack(rows).astype(np.float32))


def _pick_cout_tile(cout, cin, L, margin, k, budget_bytes=12 * 1024 * 1024):
    """Largest Cout tile whose per-grid-step VMEM estimate fits the budget."""
    def est(ct):
        lanes = -(-(L + 2 * margin) // 128) * 128
        x_blk = 2 * cin * L * 2            # bf16 input block, double-buffered
        out_blk = 2 * ct * L * 4           # f32 output block, double-buffered
        scratch = ct * lanes * 4           # padded conv1 staging scratch
        live = 3 * ct * L * 4              # matmul result, acc, tap temporaries
        masks = 2 * k * k * L * 4
        return x_blk + out_blk + scratch + live + masks

    cands = [d for d in range(cout, 0, -1)
             if cout % d == 0 and (d == cout or d % 16 == 0)]
    for ct in cands:
        if est(ct) <= budget_bytes:
            return ct
    return cands[-1]


# ----------------------------- fused kernel ---------------------------------

@partial(jax.jit, static_argnames=("k",))
def light_conv_forward(x, w1, s1, b1, w2, s2, b2, *, k):
    """x: (N, Cin, H, W) f32.  w1: (Cout, Cin) bf16.  s1/b1/s2/b2: (Cout, 1) f32.
    w2: (Cout, k*k) f32 depthwise taps.  Returns (N, Cout, H, W) f32."""
    assert k % 2 == 1, "LightConv depthwise kernel size must be odd"
    N, Cin, H, W = x.shape
    Cout = w1.shape[0]
    L = H * W
    p = k // 2
    margin = p * (W + 1)                    # max |tap offset| in flat pixels
    ct = _pick_cout_tile(Cout, Cin, L, margin, k)

    x_flat = x.reshape(N, Cin, L).astype(jnp.bfloat16)   # reshape is free
    masks = _tap_masks(H, W, k)                          # compile-time constant

    def kernel(x_ref, w1_ref, s1_ref, b1_ref, w2_ref, s2_ref, b2_ref,
               m_ref, o_ref, ys_ref):
        # 1x1 conv as a lane-dense transposed matmul (MXU, bf16 in, f32 acc),
        # folded BN1 applied per output channel (sublane broadcast).
        y = jnp.dot(w1_ref[...], x_ref[0],
                    preferred_element_type=jnp.float32)          # (ct, L)
        y = y * s1_ref[...] + b1_ref[...]

        # Stage the conv1 output in a flat VMEM scratch with a zero margin of
        # `margin` lanes on each side: the margin provides the vertical zero
        # padding of the depthwise conv, the per-tap masks the horizontal one.
        if margin > 0:
            zpad = jnp.zeros((ct, margin), jnp.float32)
            ys_ref[:, 0:margin] = zpad
            ys_ref[:, margin + L:margin + L + margin] = zpad
        ys_ref[:, margin:margin + L] = y

        # Depthwise k x k conv: each tap is a statically shifted lane-dense
        # view of the scratch, masked at the image border and scaled by the
        # per-channel tap weight.  Folded BN2 + ReLU epilogue (f32).
        w2v = w2_ref[...]                                        # (ct, k*k)
        acc = jnp.zeros((ct, L), jnp.float32)
        t = 0
        for dy in range(k):
            for dx in range(k):
                off = (dy - p) * W + (dx - p)
                src = y if off == 0 else ys_ref[:, margin + off:margin + off + L]
                acc = acc + src * m_ref[t:t + 1, :] * w2v[:, t:t + 1]
                t += 1
        out = acc * s2_ref[...] + b2_ref[...]
        o_ref[0] = jnp.maximum(out, 0.0)

    out_flat = pl.pallas_call(
        kernel,
        out_shape=jax.ShapeDtypeStruct((N, Cout, L), jnp.float32),
        grid_spec=pltpu.PrefetchScalarGridSpec(
            num_scalar_prefetch=0,
            grid=(N, Cout // ct),
            in_specs=[
                pl.BlockSpec((1, Cin, L), lambda n, c: (n, 0, 0)),   # x
                pl.BlockSpec((ct, Cin), lambda n, c: (c, 0)),        # w1
                pl.BlockSpec((ct, 1), lambda n, c: (c, 0)),          # s1
                pl.BlockSpec((ct, 1), lambda n, c: (c, 0)),          # b1
                pl.BlockSpec((ct, k * k), lambda n, c: (c, 0)),      # w2
                pl.BlockSpec((ct, 1), lambda n, c: (c, 0)),          # s2
                pl.BlockSpec((ct, 1), lambda n, c: (c, 0)),          # b2
                pl.BlockSpec((k * k, L), lambda n, c: (0, 0)),       # tap masks
            ],
            out_specs=pl.BlockSpec((1, ct, L), lambda n, c: (n, c, 0)),
            scratch_shapes=[pltpu.VMEM((ct, L + 2 * margin), jnp.float32)],
        ),
        compiler_params=pltpu.CompilerParams(
            dimension_semantics=("parallel", "parallel"),
            vmem_limit_bytes=32 * 1024 * 1024,   # explicit; v7x-safe budget
        ),
    )(x_flat, w1, s1, b1, w2, s2, b2, masks)

    return out_flat.reshape(N, Cout, H, W)


# --------------------------- parameters / reference --------------------------

def init_light_conv_params(key, c1, c2, k):
    ks = jax.random.split(key, 10)

    def bn(kg, kb, km, kv, c):
        return dict(gamma=1.0 + 0.1 * jax.random.normal(kg, (c,), jnp.float32),
                    beta=0.1 * jax.random.normal(kb, (c,), jnp.float32),
                    mean=0.1 * jax.random.normal(km, (c,), jnp.float32),
                    var=1.0 + 0.1 * jnp.abs(jax.random.normal(kv, (c,), jnp.float32)))

    return dict(
        conv1_w=0.3 * jax.random.normal(ks[0], (c2, c1, 1, 1), jnp.float32),
        bn1=bn(ks[1], ks[2], ks[3], ks[4], c2),
        conv2_w=0.3 * jax.random.normal(ks[5], (c2, 1, k, k), jnp.float32),
        bn2=bn(ks[6], ks[7], ks[8], ks[9], c2),
        k=k)


def prepare_kernel_params(params, eps=1e-5):
    """Fold BN and pre-cast / pre-reshape everything once (hoisted out of the call)."""
    w1 = params["conv1_w"]
    c2, c1 = w1.shape[:2]
    k = params["k"]
    s1, b1 = _fold_bn(params["bn1"], eps)
    s2, b2 = _fold_bn(params["bn2"], eps)
    return dict(
        w1=w1.reshape(c2, c1).astype(jnp.bfloat16),
        s1=s1.reshape(c2, 1), b1=b1.reshape(c2, 1),
        w2=params["conv2_w"].reshape(c2, k * k),
        s2=s2.reshape(c2, 1), b2=b2.reshape(c2, 1))


def light_conv_reference(x, params, eps=1e-5):
    """Pure-jnp reference mirroring the kernel's bf16 matmul operands."""
    w1 = params["conv1_w"]
    c2, c1 = w1.shape[:2]
    k = params["k"]
    p = k // 2
    N, _, H, W = x.shape
    s1, b1 = _fold_bn(params["bn1"], eps)
    s2, b2 = _fold_bn(params["bn2"], eps)

    xb = x.astype(jnp.bfloat16).astype(jnp.float32)
    w1b = w1.reshape(c2, c1).astype(jnp.bfloat16).astype(jnp.float32)
    y = jnp.einsum("oc,nchw->nohw", w1b, xb)
    y = y * s1[None, :, None, None] + b1[None, :, None, None]

    yp = jnp.pad(y, ((0, 0), (0, 0), (p, p), (p, p)))
    w2 = params["conv2_w"].reshape(c2, k, k)
    acc = jnp.zeros_like(y)
    for dy in range(k):
        for dx in range(k):
            acc = acc + yp[:, :, dy:dy + H, dx:dx + W] * w2[:, dy, dx][None, :, None, None]
    out = acc * s2[None, :, None, None] + b2[None, :, None, None]
    return jnp.maximum(out, 0.0)


# --------------------------------- main --------------------------------------

if __name__ == "__main__":
    C1, C2, K = 16, 32, 3          # LightConv(c1=16, c2=32, k=3, act=ReLU)
    N, H, W = 2, 32, 32

    key = jax.random.PRNGKey(0)
    kp, kx = jax.random.split(key)
    params = init_light_conv_params(kp, C1, C2, K)
    x = jax.random.normal(kx, (N, C1, H, W), jnp.float32)

    kern = prepare_kernel_params(params)
    out = light_conv_forward(x, kern["w1"], kern["s1"], kern["b1"],
                             kern["w2"], kern["s2"], kern["b2"], k=K)
    out = jax.block_until_ready(out)

    assert out.shape == (N, C2, H, W), out.shape
    assert bool(jnp.all(jnp.isfinite(out)))
    ref = light_conv_reference(x, params)
    err = float(jnp.max(jnp.abs(out - ref)))
    assert err < 2e-3, f"max abs err {err}"
    print("KERNEL_OK")
</pallas_src>

<mosaic_0001>
module attributes {stable_mosaic.version = 11 : i64} {
  func.func @kernel(%arg0: i32, %arg1: i32, %arg2: memref<1x16x1024xbf16, #tpu.memory_space<vmem>>, %arg3: memref<32x16xbf16, #tpu.memory_space<vmem>>, %arg4: memref<32x1xf32, #tpu.memory_space<vmem>>, %arg5: memref<32x1xf32, #tpu.memory_space<vmem>>, %arg6: memref<32x9xf32, #tpu.memory_space<vmem>>, %arg7: memref<32x1xf32, #tpu.memory_space<vmem>>, %arg8: memref<32x1xf32, #tpu.memory_space<vmem>>, %arg9: memref<9x1024xf32, #tpu.memory_space<vmem>>, %arg10: memref<1x32x1024xf32, #tpu.memory_space<vmem>>, %arg11: memref<32x1090xf32, #tpu.memory_space<vmem>>) attributes {dimension_semantics = [#tpu.dimension_semantics<parallel>, #tpu.dimension_semantics<parallel>], iteration_bounds = array<i64: 2, 1>, scalar_prefetch = 0 : i64, scratch_operands = 1 : i64, tpu.core_type = #tpu.core_type<tc>, window_params = [{transform_indices = @transform_0, window_bounds = array<i64: 1, 16, 1024>}, {transform_indices = @transform_1, window_bounds = array<i64: 32, 16>}, {transform_indices = @transform_2, window_bounds = array<i64: 32, 1>}, {transform_indices = @transform_3, window_bounds = array<i64: 32, 1>}, {transform_indices = @transform_4, window_bounds = array<i64: 32, 9>}, {transform_indices = @transform_5, window_bounds = array<i64: 32, 1>}, {transform_indices = @transform_6, window_bounds = array<i64: 32, 1>}, {pipeline_mode = #tpu.pipeline_mode<synchronous>, transform_indices = @transform_7, window_bounds = array<i64: 9, 1024>}, {transform_indices = @transform_8, window_bounds = array<i64: 1, 32, 1024>}]} {
    %c0 = arith.constant 0 : index
    %c0_0 = arith.constant 0 : index
    %0 = vector.load %arg3[%c0, %c0_0] : memref<32x16xbf16, #tpu.memory_space<vmem>>, vector<32x16xbf16>
    %c0_1 = arith.constant 0 : index
    %c0_2 = arith.constant 0 : index
    %c0_3 = arith.constant 0 : index
    %1 = vector.load %arg2[%c0_1, %c0_2, %c0_3] : memref<1x16x1024xbf16, #tpu.memory_space<vmem>>, vector<1x16x1024xbf16>
    %2 = vector.shape_cast %1 : vector<1x16x1024xbf16> to vector<16x1024xbf16>
    %cst = arith.constant dense<0.000000e+00> : vector<32x1024xf32>
    %3 = tpu.matmul %0, %2, %cst {dimension_numbers = #tpu.dot_dimension_numbers<[1], [0], [0], [1], [0, 0, 1, 1], [], []>} : vector<32x16xbf16>, vector<16x1024xbf16>, vector<32x1024xf32> -> vector<32x1024xf32>
    %c0_4 = arith.constant 0 : index
    %c0_5 = arith.constant 0 : index
    %4 = vector.load %arg4[%c0_4, %c0_5] : memref<32x1xf32, #tpu.memory_space<vmem>>, vector<32x1xf32>
    %5 = vector.broadcast %4 : vector<32x1xf32> to vector<32x1024xf32>
    %6 = arith.mulf %3, %5 : vector<32x1024xf32>
    %c0_6 = arith.constant 0 : index
    %c0_7 = arith.constant 0 : index
    %7 = vector.load %arg5[%c0_6, %c0_7] : memref<32x1xf32, #tpu.memory_space<vmem>>, vector<32x1xf32>
    %8 = vector.broadcast %7 : vector<32x1xf32> to vector<32x1024xf32>
    %9 = arith.addf %6, %8 : vector<32x1024xf32>
    %cst_8 = arith.constant 0.000000e+00 : f32
    %10 = vector.broadcast %cst_8 : f32 to vector<32x33xf32>
    %c0_9 = arith.constant 0 : index
    %c0_10 = arith.constant 0 : index
    %11 = vector.load %arg11[%c0_9, %c0_10] : memref<32x1090xf32, #tpu.memory_space<vmem>>, vector<32x33xf32>
    tpu.vector_store %arg11[%c0_9, %c0_10], %10 {strides = array<i32>} : memref<32x1090xf32, #tpu.memory_space<vmem>>, vector<32x33xf32>,
    %c0_11 = arith.constant 0 : index
    %c1057 = arith.constant 1057 : index
    %12 = vector.load %arg11[%c0_11, %c1057] : memref<32x1090xf32, #tpu.memory_space<vmem>>, vector<32x33xf32>
    tpu.vector_store %arg11[%c0_11, %c1057], %10 {strides = array<i32>} : memref<32x1090xf32, #tpu.memory_space<vmem>>, vector<32x33xf32>,
    %c0_12 = arith.constant 0 : index
    %c33 = arith.constant 33 : index
    %13 = vector.load %arg11[%c0_12, %c33] : memref<32x1090xf32, #tpu.memory_space<vmem>>, vector<32x1024xf32>
    tpu.vector_store %arg11[%c0_12, %c33], %9 {strides = array<i32>} : memref<32x1090xf32, #tpu.memory_space<vmem>>, vector<32x1024xf32>,
    %c0_13 = arith.constant 0 : index
    %c0_14 = arith.constant 0 : index
    %14 = vector.load %arg6[%c0_13, %c0_14] : memref<32x9xf32, #tpu.memory_space<vmem>>, vector<32x9xf32>
    %cst_15 = arith.constant 0.000000e+00 : f32
    %15 = vector.broadcast %cst_15 : f32 to vector<32x1024xf32>
    %c0_16 = arith.constant 0 : index
    %c0_17 = arith.constant 0 : index
    %16 = vector.load %arg11[%c0_16, %c0_17] : memref<32x1090xf32, #tpu.memory_space<vmem>>, vector<32x1024xf32>
    %c0_18 = arith.constant 0 : index
    %c0_19 = arith.constant 0 : index
    %17 = vector.load %arg9[%c0_18, %c0_19] : memref<9x1024xf32, #tpu.memory_space<vmem>>, vector<1x1024xf32>
    %18 = vector.broadcast %17 : vector<1x1024xf32> to vector<32x1024xf32>
    %19 = arith.mulf %16, %18 : vector<32x1024xf32>
    %20 = vector.extract_strided_slice %14 {offsets = [0, 0], sizes = [32, 1], strides = [1, 1]} : vector<32x9xf32> to vector<32x1xf32>
    %21 = vector.broadcast %20 : vector<32x1xf32> to vector<32x1024xf32>
    %22 = arith.mulf %19, %21 : vector<32x1024xf32>
    %23 = arith.addf %15, %22 : vector<32x1024xf32>
    %c0_20 = arith.constant 0 : index
    %c1 = arith.constant 1 : index
    %24 = vector.load %arg11[%c0_20, %c1] : memref<32x1090xf32, #tpu.memory_space<vmem>>, vector<32x1024xf32>
    %c1_21 = arith.constant 1 : index
    %c0_22 = arith.constant 0 : index
    %25 = vector.load %arg9[%c1_21, %c0_22] : memref<9x1024xf32, #tpu.memory_space<vmem>>, vector<1x1024xf32>
    %26 = vector.broadcast %25 : vector<1x1024xf32> to vector<32x1024xf32>
    %27 = arith.mulf %24, %26 : vector<32x1024xf32>
    %28 = vector.extract_strided_slice %14 {offsets = [0, 1], sizes = [32, 1], strides = [1, 1]} : vector<32x9xf32> to vector<32x1xf32>
    %29 = vector.broadcast %28 : vector<32x1xf32> to vector<32x1024xf32>
    %30 = arith.mulf %27, %29 : vector<32x1024xf32>
    %31 = arith.addf %23, %30 : vector<32x1024xf32>
    %c0_23 = arith.constant 0 : index
    %c2 = arith.constant 2 : index
    %32 = vector.load %arg11[%c0_23, %c2] : memref<32x1090xf32, #tpu.memory_space<vmem>>, vector<32x1024xf32>
    %c2_24 = arith.constant 2 : index
    %c0_25 = arith.constant 0 : index
    %33 = vector.load %arg9[%c2_24, %c0_25] : memref<9x1024xf32, #tpu.memory_space<vmem>>, vector<1x1024xf32>
    %34 = vector.broadcast %33 : vector<1x1024xf32> to vector<32x1024xf32>
    %35 = arith.mulf %32, %34 : vector<32x1024xf32>
    %36 = vector.extract_strided_slice %14 {offsets = [0, 2], sizes = [32, 1], strides = [1, 1]} : vector<32x9xf32> to vector<32x1xf32>
    %37 = vector.broadcast %36 : vector<32x1xf32> to vector<32x1024xf32>
    %38 = arith.mulf %35, %37 : vector<32x1024xf32>
    %39 = arith.addf %31, %38 : vector<32x1024xf32>
    %c0_26 = arith.constant 0 : index
    %c32 = arith.constant 32 : index
    %40 = vector.load %arg11[%c0_26, %c32] : memref<32x1090xf32, #tpu.memory_space<vmem>>, vector<32x1024xf32>
    %c3 = arith.constant 3 : index
    %c0_27 = arith.constant 0 : index
    %41 = vector.load %arg9[%c3, %c0_27] : memref<9x1024xf32, #tpu.memory_space<vmem>>, vector<1x1024xf32>
    %42 = vector.broadcast %41 : vector<1x1024xf32> to vector<32x1024xf32>
    %43 = arith.mulf %40, %42 : vector<32x1024xf32>
    %44 = vector.extract_strided_slice %14 {offsets = [0, 3], sizes = [32, 1], strides = [1, 1]} : vector<32x9xf32> to vector<32x1xf32>
    %45 = vector.broadcast %44 : vector<32x1xf32> to vector<32x1024xf32>
    %46 = arith.mulf %43, %45 : vector<32x1024xf32>
    %47 = arith.addf %39, %46 : vector<32x1024xf32>
    %c4 = arith.constant 4 : index
    %c0_28 = arith.constant 0 : index
    %48 = vector.load %arg9[%c4, %c0_28] : memref<9x1024xf32, #tpu.memory_space<vmem>>, vector<1x1024xf32>
    %49 = vector.broadcast %48 : vector<1x1024xf32> to vector<32x1024xf32>
    %50 = arith.mulf %9, %49 : vector<32x1024xf32>
    %51 = vector.extract_strided_slice %14 {offsets = [0, 4], sizes = [32, 1], strides = [1, 1]} : vector<32x9xf32> to vector<32x1xf32>
    %52 = vector.broadcast %51 : vector<32x1xf32> to vector<32x1024xf32>
    %53 = arith.mulf %50, %52 : vector<32x1024xf32>
    %54 = arith.addf %47, %53 : vector<32x1024xf32>
    %c0_29 = arith.constant 0 : index
    %c34 = arith.constant 34 : index
    %55 = vector.load %arg11[%c0_29, %c34] : memref<32x1090xf32, #tpu.memory_space<vmem>>, vector<32x1024xf32>
    %c5 = arith.constant 5 : index
    %c0_30 = arith.constant 0 : index
    %56 = vector.load %arg9[%c5, %c0_30] : memref<9x1024xf32, #tpu.memory_space<vmem>>, vector<1x1024xf32>
    %57 = vector.broadcast %56 : vector<1x1024xf32> to vector<32x1024xf32>
    %58 = arith.mulf %55, %57 : vector<32x1024xf32>
    %59 = vector.extract_strided_slice %14 {offsets = [0, 5], sizes = [32, 1], strides = [1, 1]} : vector<32x9xf32> to vector<32x1xf32>
    %60 = vector.broadcast %59 : vector<32x1xf32> to vector<32x1024xf32>
    %61 = arith.mulf %58, %60 : vector<32x1024xf32>
    %62 = arith.addf %54, %61 : vector<32x1024xf32>
    %c0_31 = arith.constant 0 : index
    %c64 = arith.constant 64 : index
    %63 = vector.load %arg11[%c0_31, %c64] : memref<32x1090xf32, #tpu.memory_space<vmem>>, vector<32x1024xf32>
    %c6 = arith.constant 6 : index
    %c0_32 = arith.constant 0 : index
    %64 = vector.load %arg9[%c6, %c0_32] : memref<9x1024xf32, #tpu.memory_space<vmem>>, vector<1x1024xf32>
    %65 = vector.broadcast %64 : vector<1x1024xf32> to vector<32x1024xf32>
    %66 = arith.mulf %63, %65 : vector<32x1024xf32>
    %67 = vector.extract_strided_slice %14 {offsets = [0, 6], sizes = [32, 1], strides = [1, 1]} : vector<32x9xf32> to vector<32x1xf32>
    %68 = vector.broadcast %67 : vector<32x1xf32> to vector<32x1024xf32>
    %69 = arith.mulf %66, %68 : vector<32x1024xf32>
    %70 = arith.addf %62, %69 : vector<32x1024xf32>
    %c0_33 = arith.constant 0 : index
    %c65 = arith.constant 65 : index
    %71 = vector.load %arg11[%c0_33, %c65] : memref<32x1090xf32, #tpu.memory_space<vmem>>, vector<32x1024xf32>
    %c7 = arith.constant 7 : index
    %c0_34 = arith.constant 0 : index
    %72 = vector.load %arg9[%c7, %c0_34] : memref<9x1024xf32, #tpu.memory_space<vmem>>, vector<1x1024xf32>
    %73 = vector.broadcast %72 : vector<1x1024xf32> to vector<32x1024xf32>
    %74 = arith.mulf %71, %73 : vector<32x1024xf32>
    %75 = vector.extract_strided_slice %14 {offsets = [0, 7], sizes = [32, 1], strides = [1, 1]} : vector<32x9xf32> to vector<32x1xf32>
    %76 = vector.broadcast %75 : vector<32x1xf32> to vector<32x1024xf32>
    %77 = arith.mulf %74, %76 : vector<32x1024xf32>
    %78 = arith.addf %70, %77 : vector<32x1024xf32>
    %c0_35 = arith.constant 0 : index
    %c66 = arith.constant 66 : index
    %79 = vector.load %arg11[%c0_35, %c66] : memref<32x1090xf32, #tpu.memory_space<vmem>>, vector<32x1024xf32>
    %c8 = arith.constant 8 : index
    %c0_36 = arith.constant 0 : index
    %80 = vector.load %arg9[%c8, %c0_36] : memref<9x1024xf32, #tpu.memory_space<vmem>>, vector<1x1024xf32>
    %81 = vector.broadcast %80 : vector<1x1024xf32> to vector<32x1024xf32>
    %82 = arith.mulf %79, %81 : vector<32x1024xf32>
    %83 = vector.extract_strided_slice %14 {offsets = [0, 8], sizes = [32, 1], strides = [1, 1]} : vector<32x9xf32> to vector<32x1xf32>
    %84 = vector.broadcast %83 : vector<32x1xf32> to vector<32x1024xf32>
    %85 = arith.mulf %82, %84 : vector<32x1024xf32>
    %86 = arith.addf %78, %85 : vector<32x1024xf32>
    %c0_37 = arith.constant 0 : index
    %c0_38 = arith.constant 0 : index
    %87 = vector.load %arg7[%c0_37, %c0_38] : memref<32x1xf32, #tpu.memory_space<vmem>>, vector<32x1xf32>
    %88 = vector.broadcast %87 : vector<32x1xf32> to vector<32x1024xf32>
    %89 = arith.mulf %86, %88 : vector<32x1024xf32>
    %c0_39 = arith.constant 0 : index
    %c0_40 = arith.constant 0 : index
    %90 = vector.load %arg8[%c0_39, %c0_40] : memref<32x1xf32, #tpu.memory_space<vmem>>, vector<32x1xf32>
    %91 = vector.broadcast %90 : vector<32x1xf32> to vector<32x1024xf32>
    %92 = arith.addf %89, %91 : vector<32x1024xf32>
    %cst_41 = arith.constant 0.000000e+00 : f32
    %93 = vector.broadcast %cst_41 : f32 to vector<32x1024xf32>
    %94 = arith.maximumf %92, %93 : vector<32x1024xf32>
    %c0_42 = arith.constant 0 : index
    %c0_43 = arith.constant 0 : index
    %c0_44 = arith.constant 0 : index
    %95 = vector.load %arg10[%c0_42, %c0_43, %c0_44] : memref<1x32x1024xf32, #tpu.memory_space<vmem>>, vector<1x32x1024xf32>
    %96 = vector.shape_cast %95 : vector<1x32x1024xf32> to vector<32x1024xf32>
    %97 = vector.shape_cast %94 : vector<32x1024xf32> to vector<1x32x1024xf32>
    tpu.vector_store %arg10[%c0_42, %c0_43, %c0_44], %97 {strides = array<i32>} : memref<1x32x1024xf32, #tpu.memory_space<vmem>>, vector<1x32x1024xf32>,
    return
  }
  func.func @transform_0(%arg0: i32, %arg1: i32) -> (i32, i32, i32) {
    %c0_i32 = arith.constant 0 : i32
    %c0_i32_0 = arith.constant 0 : i32
    %c0_i32_1 = arith.constant 0 : i32
    return %arg0, %c0_i32, %c0_i32_0 : i32, i32, i32
  }
  func.func @transform_1(%arg0: i32, %arg1: i32) -> (i32, i32) {
    %c0_i32 = arith.constant 0 : i32
    %c0_i32_0 = arith.constant 0 : i32
    return %arg1, %c0_i32 : i32, i32
  }
  func.func @transform_2(%arg0: i32, %arg1: i32) -> (i32, i32) {
    %c0_i32 = arith.constant 0 : i32
    %c0_i32_0 = arith.constant 0 : i32
    return %arg1, %c0_i32 : i32, i32
  }
  func.func @transform_3(%arg0: i32, %arg1: i32) -> (i32, i32) {
    %c0_i32 = arith.constant 0 : i32
    %c0_i32_0 = arith.constant 0 : i32
    return %arg1, %c0_i32 : i32, i32
  }
  func.func @transform_4(%arg0: i32, %arg1: i32) -> (i32, i32) {
    %c0_i32 = arith.constant 0 : i32
    %c0_i32_0 = arith.constant 0 : i32
    return %arg1, %c0_i32 : i32, i32
  }
  func.func @transform_5(%arg0: i32, %arg1: i32) -> (i32, i32) {
    %c0_i32 = arith.constant 0 : i32
    %c0_i32_0 = arith.constant 0 : i32
    return %arg1, %c0_i32 : i32, i32
  }
  func.func @transform_6(%arg0: i32, %arg1: i32) -> (i32, i32) {
    %c0_i32 = arith.constant 0 : i32
    %c0_i32_0 = arith.constant 0 : i32
    return %arg1, %c0_i32 : i32, i32
  }
  func.func @transform_7(%arg0: i32, %arg1: i32) -> (i32, i32) {
    %c0_i32 = arith.constant 0 : i32
    %c0_i32_0 = arith.constant 0 : i32
    %c0_i32_1 = arith.constant 0 : i32
    return %c0_i32, %c0_i32_0 : i32, i32
  }
  func.func @transform_8(%arg0: i32, %arg1: i32) -> (i32, i32, i32) {
    %c0_i32 = arith.constant 0 : i32
    %c0_i32_0 = arith.constant 0 : i32
    return %arg0, %arg1, %c0_i32 : i32, i32, i32
  }
}

</mosaic_0001>

<llo_original>
// kernel: light_conv_forward.1
$region0: #{light_conv_forward.1}
  #allocation0 [shape = 'u32[]', space=smem, size = 0x4, offset = 0x4, fixed_abs, tag = 'smem constant byte address 0x4 - core index']
  #allocation1 [shape = 'u32[72,128]{1,0:T(1,128)}', space=vmem, size = 0x9000, scoped, tag = 'internal scratch']
  #allocation2 [shape = 'f32[32,1090]{1,0:T(8,128)}', space=vmem, size = 0x24000, scoped, tag = 'scratch operand']
  %s0 = inlined_call_operand.vmem [shape: bf16[2,16,1024], index: 0, kind: input, shape index: {}]
  %s1 = inlined_call_operand.vmem [shape: bf16[32,16], index: 1, kind: input, shape index: {}]
  %s2 = inlined_call_operand.vmem [shape: f32[32,1], index: 2, kind: input, shape index: {}]
  %s3 = inlined_call_operand.vmem [shape: f32[32,1], index: 3, kind: input, shape index: {}]
  %s4 = inlined_call_operand.vmem [shape: f32[32,9], index: 4, kind: input, shape index: {}]
  %s5 = inlined_call_operand.vmem [shape: f32[32,1], index: 5, kind: input, shape index: {}]
  %s6 = inlined_call_operand.vmem [shape: f32[32,1], index: 6, kind: input, shape index: {}]
  %s7 = inlined_call_operand.vmem [shape: f32[9,1024], index: 7, kind: input, shape index: {}]
  %s8 = inlined_call_operand.vmem [shape: f32[2,32,1024], index: 8, kind: output, shape index: {}]
  %s9 = sld [smem:[#allocation0]]
  $region65: #{light_conv_forward.1} parent=0
    _
  %s11 = ssub.s32 1, %s9
  %s12 = scalar_select 0, %s11, %s9
  loop: start=0, step=1, limit=4
  $region2: #{light_conv_forward.1} parent=0 // loop_pre_header
    _
  $region3: #{light_conv_forward.1} parent=0 // loop_header
    %s14 = sphi 0, %s18
    %p15 = scmp.ge.s32.totalorder %s14, 4
    %s21 = sphi 0, %s33
    %s22 = sphi 0, %s29
    %s23 = sphi 0, %s21
    %s24 = sphi 0, %s22
    %s25 = sphi 0, %s23
    %s26 = sphi 0, %s24
    %s36 = sphi 0, %s38
    %s39 = sphi 0, %s36
    %s40 = sphi 0, %s39
    %s56 = sphi 0, %s40
    %s62 = sphi 0, %s64
    %s65 = sphi 0, %s62
    %s66 = sphi 0, %s65
    %s82 = sphi 0, %s66
    %s88 = sphi 0, %s90
    %s91 = sphi 0, %s88
    %s92 = sphi 0, %s91
    %s108 = sphi 0, %s92
    %s114 = sphi 0, %s116
    %s117 = sphi 0, %s114
    %s118 = sphi 0, %s117
    %s134 = sphi 0, %s118
    %s140 = sphi 0, %s142
    %s143 = sphi 0, %s140
    %s144 = sphi 0, %s143
    %s160 = sphi 0, %s144
    %s166 = sphi 0, %s168
    %s169 = sphi 0, %s166
    %s170 = sphi 0, %s169
    %s186 = sphi 0, %s170
    %s192 = sphi 0, %s194
    %s195 = sphi 0, %s192
    %s196 = sphi 0, %s195
    %s212 = sphi 0, %s196
    %s216 = sphi 0, %s216
    %s218 = sphi 0, %s216
    %s219 = sphi 0, %s218
    %s233 = sphi 0, %s219
    %s241 = sphi 0, %s243
    %s244 = sphi 0, %s241
    %s245 = sphi 0, %s244
    %s261 = sphi 0, %s245
  $region4: #{light_conv_forward.1} parent=0 // loop_header_branch
    %17 = sbr.rel (%p15) target = $region8
  $region5: #{light_conv_forward.1} parent=0 // loop_body
    %s19 = ssub.s32 %s14, 1
    %s20 = ssub.s32 %s14, 2
    %s27 = sadd.s32 1, %s22
    %p28 = scmp.ge.s32.totalorder %s27, 1
    %s29 = scalar_select %p28, 0, %s27
    %s30 = sadd.s32 1, %s21
    %s31 = scalar_select %p28, %s30, %s21
    %p32 = scmp.ge.s32.totalorder %s31, 2
    %s33 = scalar_select %p32, 0, %s31
    %s34 = ssub.s32 %s21, %s33
    %p35 = scmp.eq.s32.totalorder %s34, 0
    %s37 = sadd.s32 %s36, 1
    %s38 = scalar_select %p35, %s36, %s37
    %p41 = pneg %p35
    %p42 = scmp.eq.s32.totalorder %s14, 1
    %p43 = por %p41, %p42
    %p44 = scmp.ne.s32.totalorder %s36, %s39
    %p45 = scmp.eq.s32.totalorder %s14, 0
    %p46 = por %p44, %p45
    %p47 = scmp.ne.s32.totalorder %s36, %s39
    %p48 = scmp.eq.s32.totalorder %s19, 1
    %p49 = por %p47, %p48
    %p50 = scmp.ne.s32.totalorder %s39, %s40
    %p51 = scmp.eq.s32.totalorder %s19, 0
    %p52 = por %p50, %p51
    %p53 = scmp.ne.s32.totalorder %s39, %s40
    %p54 = scmp.eq.s32.totalorder %s20, 1
    %p55 = por %p53, %p54
    %p57 = scmp.ne.s32.totalorder %s40, %s56
    %p58 = scmp.eq.s32.totalorder %s20, 0
    %p59 = por %p57, %p58
    %s60 = ssub.s32 %s22, %s29
    %p61 = scmp.eq.s32.totalorder %s60, 0
    %s63 = sadd.s32 %s62, 1
    %s64 = scalar_select %p61, %s62, %s63
    %p67 = pneg %p61
    %p68 = scmp.eq.s32.totalorder %s14, 1
    %p69 = por %p67, %p68
    %p70 = scmp.ne.s32.totalorder %s62, %s65
    %p71 = scmp.eq.s32.totalorder %s14, 0
    %p72 = por %p70, %p71
    %p73 = scmp.ne.s32.totalorder %s62, %s65
    %p74 = scmp.eq.s32.totalorder %s19, 1
    %p75 = por %p73, %p74
    %p76 = scmp.ne.s32.totalorder %s65, %s66
    %p77 = scmp.eq.s32.totalorder %s19, 0
    %p78 = por %p76, %p77
    %p79 = scmp.ne.s32.totalorder %s65, %s66
    %p80 = scmp.eq.s32.totalorder %s20, 1
    %p81 = por %p79, %p80
    %p83 = scmp.ne.s32.totalorder %s66, %s82
    %p84 = scmp.eq.s32.totalorder %s20, 0
    %p85 = por %p83, %p84
    %s86 = ssub.s32 %s22, %s29
    %p87 = scmp.eq.s32.totalorder %s86, 0
    %s89 = sadd.s32 %s88, 1
    %s90 = scalar_select %p87, %s88, %s89
    %p93 = pneg %p87
    %p94 = scmp.eq.s32.totalorder %s14, 1
    %p95 = por %p93, %p94
    %p96 = scmp.ne.s32.totalorder %s88, %s91
    %p97 = scmp.eq.s32.totalorder %s14, 0
    %p98 = por %p96, %p97
    %p99 = scmp.ne.s32.totalorder %s88, %s91
    %p100 = scmp.eq.s32.totalorder %s19, 1
    %p101 = por %p99, %p100
    %p102 = scmp.ne.s32.totalorder %s91, %s92
    %p103 = scmp.eq.s32.totalorder %s19, 0
    %p104 = por %p102, %p103
    %p105 = scmp.ne.s32.totalorder %s91, %s92
    %p106 = scmp.eq.s32.totalorder %s20, 1
    %p107 = por %p105, %p106
    %p109 = scmp.ne.s32.totalorder %s92, %s108
    %p110 = scmp.eq.s32.totalorder %s20, 0
    %p111 = por %p109, %p110
    %s112 = ssub.s32 %s22, %s29
    %p113 = scmp.eq.s32.totalorder %s112, 0
    %s115 = sadd.s32 %s114, 1
    %s116 = scalar_select %p113, %s114, %s115
    %p119 = pneg %p113
    %p120 = scmp.eq.s32.totalorder %s14, 1
    %p121 = por %p119, %p120
    %p122 = scmp.ne.s32.totalorder %s114, %s117
    %p123 = scmp.eq.s32.totalorder %s14, 0
    %p124 = por %p122, %p123
    %p125 = scmp.ne.s32.totalorder %s114, %s117
    %p126 = scmp.eq.s32.totalorder %s19, 1
    %p127 = por %p125, %p126
    %p128 = scmp.ne.s32.totalorder %s117, %s118
    %p129 = scmp.eq.s32.totalorder %s19, 0
    %p130 = por %p128, %p129
    %p131 = scmp.ne.s32.totalorder %s117, %s118
    %p132 = scmp.eq.s32.totalorder %s20, 1
    %p133 = por %p131, %p132
    %p135 = scmp.ne.s32.totalorder %s118, %s134
    %p136 = scmp.eq.s32.totalorder %s20, 0
    %p137 = por %p135, %p136
    %s138 = ssub.s32 %s22, %s29
    %p139 = scmp.eq.s32.totalorder %s138, 0
    %s141 = sadd.s32 %s140, 1
    %s142 = scalar_select %p139, %s140, %s141
    %p145 = pneg %p139
    %p146 = scmp.eq.s32.totalorder %s14, 1
    %p147 = por %p145, %p146
    %p148 = scmp.ne.s32.totalorder %s140, %s143
    %p149 = scmp.eq.s32.totalorder %s14, 0
    %p150 = por %p148, %p149
    %p151 = scmp.ne.s32.totalorder %s140, %s143
    %p152 = scmp.eq.s32.totalorder %s19, 1
    %p153 = por %p151, %p152
    %p154 = scmp.ne.s32.totalorder %s143, %s144
    %p155 = scmp.eq.s32.totalorder %s19, 0
    %p156 = por %p154, %p155
    %p157 = scmp.ne.s32.totalorder %s143, %s144
    %p158 = scmp.eq.s32.totalorder %s20, 1
    %p159 = por %p157, %p158
    %p161 = scmp.ne.s32.totalorder %s144, %s160
    %p162 = scmp.eq.s32.totalorder %s20, 0
    %p163 = por %p161, %p162
    %s164 = ssub.s32 %s22, %s29
    %p165 = scmp.eq.s32.totalorder %s164, 0
    %s167 = sadd.s32 %s166, 1
    %s168 = scalar_select %p165, %s166, %s167
    %p171 = pneg %p165
    %p172 = scmp.eq.s32.totalorder %s14, 1
    %p173 = por %p171, %p172
    %p174 = scmp.ne.s32.totalorder %s166, %s169
    %p175 = scmp.eq.s32.totalorder %s14, 0
    %p176 = por %p174, %p175
    %p177 = scmp.ne.s32.totalorder %s166, %s169
    %p178 = scmp.eq.s32.totalorder %s19, 1
    %p179 = por %p177, %p178
    %p180 = scmp.ne.s32.totalorder %s169, %s170
    %p181 = scmp.eq.s32.totalorder %s19, 0
    %p182 = por %p180, %p181
    %p183 = scmp.ne.s32.totalorder %s169, %s170
    %p184 = scmp.eq.s32.totalorder %s20, 1
    %p185 = por %p183, %p184
    %p187 = scmp.ne.s32.totalorder %s170, %s186
    %p188 = scmp.eq.s32.totalorder %s20, 0
    %p189 = por %p187, %p188
    %s190 = ssub.s32 %s22, %s29
    %p191 = scmp.eq.s32.totalorder %s190, 0
    %s193 = sadd.s32 %s192, 1
    %s194 = scalar_select %p191, %s192, %s193
    %p197 = pneg %p191
    %p198 = scmp.eq.s32.totalorder %s14, 1
    %p199 = por %p197, %p198
    %p200 = scmp.ne.s32.totalorder %s192, %s195
    %p201 = scmp.eq.s32.totalorder %s14, 0
    %p202 = por %p200, %p201
    %p203 = scmp.ne.s32.totalorder %s192, %s195
    %p204 = scmp.eq.s32.totalorder %s19, 1
    %p205 = por %p203, %p204
    %p206 = scmp.ne.s32.totalorder %s195, %s196
    %p207 = scmp.eq.s32.totalorder %s19, 0
    %p208 = por %p206, %p207
    %p209 = scmp.ne.s32.totalorder %s195, %s196
    %p210 = scmp.eq.s32.totalorder %s20, 1
    %p211 = por %p209, %p210
    %p213 = scmp.ne.s32.totalorder %s196, %s212
    %p214 = scmp.eq.s32.totalorder %s20, 0
    %p215 = por %p213, %p214
    %s217 = sadd.s32 %s216, 1
    %p220 = scmp.eq.s32.totalorder %s14, 1
    %p221 = scmp.ne.s32.totalorder %s216, %s218
    %p222 = scmp.eq.s32.totalorder %s14, 0
    %p223 = por %p221, %p222
    %p224 = scmp.ne.s32.totalorder %s216, %s218
    %p225 = scmp.eq.s32.totalorder %s19, 1
    %p226 = por %p224, %p225
    %p227 = scmp.ne.s32.totalorder %s218, %s219
    %p228 = scmp.eq.s32.totalorder %s19, 0
    %p229 = por %p227, %p228
    %p230 = scmp.ne.s32.totalorder %s218, %s219
    %p231 = scmp.eq.s32.totalorder %s20, 1
    %p232 = por %p230, %p231
    %p234 = scmp.ne.s32.totalorder %s219, %s233
    %p235 = scmp.eq.s32.totalorder %s20, 0
    %p236 = por %p234, %p235
    %s237 = ssub.s32 %s21, %s33
    %s238 = ssub.s32 %s22, %s29
    %s239 = sor.u32 %s237, %s238
    %p240 = scmp.eq.s32.totalorder %s239, 0
    %s242 = sadd.s32 %s241, 1
    %s243 = scalar_select %p240, %s241, %s242
    %p246 = pneg %p240
    %p247 = scmp.eq.s32.totalorder %s14, 1
    %p248 = por %p246, %p247
    %p249 = scmp.ne.s32.totalorder %s241, %s244
    %p250 = scmp.eq.s32.totalorder %s14, 0
    %p251 = por %p249, %p250
    %p252 = scmp.ne.s32.totalorder %s241, %s244
    %p253 = scmp.eq.s32.totalorder %s19, 1
    %p254 = por %p252, %p253
    %p255 = scmp.ne.s32.totalorder %s244, %s245
    %p256 = scmp.eq.s32.totalorder %s19, 0
    %p257 = por %p255, %p256
    %p258 = scmp.ne.s32.totalorder %s244, %s245
    %p259 = scmp.eq.s32.totalorder %s20, 1
    %p260 = por %p258, %p259
    %p262 = scmp.ne.s32.totalorder %s245, %s261
    %p263 = scmp.eq.s32.totalorder %s20, 0
    %p264 = por %p262, %p263
    %p265 = scmp.le.s32.totalorder 1, %s14
    %p266 = scmp.lt.s32.totalorder %s14, 3
    %p267 = pnand %p265, %p266
    %p268 = pneg %p267
    // Predicated region
    $region9: #{light_conv_forward.1} parent=5 // pred_check
      _
    $region10: #{light_conv_forward.1} parent=5 // pred_check_branch
      %270 = sbr.rel (%p267) target = $region12
    $region11: #{light_conv_forward.1} parent=5 // pred_region
      %s271 = ssub.s32 %s14, 1
      // Predicated region
      $region13: #{light_conv_forward.1} parent=11 // pred_check
        %p272 = pneg %p78
      $region14: #{light_conv_forward.1} parent=11 // pred_check_branch
        %274 = sbr.rel (%p272) target = $region16
      $region15: #{light_conv_forward.1} parent=11 // pred_region
        %s275 = smul.u32 4, %s24
        %p276 = scmp.lt.s32.totalorder %s275, 3
        %s277 = scalar_select %p276, %s275, 3
        %s278 = smul.addr %s277, 4
        %s279 = scalar_lea.vmem %s1, %s278
        %s280 = smul.u32 4, %s24
      $region16: #{light_conv_forward.1} parent=11 // pred_fallthru
        _
      // Predicated region
      $region17: #{light_conv_forward.1} parent=11 // pred_check
        %p281 = pneg %p104
      $region18: #{light_conv_forward.1} parent=11 // pred_check_branch
        %283 = sbr.rel (%p281) target = $region20
      $region19: #{light_conv_forward.1} parent=11 // pred_region
        %s284 = smul.u32 4, %s24
        %p285 = scmp.lt.s32.totalorder %s284, 3
        %s286 = scalar_select %p285, %s284, 3
        %s287 = smul.addr %s286, 8
        %s288 = scalar_lea.vmem %s2, %s287
        %s289 = smul.u32 4, %s24
      $region20: #{light_conv_forward.1} parent=11 // pred_fallthru
        _
      // Predicated region
      $region21: #{light_conv_forward.1} parent=11 // pred_check
        %p290 = pneg %p130
      $region22: #{light_conv_forward.1} parent=11 // pred_check_branch
        %292 = sbr.rel (%p290) target = $region24
      $region23: #{light_conv_forward.1} parent=11 // pred_region
        %s293 = smul.u32 4, %s24
        %p294 = scmp.lt.s32.totalorder %s293, 3
        %s295 = scalar_select %p294, %s293, 3
        %s296 = smul.addr %s295, 8
        %s297 = scalar_lea.vmem %s3, %s296
        %s298 = smul.u32 4, %s24
      $region24: #{light_conv_forward.1} parent=11 // pred_fallthru
        _
      // Predicated region
      $region25: #{light_conv_forward.1} parent=11 // pred_check
        %p299 = pneg %p156
      $region26: #{light_conv_forward.1} parent=11 // pred_check_branch
        %301 = sbr.rel (%p299) target = $region28
      $region27: #{light_conv_forward.1} parent=11 // pred_region
        %s302 = smul.u32 4, %s24
        %p303 = scmp.lt.s32.totalorder %s302, 3
        %s304 = scalar_select %p303, %s302, 3
        %s305 = smul.addr %s304, 8
        %s306 = scalar_lea.vmem %s4, %s305
        %s307 = smul.u32 4, %s24
      $region28: #{light_conv_forward.1} parent=11 // pred_fallthru
        _
      // Predicated region
      $region29: #{light_conv_forward.1} parent=11 // pred_check
        %p308 = pneg %p182
      $region30: #{light_conv_forward.1} parent=11 // pred_check_branch
        %310 = sbr.rel (%p308) target = $region32
      $region31: #{light_conv_forward.1} parent=11 // pred_region
        %s311 = smul.u32 4, %s24
        %p312 = scmp.lt.s32.totalorder %s311, 3
        %s313 = scalar_select %p312, %s311, 3
        %s314 = smul.addr %s313, 8
        %s315 = scalar_lea.vmem %s5, %s314
        %s316 = smul.u32 4, %s24
      $region32: #{light_conv_forward.1} parent=11 // pred_fallthru
        _
      // Predicated region
      $region33: #{light_conv_forward.1} parent=11 // pred_check
        %p317 = pneg %p208
      $region34: #{light_conv_forward.1} parent=11 // pred_check_branch
        %319 = sbr.rel (%p317) target = $region36
      $region35: #{light_conv_forward.1} parent=11 // pred_region
        %s320 = smul.u32 4, %s24
        %p321 = scmp.lt.s32.totalorder %s320, 3
        %s322 = scalar_select %p321, %s320, 3
        %s323 = smul.addr %s322, 8
        %s324 = scalar_lea.vmem %s6, %s323
        %s325 = smul.u32 4, %s24
      $region36: #{light_conv_forward.1} parent=11 // pred_fallthru
        _
      // Predicated region
      $region37: #{light_conv_forward.1} parent=11 // pred_check
        %p326 = pneg %p229
      $region38: #{light_conv_forward.1} parent=11 // pred_check_branch
        %328 = sbr.rel (%p326) target = $region40
      $region39: #{light_conv_forward.1} parent=11 // pred_region
        _
      $region40: #{light_conv_forward.1} parent=11 // pred_fallthru
        _
    $region12: #{light_conv_forward.1} parent=5 // pred_fallthru
      _
    %p329 = scmp.lt.s32.totalorder %s14, 2
    // Predicated region
    $region41: #{light_conv_forward.1} parent=5 // pred_check
      %p330 = pneg %p329
    $region42: #{light_conv_forward.1} parent=5 // pred_check_branch
      %332 = sbr.rel (%p330) target = $region44
    $region43: #{light_conv_forward.1} parent=5 // pred_region
      // Predicated region
      $region45: #{light_conv_forward.1} parent=43 // pred_check
        %p333 = pneg %p46
      $region46: #{light_conv_forward.1} parent=43 // pred_check_branch
        %335 = sbr.rel (%p333) target = $region48
      $region47: #{light_conv_forward.1} parent=43 // pred_region
        %p336 = scmp.lt.s32.totalorder %s21, 1
        %s337 = scalar_select %p336, %s21, 1
        %s338 = smul.addr %s337, 16
        %s339 = smul.addr %s338, 4
        %s340 = scalar_lea.vmem %s0, %s339
      $region48: #{light_conv_forward.1} parent=43 // pred_fallthru
        _
    $region44: #{light_conv_forward.1} parent=5 // pred_fallthru
      _
    %p341 = scmp.le.s32.totalorder 1, %s14
    %p342 = scmp.lt.s32.totalorder %s14, 3
    %p343 = pnand %p341, %p342
    %p344 = pneg %p343
    // Predicated region
    $region49: #{light_conv_forward.1} parent=5 // pred_check
      _
    $region50: #{light_conv_forward.1} parent=5 // pred_check_branch
      %346 = sbr.rel (%p343) target = $region52
    $region51: #{light_conv_forward.1} parent=5 // pred_region
      %s347 = ssub.s32 %s14, 1
      %p348 = scmp.lt.s32.totalorder %s23, 1
      %s349 = scalar_select %p348, %s23, 1
      %s350 = smul.addr %s349, 16
      %s351 = smul.addr %s350, 4
      %s352 = scalar_lea.vmem %s0, %s351
      %p353 = pneg %p52
      %p354 = pneg %p49
      %s355 = smul.u32 4, %s24
      %p356 = scmp.lt.s32.totalorder %s355, 3
      %s357 = scalar_select %p356, %s355, 3
      %s358 = smul.addr %s357, 4
      %s359 = scalar_lea.vmem %s1, %s358
      %p360 = pneg %p78
      %p361 = pneg %p75
      %s362 = smul.u32 4, %s24
      %p363 = scmp.lt.s32.totalorder %s362, 3
      %s364 = scalar_select %p363, %s362, 3
      %s365 = smul.addr %s364, 8
      %s366 = scalar_lea.vmem %s2, %s365
      %p367 = pneg %p104
      %p368 = pneg %p101
      %s369 = smul.u32 4, %s24
      %p370 = scmp.lt.s32.totalorder %s369, 3
      %s371 = scalar_select %p370, %s369, 3
      %s372 = smul.addr %s371, 8
      %s373 = scalar_lea.vmem %s3, %s372
      %p374 = pneg %p130
      %p375 = pneg %p127
      %s376 = smul.u32 4, %s24
      %p377 = scmp.lt.s32.totalorder %s376, 3
      %s378 = scalar_select %p377, %s376, 3
      %s379 = smul.addr %s378, 8
      %s380 = scalar_lea.vmem %s4, %s379
      %p381 = pneg %p156
      %p382 = pneg %p153
      %s383 = smul.u32 4, %s24
      %p384 = scmp.lt.s32.totalorder %s383, 3
      %s385 = scalar_select %p384, %s383, 3
      %s386 = smul.addr %s385, 8
      %s387 = scalar_lea.vmem %s5, %s386
      %p388 = pneg %p182
      %p389 = pneg %p179
      %s390 = smul.u32 4, %s24
      %p391 = scmp.lt.s32.totalorder %s390, 3
      %s392 = scalar_select %p391, %s390, 3
      %s393 = smul.addr %s392, 8
      %s394 = scalar_lea.vmem %s6, %s393
      %p395 = pneg %p208
      %p396 = pneg %p205
      %p397 = pneg %p229
      %p398 = pneg %p226
      %p399 = pneg %p257
      %p400 = pneg %p254
      %s401 = smul.u32 4, %s24
      %p402 = scmp.lt.s32.totalorder %s23, 1
      %s403 = scalar_select %p402, %s23, 1
      %p404 = scmp.lt.s32.totalorder %s401, 3
      %s405 = scalar_select %p404, %s401, 3
      %s406 = smul.addr %s405, 8
      %s407 = smul.addr %s403, 32
      %s408 = sadd.s32 %s406, %s407
      %s409 = smul.addr %s408, 8
      %s410 = scalar_lea.vmem %s8, %s409
      %p411 = scmp.lt.s32.totalorder %s23, 1
      %s412 = scalar_select %p411, %s23, 1
      %s413 = smul.addr %s412, 16
      %s414 = smul.addr %s413, 4
      %s415 = scalar_lea.vmem %s0, %s414
      %s416 = smul.u32 4, %s24
      %p417 = scmp.lt.s32.totalorder %s416, 3
      %s418 = scalar_select %p417, %s416, 3
      %s419 = smul.addr %s418, 4
      %s420 = scalar_lea.vmem %s1, %s419
      %s421 = smul.u32 4, %s24
      %s422 = smul.u32 4, %s24
      %p423 = scmp.lt.s32.totalorder %s422, 3
      %s424 = scalar_select %p423, %s422, 3
      %s425 = smul.addr %s424, 8
      %s426 = scalar_lea.vmem %s2, %s425
      %s427 = smul.u32 4, %s24
      %s428 = smul.u32 4, %s24
      %p429 = scmp.lt.s32.totalorder %s428, 3
      %s430 = scalar_select %p429, %s428, 3
      %s431 = smul.addr %s430, 8
      %s432 = scalar_lea.vmem %s3, %s431
      %s433 = smul.u32 4, %s24
      %s434 = smul.u32 4, %s24
      %p435 = scmp.lt.s32.totalorder %s434, 3
      %s436 = scalar_select %p435, %s434, 3
      %s437 = smul.addr %s436, 8
      %s438 = scalar_lea.vmem %s4, %s437
      %s439 = smul.u32 4, %s24
      %s440 = smul.u32 4, %s24
      %p441 = scmp.lt.s32.totalorder %s440, 3
      %s442 = scalar_select %p441, %s440, 3
      %s443 = smul.addr %s442, 8
      %s444 = scalar_lea.vmem %s5, %s443
      %s445 = smul.u32 4, %s24
      %s446 = smul.u32 4, %s24
      %p447 = scmp.lt.s32.totalorder %s446, 3
      %s448 = scalar_select %p447, %s446, 3
      %s449 = smul.addr %s448, 8
      %s450 = scalar_lea.vmem %s6, %s449
      %s451 = smul.u32 4, %s24
      %s452 = smul.u32 4, %s24
      %p453 = scmp.lt.s32.totalorder %s23, 1
      %s454 = scalar_select %p453, %s23, 1
      %p455 = scmp.lt.s32.totalorder %s452, 3
      %s456 = scalar_select %p455, %s452, 3
      %s457 = smul.addr %s456, 8
      %s458 = smul.addr %s454, 32
      %s459 = sadd.s32 %s457, %s458
      %s460 = smul.addr %s459, 8
      %s461 = scalar_lea.vmem %s8, %s460
      %s462 = smul.u32 4, %s24
      %v464 = vld [vmem:[%s420] sm:$0xf]
      %v465 = vld [vmem:[%s420 + $0x4] sm:$0xf]
      %v466 = vld [vmem:[%s420 + $0x8] sm:$0xf]
      %v467 = vld [vmem:[%s420 + $0xc] sm:$0xf]
      %v468 = vld [vmem:[%s415] sm:$0xff]
      %v469 = vld [vmem:[%s415 + $0x8] sm:$0xff]
      %v470 = vld [vmem:[%s415 + $0x10] sm:$0xff]
      %v471 = vld [vmem:[%s415 + $0x18] sm:$0xff]
      %v472 = vld [vmem:[%s415 + $0x20] sm:$0xff]
      %v473 = vld [vmem:[%s415 + $0x28] sm:$0xff]
      %v474 = vld [vmem:[%s415 + $0x30] sm:$0xff]
      %v475 = vld [vmem:[%s415 + $0x38] sm:$0xff]
      %v480 = vunpack.c.l.b16 %v464
      %v481 = vunpack.c.l.b16 %v465
      %v482 = vunpack.c.l.b16 %v466
      %v483 = vunpack.c.l.b16 %v467
      %v484 = vpack.c.b16 %v481, %v480
      %v485 = vpack.c.b16 %v483, %v482
      %v494 = vunpack.c.l.b16 %v468
      %v495 = vunpack.c.h.b16 %v468
      %v496 = vunpack.c.l.b16 %v469
      %v497 = vunpack.c.h.b16 %v469
      %v498 = vunpack.c.l.b16 %v470
      %v499 = vunpack.c.h.b16 %v470
      %v500 = vunpack.c.l.b16 %v471
      %v501 = vunpack.c.h.b16 %v471
      %v502 = vunpack.c.l.b16 %v472
      %v503 = vunpack.c.h.b16 %v472
      %v504 = vunpack.c.l.b16 %v473
      %v505 = vunpack.c.h.b16 %v473
      %v506 = vunpack.c.l.b16 %v474
      %v507 = vunpack.c.h.b16 %v474
      %v508 = vunpack.c.l.b16 %v475
      %v509 = vunpack.c.h.b16 %v475
      %v510 = vpack.c.b16 %v502, %v494
      %v511 = vpack.c.b16 %v503, %v495
      %v512 = vpack.c.b16 %v504, %v496
      %v513 = vpack.c.b16 %v505, %v497
      %v514 = vpack.c.b16 %v506, %v498
      %v515 = vpack.c.b16 %v507, %v499
      %v516 = vpack.c.b16 %v508, %v500
      %v517 = vpack.c.b16 %v509, %v501
      %vm526 = vcmask 130048
      %v528 = vsel %vm526, %v484, 0
      %v531 = vsel %vm526, %v485, 0
      %533 = vmatpush.bf16.msra.mxu0 0
      %534 = vmatpush.bf16.msra.mxu0 0
      %535 = vmatpush.bf16.msra.mxu0 0
      %536 = vmatpush.bf16.msra.mxu0 0
      %537 = vmatpush.bf16.msra.mxu0 0
      %538 = vmatpush.bf16.msra.mxu0 0
      %539 = vmatpush.bf16.msra.mxu0 0
      %540 = vmatpush.bf16.msra.mxu0 %v510
      %541 = vmatmul.bf16.gmra.mxu0 %v528
      %v542 = vpop.f32.mrf.mxu0
      %v543 = vadd.f32 0.0, %v542
      %v544 = vpop.f32.mrf.mxu0
      %v545 = vadd.f32 0.0, %v544
      %546 = vmatmul.bf16.gmra.mxu0 %v531
      %v547 = vpop.f32.mrf.mxu0
      %v548 = vadd.f32 0.0, %v547
      %v549 = vpop.f32.mrf.mxu0
      %v550 = vadd.f32 0.0, %v549
      %551 = vdwg.mxu0
      %552 = vmatpush.bf16.msra.mxu0 0
      %553 = vmatpush.bf16.msra.mxu0 0
      %554 = vmatpush.bf16.msra.mxu0 0
      %555 = vmatpush.bf16.msra.mxu0 0
      %556 = vmatpush.bf16.msra.mxu0 0
      %557 = vmatpush.bf16.msra.mxu0 0
      %558 = vmatpush.bf16.msra.mxu0 0
      %559 = vmatpush.bf16.msra.mxu0 %v511
      %560 = vmatmul.bf16.gmra.mxu0 %v528
      %v561 = vpop.f32.mrf.mxu0
      %v562 = vadd.f32 0.0, %v561
      %v563 = vpop.f32.mrf.mxu0
      %v564 = vadd.f32 0.0, %v563
      %565 = vmatmul.bf16.gmra.mxu0 %v531
      %v566 = vpop.f32.mrf.mxu0
      %v567 = vadd.f32 0.0, %v566
      %v568 = vpop.f32.mrf.mxu0
      %v569 = vadd.f32 0.0, %v568
      %570 = vdwg.mxu0
      %571 = vmatpush.bf16.msra.mxu0 0
      %572 = vmatpush.bf16.msra.mxu0 0
      %573 = vmatpush.bf16.msra.mxu0 0
      %574 = vmatpush.bf16.msra.mxu0 0
      %575 = vmatpush.bf16.msra.mxu0 0
      %576 = vmatpush.bf16.msra.mxu0 0
      %577 = vmatpush.bf16.msra.mxu0 0
      %578 = vmatpush.bf16.msra.mxu0 %v512
      %579 = vmatmul.bf16.gmra.mxu0 %v528
      %v580 = vpop.f32.mrf.mxu0
      %v581 = vadd.f32 0.0, %v580
      %v582 = vpop.f32.mrf.mxu0
      %v583 = vadd.f32 0.0, %v582
      %584 = vmatmul.bf16.gmra.mxu0 %v531
      %v585 = vpop.f32.mrf.mxu0
      %v586 = vadd.f32 0.0, %v585
      %v587 = vpop.f32.mrf.mxu0
      %v588 = vadd.f32 0.0, %v587
      %589 = vdwg.mxu0
      %590 = vmatpush.bf16.msra.mxu0 0
      %591 = vmatpush.bf16.msra.mxu0 0
      %592 = vmatpush.bf16.msra.mxu0 0
      %593 = vmatpush.bf16.msra.mxu0 0
      %594 = vmatpush.bf16.msra.mxu0 0
      %595 = vmatpush.bf16.msra.mxu0 0
      %596 = vmatpush.bf16.msra.mxu0 0
      %597 = vmatpush.bf16.msra.mxu0 %v513
      %598 = vmatmul.bf16.gmra.mxu0 %v528
      %v599 = vpop.f32.mrf.mxu0
      %v600 = vadd.f32 0.0, %v599
      %v601 = vpop.f32.mrf.mxu0
      %v602 = vadd.f32 0.0, %v601
      %603 = vmatmul.bf16.gmra.mxu0 %v531
      %v604 = vpop.f32.mrf.mxu0
      %v605 = vadd.f32 0.0, %v604
      %v606 = vpop.f32.mrf.mxu0
      %v607 = vadd.f32 0.0, %v606
      %608 = vdwg.mxu0
      %609 = vmatpush.bf16.msra.mxu0 0
      %610 = vmatpush.bf16.msra.mxu0 0
      %611 = vmatpush.bf16.msra.mxu0 0
      %612 = vmatpush.bf16.msra.mxu0 0
      %613 = vmatpush.bf16.msra.mxu0 0
      %614 = vmatpush.bf16.msra.mxu0 0
      %615 = vmatpush.bf16.msra.mxu0 0
      %616 = vmatpush.bf16.msra.mxu0 %v514
      %617 = vmatmul.bf16.gmra.mxu0 %v528
      %v618 = vpop.f32.mrf.mxu0
      %v619 = vadd.f32 0.0, %v618
      %v620 = vpop.f32.mrf.mxu0
      %v621 = vadd.f32 0.0, %v620
      %622 = vmatmul.bf16.gmra.mxu0 %v531
      %v623 = vpop.f32.mrf.mxu0
      %v624 = vadd.f32 0.0, %v623
      %v625 = vpop.f32.mrf.mxu0
      %v626 = vadd.f32 0.0, %v625
      %627 = vdwg.mxu0
      %628 = vmatpush.bf16.msra.mxu0 0
      %629 = vmatpush.bf16.msra.mxu0 0
      %630 = vmatpush.bf16.msra.mxu0 0
      %631 = vmatpush.bf16.msra.mxu0 0
      %632 = vmatpush.bf16.msra.mxu0 0
      %633 = vmatpush.bf16.msra.mxu0 0
      %634 = vmatpush.bf16.msra.mxu0 0
      %635 = vmatpush.bf16.msra.mxu0 %v515
      %636 = vmatmul.bf16.gmra.mxu0 %v528
      %v637 = vpop.f32.mrf.mxu0
      %v638 = vadd.f32 0.0, %v637
      %v639 = vpop.f32.mrf.mxu0
      %v640 = vadd.f32 0.0, %v639
      %641 = vmatmul.bf16.gmra.mxu0 %v531
      %v642 = vpop.f32.mrf.mxu0
      %v643 = vadd.f32 0.0, %v642
      %v644 = vpop.f32.mrf.mxu0
      %v645 = vadd.f32 0.0, %v644
      %646 = vdwg.mxu0
      %647 = vmatpush.bf16.msra.mxu0 0
      %648 = vmatpush.bf16.msra.mxu0 0
      %649 = vmatpush.bf16.msra.mxu0 0
      %650 = vmatpush.bf16.msra.mxu0 0
      %651 = vmatpush.bf16.msra.mxu0 0
      %652 = vmatpush.bf16.msra.mxu0 0
      %653 = vmatpush.bf16.msra.mxu0 0
      %654 = vmatpush.bf16.msra.mxu0 %v516
      %655 = vmatmul.bf16.gmra.mxu0 %v528
      %v656 = vpop.f32.mrf.mxu0
      %v657 = vadd.f32 0.0, %v656
      %v658 = vpop.f32.mrf.mxu0
      %v659 = vadd.f32 0.0, %v658
      %660 = vmatmul.bf16.gmra.mxu0 %v531
      %v661 = vpop.f32.mrf.mxu0
      %v662 = vadd.f32 0.0, %v661
      %v663 = vpop.f32.mrf.mxu0
      %v664 = vadd.f32 0.0, %v663
      %665 = vdwg.mxu0
      %666 = vmatpush.bf16.msra.mxu0 0
      %667 = vmatpush.bf16.msra.mxu0 0
      %668 = vmatpush.bf16.msra.mxu0 0
      %669 = vmatpush.bf16.msra.mxu0 0
      %670 = vmatpush.bf16.msra.mxu0 0
      %671 = vmatpush.bf16.msra.mxu0 0
      %672 = vmatpush.bf16.msra.mxu0 0
      %673 = vmatpush.bf16.msra.mxu0 %v517
      %674 = vmatmul.bf16.gmra.mxu0 %v528
      %v675 = vpop.f32.mrf.mxu0
      %v676 = vadd.f32 0.0, %v675
      %v677 = vpop.f32.mrf.mxu0
      %v678 = vadd.f32 0.0, %v677
      %679 = vmatmul.bf16.gmra.mxu0 %v531
      %v680 = vpop.f32.mrf.mxu0
      %v681 = vadd.f32 0.0, %v680
      %v682 = vpop.f32.mrf.mxu0
      %v683 = vadd.f32 0.0, %v682
      %684 = vdwg.mxu0
      %v685 = vld [vmem:[%s426] sm:$0xff]
      %v686 = vld [vmem:[%s426 + $0x8] sm:$0xff]
      %v687 = vld [vmem:[%s426 + $0x10] sm:$0xff]
      %v688 = vld [vmem:[%s426 + $0x18] sm:$0xff]
      %690 = vset.pattern.permute.xlu0 0
      %691 = vperm.xlu0 %690, %v685
      %v692 = vpop.permute.xlu0 %691
      %695 = vset.pattern.permute.xlu0 0
      %696 = vperm.xlu0 %695, %v686
      %v697 = vpop.permute.xlu0 %696
      %700 = vset.pattern.permute.xlu0 0
      %701 = vperm.xlu0 %700, %v687
      %v702 = vpop.permute.xlu0 %701
      %705 = vset.pattern.permute.xlu0 0
      %706 = vperm.xlu0 %705, %v688
      %v707 = vpop.permute.xlu0 %706
      %v709 = vmul.f32 %v543, %v692
      %v710 = vmul.f32 %v562, %v692
      %v711 = vmul.f32 %v581, %v692
      %v712 = vmul.f32 %v600, %v692
      %v713 = vmul.f32 %v619, %v692
      %v714 = vmul.f32 %v638, %v692
      %v715 = vmul.f32 %v657, %v692
      %v716 = vmul.f32 %v676, %v692
      %v717 = vmul.f32 %v545, %v697
      %v718 = vmul.f32 %v564, %v697
      %v719 = vmul.f32 %v583, %v697
      %v720 = vmul.f32 %v602, %v697
      %v721 = vmul.f32 %v621, %v697
      %v722 = vmul.f32 %v640, %v697
      %v723 = vmul.f32 %v659, %v697
      %v724 = vmul.f32 %v678, %v697
      %v725 = vmul.f32 %v548, %v702
      %v726 = vmul.f32 %v567, %v702
      %v727 = vmul.f32 %v586, %v702
      %v728 = vmul.f32 %v605, %v702
      %v729 = vmul.f32 %v624, %v702
      %v730 = vmul.f32 %v643, %v702
      %v731 = vmul.f32 %v662, %v702
      %v732 = vmul.f32 %v681, %v702
      %v733 = vmul.f32 %v550, %v707
      %v734 = vmul.f32 %v569, %v707
      %v735 = vmul.f32 %v588, %v707
      %v736 = vmul.f32 %v607, %v707
      %v737 = vmul.f32 %v626, %v707
      %v738 = vmul.f32 %v645, %v707
      %v739 = vmul.f32 %v664, %v707
      %v740 = vmul.f32 %v683, %v707
      %v741 = vld [vmem:[%s432] sm:$0xff]
      %v742 = vld [vmem:[%s432 + $0x8] sm:$0xff]
      %v743 = vld [vmem:[%s432 + $0x10] sm:$0xff]
      %v744 = vld [vmem:[%s432 + $0x18] sm:$0xff]
      %746 = vset.pattern.permute.xlu0 0
      %747 = vperm.xlu0 %746, %v741
      %v748 = vpop.permute.xlu0 %747
      %751 = vset.pattern.permute.xlu0 0
      %752 = vperm.xlu0 %751, %v742
      %v753 = vpop.permute.xlu0 %752
      %756 = vset.pattern.permute.xlu0 0
      %757 = vperm.xlu0 %756, %v743
      %v758 = vpop.permute.xlu0 %757
      %761 = vset.pattern.permute.xlu0 0
      %762 = vperm.xlu0 %761, %v744
      %v763 = vpop.permute.xlu0 %762
      %v765 = vadd.f32 %v709, %v748
      %v766 = vadd.f32 %v710, %v748
      %v767 = vadd.f32 %v711, %v748
      %v768 = vadd.f32 %v712, %v748
      %v769 = vadd.f32 %v713, %v748
      %v770 = vadd.f32 %v714, %v748
      %v771 = vadd.f32 %v715, %v748
      %v772 = vadd.f32 %v716, %v748
      %v773 = vadd.f32 %v717, %v753
      %v774 = vadd.f32 %v718, %v753
      %v775 = vadd.f32 %v719, %v753
      %v776 = vadd.f32 %v720, %v753
      %v777 = vadd.f32 %v721, %v753
      %v778 = vadd.f32 %v722, %v753
      %v779 = vadd.f32 %v723, %v753
      %v780 = vadd.f32 %v724, %v753
      %v781 = vadd.f32 %v725, %v758
      %v782 = vadd.f32 %v726, %v758
      %v783 = vadd.f32 %v727, %v758
      %v784 = vadd.f32 %v728, %v758
      %v785 = vadd.f32 %v729, %v758
      %v786 = vadd.f32 %v730, %v758
      %v787 = vadd.f32 %v731, %v758
      %v788 = vadd.f32 %v732, %v758
      %v789 = vadd.f32 %v733, %v763
      %v790 = vadd.f32 %v734, %v763
      %v791 = vadd.f32 %v735, %v763
      %v792 = vadd.f32 %v736, %v763
      %v793 = vadd.f32 %v737, %v763
      %v794 = vadd.f32 %v738, %v763
      %v795 = vadd.f32 %v739, %v763
      %v796 = vadd.f32 %v740, %v763
      %vm797 = vcmask 269312
      %798 = vst.msk [vmem:[#allocation2] sm:$0xff] %vm797, 0.0
      %799 = vst.msk [vmem:[#allocation2 + $0x48] sm:$0xff] %vm797, 0.0
      %800 = vst.msk [vmem:[#allocation2 + $0x90] sm:$0xff] %vm797, 0.0
      %801 = vst.msk [vmem:[#allocation2 + $0xd8] sm:$0xff] %vm797, 0.0
      %vm802 = vcmask 539912
      %803 = vst.msk [vmem:[#allocation2 + $0x40] sm:$0xff] %vm802, 0.0
      %804 = vst.msk [vmem:[#allocation2 + $0x88] sm:$0xff] %vm802, 0.0
      %805 = vst.msk [vmem:[#allocation2 + $0xd0] sm:$0xff] %vm802, 0.0
      %806 = vst.msk [vmem:[#allocation2 + $0x118] sm:$0xff] %vm802, 0.0
      %839 = vrot.lane.b32.xlu0 %v765, 33
      %v840 = vpop.permute.xlu0 %839
      %841 = vrot.lane.b32.xlu0 %v766, 33
      %v842 = vpop.permute.xlu0 %841
      %843 = vrot.lane.b32.xlu0 %v767, 33
      %v844 = vpop.permute.xlu0 %843
      %845 = vrot.lane.b32.xlu0 %v768, 33
      %v846 = vpop.permute.xlu0 %845
      %847 = vrot.lane.b32.xlu0 %v769, 33
      %v848 = vpop.permute.xlu0 %847
      %849 = vrot.lane.b32.xlu0 %v770, 33
      %v850 = vpop.permute.xlu0 %849
      %851 = vrot.lane.b32.xlu0 %v771, 33
      %v852 = vpop.permute.xlu0 %851
      %853 = vrot.lane.b32.xlu0 %v772, 33
      %v854 = vpop.permute.xlu0 %853
      %855 = vrot.lane.b32.xlu0 %v773, 33
      %v856 = vpop.permute.xlu0 %855
      %857 = vrot.lane.b32.xlu0 %v774, 33
      %v858 = vpop.permute.xlu0 %857
      %859 = vrot.lane.b32.xlu0 %v775, 33
      %v860 = vpop.permute.xlu0 %859
      %861 = vrot.lane.b32.xlu0 %v776, 33
      %v862 = vpop.permute.xlu0 %861
      %863 = vrot.lane.b32.xlu0 %v777, 33
      %v864 = vpop.permute.xlu0 %863
      %865 = vrot.lane.b32.xlu0 %v778, 33
      %v866 = vpop.permute.xlu0 %865
      %867 = vrot.lane.b32.xlu0 %v779, 33
      %v868 = vpop.permute.xlu0 %867
      %869 = vrot.lane.b32.xlu0 %v780, 33
      %v870 = vpop.permute.xlu0 %869
      %871 = vrot.lane.b32.xlu0 %v781, 33
      %v872 = vpop.permute.xlu0 %871
      %873 = vrot.lane.b32.xlu0 %v782, 33
      %v874 = vpop.permute.xlu0 %873
      %875 = vrot.lane.b32.xlu0 %v783, 33
      %v876 = vpop.permute.xlu0 %875
      %877 = vrot.lane.b32.xlu0 %v784, 33
      %v878 = vpop.permute.xlu0 %877
      %879 = vrot.lane.b32.xlu0 %v785, 33
      %v880 = vpop.permute.xlu0 %879
      %881 = vrot.lane.b32.xlu0 %v786, 33
      %v882 = vpop.permute.xlu0 %881
      %883 = vrot.lane.b32.xlu0 %v787, 33
      %v884 = vpop.permute.xlu0 %883
      %885 = vrot.lane.b32.xlu0 %v788, 33
      %v886 = vpop.permute.xlu0 %885
      %887 = vrot.lane.b32.xlu0 %v789, 33
      %v888 = vpop.permute.xlu0 %887
      %889 = vrot.lane.b32.xlu0 %v790, 33
      %v890 = vpop.permute.xlu0 %889
      %891 = vrot.lane.b32.xlu0 %v791, 33
      %v892 = vpop.permute.xlu0 %891
      %893 = vrot.lane.b32.xlu0 %v792, 33
      %v894 = vpop.permute.xlu0 %893
      %895 = vrot.lane.b32.xlu0 %v793, 33
      %v896 = vpop.permute.xlu0 %895
      %897 = vrot.lane.b32.xlu0 %v794, 33
      %v898 = vpop.permute.xlu0 %897
      %899 = vrot.lane.b32.xlu0 %v795, 33
      %v900 = vpop.permute.xlu0 %899
      %901 = vrot.lane.b32.xlu0 %v796, 33
      %v902 = vpop.permute.xlu0 %901
      %v903 = vsel %vm797, %v840, %v842
      %v904 = vsel %vm797, %v842, %v844
      %v905 = vsel %vm797, %v844, %v846
      %v906 = vsel %vm797, %v846, %v848
      %v907 = vsel %vm797, %v848, %v850
      %v908 = vsel %vm797, %v850, %v852
      %v909 = vsel %vm797, %v852, %v854
      %v910 = vsel %vm797, %v856, %v858
      %v911 = vsel %vm797, %v858, %v860
      %v912 = vsel %vm797, %v860, %v862
      %v913 = vsel %vm797, %v862, %v864
      %v914 = vsel %vm797, %v864, %v866
      %v915 = vsel %vm797, %v866, %v868
      %v916 = vsel %vm797, %v868, %v870
      %v917 = vsel %vm797, %v872, %v874
      %v918 = vsel %vm797, %v874, %v876
      %v919 = vsel %vm797, %v876, %v878
      %v920 = vsel %vm797, %v878, %v880
      %v921 = vsel %vm797, %v880, %v882
      %v922 = vsel %vm797, %v882, %v884
      %v923 = vsel %vm797, %v884, %v886
      %v924 = vsel %vm797, %v888, %v890
      %v925 = vsel %vm797, %v890, %v892
      %v926 = vsel %vm797, %v892, %v894
      %v927 = vsel %vm797, %v894, %v896
      %v928 = vsel %vm797, %v896, %v898
      %v929 = vsel %vm797, %v898, %v900
      %v930 = vsel %vm797, %v900, %v902
      %vm967 = vcmask 1047816
      %968 = vst.msk [vmem:[#allocation2] sm:$0xff] %vm967, %v840
      %969 = vst [vmem:[#allocation2 + $0x8] sm:$0xff] %v903
      %970 = vst [vmem:[#allocation2 + $0x10] sm:$0xff] %v904
      %971 = vst [vmem:[#allocation2 + $0x18] sm:$0xff] %v905
      %972 = vst [vmem:[#allocation2 + $0x20] sm:$0xff] %v906
      %973 = vst [vmem:[#allocation2 + $0x28] sm:$0xff] %v907
      %974 = vst [vmem:[#allocation2 + $0x30] sm:$0xff] %v908
      %975 = vst [vmem:[#allocation2 + $0x38] sm:$0xff] %v909
      %976 = vst.msk [vmem:[#allocation2 + $0x40] sm:$0xff] %vm797, %v854
      %977 = vst.msk [vmem:[#allocation2 + $0x48] sm:$0xff] %vm967, %v856
      %978 = vst [vmem:[#allocation2 + $0x50] sm:$0xff] %v910
      %979 = vst [vmem:[#allocation2 + $0x58] sm:$0xff] %v911
      %980 = vst [vmem:[#allocation2 + $0x60] sm:$0xff] %v912
      %981 = vst [vmem:[#allocation2 + $0x68] sm:$0xff] %v913
      %982 = vst [vmem:[#allocation2 + $0x70] sm:$0xff] %v914
      %983 = vst [vmem:[#allocation2 + $0x78] sm:$0xff] %v915
      %984 = vst [vmem:[#allocation2 + $0x80] sm:$0xff] %v916
      %985 = vst.msk [vmem:[#allocation2 + $0x88] sm:$0xff] %vm797, %v870
      %986 = vst.msk [vmem:[#allocation2 + $0x90] sm:$0xff] %vm967, %v872
      %987 = vst [vmem:[#allocation2 + $0x98] sm:$0xff] %v917
      %988 = vst [vmem:[#allocation2 + $0xa0] sm:$0xff] %v918
      %989 = vst [vmem:[#allocation2 + $0xa8] sm:$0xff] %v919
      %990 = vst [vmem:[#allocation2 + $0xb0] sm:$0xff] %v920
      %991 = vst [vmem:[#allocation2 + $0xb8] sm:$0xff] %v921
      %992 = vst [vmem:[#allocation2 + $0xc0] sm:$0xff] %v922
      %993 = vst [vmem:[#allocation2 + $0xc8] sm:$0xff] %v923
      %994 = vst.msk [vmem:[#allocation2 + $0xd0] sm:$0xff] %vm797, %v886
      %995 = vst.msk [vmem:[#allocation2 + $0xd8] sm:$0xff] %vm967, %v888
      %996 = vst [vmem:[#allocation2 + $0xe0] sm:$0xff] %v924
      %997 = vst [vmem:[#allocation2 + $0xe8] sm:$0xff] %v925
      %998 = vst [vmem:[#allocation2 + $0xf0] sm:$0xff] %v926
      %999 = vst [vmem:[#allocation2 + $0xf8] sm:$0xff] %v927
      %1000 = vst [vmem:[#allocation2 + $0x100] sm:$0xff] %v928
      %1001 = vst [vmem:[#allocation2 + $0x108] sm:$0xff] %v929
      %1002 = vst [vmem:[#allocation2 + $0x110] sm:$0xff] %v930
      %1003 = vst.msk [vmem:[#allocation2 + $0x118] sm:$0xff] %vm797, %v902
      %v1004 = vld [vmem:[%s438] sm:$0xff]
      %v1005 = vld [vmem:[%s438 + $0x8] sm:$0xff]
      %v1006 = vld [vmem:[%s438 + $0x10] sm:$0xff]
      %v1007 = vld [vmem:[%s438 + $0x18] sm:$0xff]
      %v1008 = vld [vmem:[#allocation2] sm:$0xff]
      %v1009 = vld [vmem:[#allocation2 + $0x8] sm:$0xff]
      %v1010 = vld [vmem:[#allocation2 + $0x10] sm:$0xff]
      %v1011 = vld [vmem:[#allocation2 + $0x18] sm:$0xff]
      %v1012 = vld [vmem:[#allocation2 + $0x20] sm:$0xff]
      %v1013 = vld [vmem:[#allocation2 + $0x28] sm:$0xff]
      %v1014 = vld [vmem:[#allocation2 + $0x30] sm:$0xff]
      %v1015 = vld [vmem:[#allocation2 + $0x38] sm:$0xff]
      %v1016 = vld [vmem:[#allocation2 + $0x48] sm:$0xff]
      %v1017 = vld [vmem:[#allocation2 + $0x50] sm:$0xff]
      %v1018 = vld [vmem:[#allocation2 + $0x58] sm:$0xff]
      %v1019 = vld [vmem:[#allocation2 + $0x60] sm:$0xff]
      %v1020 = vld [vmem:[#allocation2 + $0x68] sm:$0xff]
      %v1021 = vld [vmem:[#allocation2 + $0x70] sm:$0xff]
      %v1022 = vld [vmem:[#allocation2 + $0x78] sm:$0xff]
      %v1023 = vld [vmem:[#allocation2 + $0x80] sm:$0xff]
      %v1024 = vld [vmem:[#allocation2 + $0x90] sm:$0xff]
      %v1025 = vld [vmem:[#allocation2 + $0x98] sm:$0xff]
      %v1026 = vld [vmem:[#allocation2 + $0xa0] sm:$0xff]
      %v1027 = vld [vmem:[#allocation2 + $0xa8] sm:$0xff]
      %v1028 = vld [vmem:[#allocation2 + $0xb0] sm:$0xff]
      %v1029 = vld [vmem:[#allocation2 + $0xb8] sm:$0xff]
      %v1030 = vld [vmem:[#allocation2 + $0xc0] sm:$0xff]
      %v1031 = vld [vmem:[#allocation2 + $0xc8] sm:$0xff]
      %v1032 = vld [vmem:[#allocation2 + $0xd8] sm:$0xff]
      %v1033 = vld [vmem:[#allocation2 + $0xe0] sm:$0xff]
      %v1034 = vld [vmem:[#allocation2 + $0xe8] sm:$0xff]
      %v1035 = vld [vmem:[#allocation2 + $0xf0] sm:$0xff]
      %v1036 = vld [vmem:[#allocation2 + $0xf8] sm:$0xff]
      %v1037 = vld [vmem:[#allocation2 + $0x100] sm:$0xff]
      %v1038 = vld [vmem:[#allocation2 + $0x108] sm:$0xff]
      %v1039 = vld [vmem:[#allocation2 + $0x110] sm:$0xff]
      %v1040 = vld [vmem:[%s7] ss:$8 sm:$0xf]
      %v1041 = vld [vmem:[%s7] ss:$8 sm:$0xf0]
      %v1042 = vor.u32 %v1040, %v1041
      %v1044 = vperm.slane %v1042, 0
      %v1045 = vperm.slane %v1042, 1
      %v1046 = vperm.slane %v1042, 2
      %v1047 = vperm.slane %v1042, 3
      %v1048 = vperm.slane %v1042, 4
      %v1049 = vperm.slane %v1042, 5
      %v1050 = vperm.slane %v1042, 6
      %v1051 = vperm.slane %v1042, 7
      %v1060 = vmul.f32 %v1008, %v1044
      %v1061 = vmul.f32 %v1009, %v1045
      %v1062 = vmul.f32 %v1010, %v1046
      %v1063 = vmul.f32 %v1011, %v1047
      %v1064 = vmul.f32 %v1012, %v1048
      %v1065 = vmul.f32 %v1013, %v1049
      %v1066 = vmul.f32 %v1014, %v1050
      %v1067 = vmul.f32 %v1015, %v1051
      %v1068 = vmul.f32 %v1016, %v1044
      %v1069 = vmul.f32 %v1017, %v1045
      %v1070 = vmul.f32 %v1018, %v1046
      %v1071 = vmul.f32 %v1019, %v1047
      %v1072 = vmul.f32 %v1020, %v1048
      %v1073 = vmul.f32 %v1021, %v1049
      %v1074 = vmul.f32 %v1022, %v1050
      %v1075 = vmul.f32 %v1023, %v1051
      %v1076 = vmul.f32 %v1024, %v1044
      %v1077 = vmul.f32 %v1025, %v1045
      %v1078 = vmul.f32 %v1026, %v1046
      %v1079 = vmul.f32 %v1027, %v1047
      %v1080 = vmul.f32 %v1028, %v1048
      %v1081 = vmul.f32 %v1029, %v1049
      %v1082 = vmul.f32 %v1030, %v1050
      %v1083 = vmul.f32 %v1031, %v1051
      %v1084 = vmul.f32 %v1032, %v1044
      %v1085 = vmul.f32 %v1033, %v1045
      %v1086 = vmul.f32 %v1034, %v1046
      %v1087 = vmul.f32 %v1035, %v1047
      %v1088 = vmul.f32 %v1036, %v1048
      %v1089 = vmul.f32 %v1037, %v1049
      %v1090 = vmul.f32 %v1038, %v1050
      %v1091 = vmul.f32 %v1039, %v1051
      %1093 = vset.pattern.permute.xlu0 0
      %1094 = vperm.xlu0 %1093, %v1004
      %v1095 = vpop.permute.xlu0 %1094
      %1098 = vset.pattern.permute.xlu0 0
      %1099 = vperm.xlu0 %1098, %v1005
      %v1100 = vpop.permute.xlu0 %1099
      %1103 = vset.pattern.permute.xlu0 0
      %1104 = vperm.xlu0 %1103, %v1006
      %v1105 = vpop.permute.xlu0 %1104
      %1108 = vset.pattern.permute.xlu0 0
      %1109 = vperm.xlu0 %1108, %v1007
      %v1110 = vpop.permute.xlu0 %1109
      %v1112 = vmul.f32 %v1060, %v1095
      %v1113 = vmul.f32 %v1061, %v1095
      %v1114 = vmul.f32 %v1062, %v1095
      %v1115 = vmul.f32 %v1063, %v1095
      %v1116 = vmul.f32 %v1064, %v1095
      %v1117 = vmul.f32 %v1065, %v1095
      %v1118 = vmul.f32 %v1066, %v1095
      %v1119 = vmul.f32 %v1067, %v1095
      %v1120 = vmul.f32 %v1068, %v1100
      %v1121 = vmul.f32 %v1069, %v1100
      %v1122 = vmul.f32 %v1070, %v1100
      %v1123 = vmul.f32 %v1071, %v1100
      %v1124 = vmul.f32 %v1072, %v1100
      %v1125 = vmul.f32 %v1073, %v1100
      %v1126 = vmul.f32 %v1074, %v1100
      %v1127 = vmul.f32 %v1075, %v1100
      %v1128 = vmul.f32 %v1076, %v1105
      %v1129 = vmul.f32 %v1077, %v1105
      %v1130 = vmul.f32 %v1078, %v1105
      %v1131 = vmul.f32 %v1079, %v1105
      %v1132 = vmul.f32 %v1080, %v1105
      %v1133 = vmul.f32 %v1081, %v1105
      %v1134 = vmul.f32 %v1082, %v1105
      %v1135 = vmul.f32 %v1083, %v1105
      %v1136 = vmul.f32 %v1084, %v1110
      %v1137 = vmul.f32 %v1085, %v1110
      %v1138 = vmul.f32 %v1086, %v1110
      %v1139 = vmul.f32 %v1087, %v1110
      %v1140 = vmul.f32 %v1088, %v1110
      %v1141 = vmul.f32 %v1089, %v1110
      %v1142 = vmul.f32 %v1090, %v1110
      %v1143 = vmul.f32 %v1091, %v1110
      %v1144 = vadd.f32 %v1112, 0.0
      %v1145 = vadd.f32 %v1113, 0.0
      %v1146 = vadd.f32 %v1114, 0.0
      %v1147 = vadd.f32 %v1115, 0.0
      %v1148 = vadd.f32 %v1116, 0.0
      %v1149 = vadd.f32 %v1117, 0.0
      %v1150 = vadd.f32 %v1118, 0.0
      %v1151 = vadd.f32 %v1119, 0.0
      %v1152 = vadd.f32 %v1120, 0.0
      %v1153 = vadd.f32 %v1121, 0.0
      %v1154 = vadd.f32 %v1122, 0.0
      %v1155 = vadd.f32 %v1123, 0.0
      %v1156 = vadd.f32 %v1124, 0.0
      %v1157 = vadd.f32 %v1125, 0.0
      %v1158 = vadd.f32 %v1126, 0.0
      %v1159 = vadd.f32 %v1127, 0.0
      %v1160 = vadd.f32 %v1128, 0.0
      %v1161 = vadd.f32 %v1129, 0.0
      %v1162 = vadd.f32 %v1130, 0.0
      %v1163 = vadd.f32 %v1131, 0.0
      %v1164 = vadd.f32 %v1132, 0.0
      %v1165 = vadd.f32 %v1133, 0.0
      %v1166 = vadd.f32 %v1134, 0.0
      %v1167 = vadd.f32 %v1135, 0.0
      %v1168 = vadd.f32 %v1136, 0.0
      %v1169 = vadd.f32 %v1137, 0.0
      %v1170 = vadd.f32 %v1138, 0.0
      %v1171 = vadd.f32 %v1139, 0.0
      %v1172 = vadd.f32 %v1140, 0.0
      %v1173 = vadd.f32 %v1141, 0.0
      %v1174 = vadd.f32 %v1142, 0.0
      %v1175 = vadd.f32 %v1143, 0.0
      %v1176 = vld [vmem:[#allocation2] sm:$0xff]
      %v1177 = vld [vmem:[#allocation2 + $0x8] sm:$0xff]
      %v1178 = vld [vmem:[#allocation2 + $0x10] sm:$0xff]
      %v1179 = vld [vmem:[#allocation2 + $0x18] sm:$0xff]
      %v1180 = vld [vmem:[#allocation2 + $0x20] sm:$0xff]
      %v1181 = vld [vmem:[#allocation2 + $0x28] sm:$0xff]
      %v1182 = vld [vmem:[#allocation2 + $0x30] sm:$0xff]
      %v1183 = vld [vmem:[#allocation2 + $0x38] sm:$0xff]
      %v1184 = vld [vmem:[#allocation2 + $0x40] sm:$0xff]
      %v1185 = vld [vmem:[#allocation2 + $0x48] sm:$0xff]
      %v1186 = vld [vmem:[#allocation2 + $0x50] sm:$0xff]
      %v1187 = vld [vmem:[#allocation2 + $0x58] sm:$0xff]
      %v1188 = vld [vmem:[#allocation2 + $0x60] sm:$0xff]
      %v1189 = vld [vmem:[#allocation2 + $0x68] sm:$0xff]
      %v1190 = vld [vmem:[#allocation2 + $0x70] sm:$0xff]
      %v1191 = vld [vmem:[#allocation2 + $0x78] sm:$0xff]
      %v1192 = vld [vmem:[#allocation2 + $0x80] sm:$0xff]
      %v1193 = vld [vmem:[#allocation2 + $0x88] sm:$0xff]
      %v1194 = vld [vmem:[#allocation2 + $0x90] sm:$0xff]
      %v1195 = vld [vmem:[#allocation2 + $0x98] sm:$0xff]
      %v1196 = vld [vmem:[#allocation2 + $0xa0] sm:$0xff]
      %v1197 = vld [vmem:[#allocation2 + $0xa8] sm:$0xff]
      %v1198 = vld [vmem:[#allocation2 + $0xb0] sm:$0xff]
      %v1199 = vld [vmem:[#allocation2 + $0xb8] sm:$0xff]
      %v1200 = vld [vmem:[#allocation2 + $0xc0] sm:$0xff]
      %v1201 = vld [vmem:[#allocation2 + $0xc8] sm:$0xff]
      %v1202 = vld [vmem:[#allocation2 + $0xd0] sm:$0xff]
      %v1203 = vld [vmem:[#allocation2 + $0xd8] sm:$0xff]
      %v1204 = vld [vmem:[#allocation2 + $0xe0] sm:$0xff]
      %v1205 = vld [vmem:[#allocation2 + $0xe8] sm:$0xff]
      %v1206 = vld [vmem:[#allocation2 + $0xf0] sm:$0xff]
      %v1207 = vld [vmem:[#allocation2 + $0xf8] sm:$0xff]
      %v1208 = vld [vmem:[#allocation2 + $0x100] sm:$0xff]
      %v1209 = vld [vmem:[#allocation2 + $0x108] sm:$0xff]
      %v1210 = vld [vmem:[#allocation2 + $0x110] sm:$0xff]
      %v1211 = vld [vmem:[#allocation2 + $0x118] sm:$0xff]
      %s1212 = scalar_lea.vmem %s7, 1
      %v1213 = vld [vmem:[%s1212] ss:$8 sm:$0xf]
      %v1214 = vld [vmem:[%s1212] ss:$8 sm:$0xf0]
      %v1215 = vor.u32 %v1213, %v1214
      %v1217 = vperm.slane %v1215, 0
      %v1218 = vperm.slane %v1215, 1
      %v1219 = vperm.slane %v1215, 2
      %v1220 = vperm.slane %v1215, 3
      %v1221 = vperm.slane %v1215, 4
      %v1222 = vperm.slane %v1215, 5
      %v1223 = vperm.slane %v1215, 6
      %v1224 = vperm.slane %v1215, 7
      %1225 = vrot.lane.b32.xlu0 %v1217, 1
      %v1226 = vpop.permute.xlu0 %1225
      %1227 = vrot.lane.b32.xlu0 %v1218, 1
      %v1228 = vpop.permute.xlu0 %1227
      %1229 = vrot.lane.b32.xlu0 %v1219, 1
      %v1230 = vpop.permute.xlu0 %1229
      %1231 = vrot.lane.b32.xlu0 %v1220, 1
      %v1232 = vpop.permute.xlu0 %1231
      %1233 = vrot.lane.b32.xlu0 %v1221, 1
      %v1234 = vpop.permute.xlu0 %1233
      %1235 = vrot.lane.b32.xlu0 %v1222, 1
      %v1236 = vpop.permute.xlu0 %1235
      %1237 = vrot.lane.b32.xlu0 %v1223, 1
      %v1238 = vpop.permute.xlu0 %1237
      %1239 = vrot.lane.b32.xlu0 %v1224, 1
      %v1240 = vpop.permute.xlu0 %1239
      %vm1241 = vcmask 7168
      %v1242 = vsel %vm1241, %v1226, %v1228
      %v1243 = vsel %vm1241, %v1228, %v1230
      %v1244 = vsel %vm1241, %v1230, %v1232
      %v1245 = vsel %vm1241, %v1232, %v1234
      %v1246 = vsel %vm1241, %v1234, %v1236
      %v1247 = vsel %vm1241, %v1236, %v1238
      %v1248 = vsel %vm1241, %v1238, %v1240
      %v1258 = vmul.f32 %v1176, %v1226
      %v1259 = vmul.f32 %v1177, %v1242
      %v1260 = vmul.f32 %v1178, %v1243
      %v1261 = vmul.f32 %v1179, %v1244
      %v1262 = vmul.f32 %v1180, %v1245
      %v1263 = vmul.f32 %v1181, %v1246
      %v1264 = vmul.f32 %v1182, %v1247
      %v1265 = vmul.f32 %v1183, %v1248
      %v1266 = vmul.f32 %v1184, %v1240
      %v1267 = vmul.f32 %v1185, %v1226
      %v1268 = vmul.f32 %v1186, %v1242
      %v1269 = vmul.f32 %v1187, %v1243
      %v1270 = vmul.f32 %v1188, %v1244
      %v1271 = vmul.f32 %v1189, %v1245
      %v1272 = vmul.f32 %v1190, %v1246
      %v1273 = vmul.f32 %v1191, %v1247
      %v1274 = vmul.f32 %v1192, %v1248
      %v1275 = vmul.f32 %v1193, %v1240
      %v1276 = vmul.f32 %v1194, %v1226
      %v1277 = vmul.f32 %v1195, %v1242
      %v1278 = vmul.f32 %v1196, %v1243
      %v1279 = vmul.f32 %v1197, %v1244
      %v1280 = vmul.f32 %v1198, %v1245
      %v1281 = vmul.f32 %v1199, %v1246
      %v1282 = vmul.f32 %v1200, %v1247
      %v1283 = vmul.f32 %v1201, %v1248
      %v1284 = vmul.f32 %v1202, %v1240
      %v1285 = vmul.f32 %v1203, %v1226
      %v1286 = vmul.f32 %v1204, %v1242
      %v1287 = vmul.f32 %v1205, %v1243
      %v1288 = vmul.f32 %v1206, %v1244
      %v1289 = vmul.f32 %v1207, %v1245
      %v1290 = vmul.f32 %v1208, %v1246
      %v1291 = vmul.f32 %v1209, %v1247
      %v1292 = vmul.f32 %v1210, %v1248
      %v1293 = vmul.f32 %v1211, %v1240
      %1294 = vset.pattern.permute.xlu0 1
      %1295 = vperm.xlu0 %1294, %v1004
      %v1296 = vpop.permute.xlu0 %1295
      %1298 = vset.pattern.permute.xlu0 1
      %1299 = vperm.xlu0 %1298, %v1005
      %v1300 = vpop.permute.xlu0 %1299
      %1302 = vset.pattern.permute.xlu0 1
      %1303 = vperm.xlu0 %1302, %v1006
      %v1304 = vpop.permute.xlu0 %1303
      %1306 = vset.pattern.permute.xlu0 1
      %1307 = vperm.xlu0 %1306, %v1007
      %v1308 = vpop.permute.xlu0 %1307
      %v1310 = vmul.f32 %v1258, %v1296
      %v1311 = vmul.f32 %v1259, %v1296
      %v1312 = vmul.f32 %v1260, %v1296
      %v1313 = vmul.f32 %v1261, %v1296
      %v1314 = vmul.f32 %v1262, %v1296
      %v1315 = vmul.f32 %v1263, %v1296
      %v1316 = vmul.f32 %v1264, %v1296
      %v1317 = vmul.f32 %v1265, %v1296
      %v1318 = vmul.f32 %v1266, %v1296
      %v1319 = vmul.f32 %v1267, %v1300
      %v1320 = vmul.f32 %v1268, %v1300
      %v1321 = vmul.f32 %v1269, %v1300
      %v1322 = vmul.f32 %v1270, %v1300
      %v1323 = vmul.f32 %v1271, %v1300
      %v1324 = vmul.f32 %v1272, %v1300
      %v1325 = vmul.f32 %v1273, %v1300
      %v1326 = vmul.f32 %v1274, %v1300
      %v1327 = vmul.f32 %v1275, %v1300
      %v1328 = vmul.f32 %v1276, %v1304
      %v1329 = vmul.f32 %v1277, %v1304
      %v1330 = vmul.f32 %v1278, %v1304
      %v1331 = vmul.f32 %v1279, %v1304
      %v1332 = vmul.f32 %v1280, %v1304
      %v1333 = vmul.f32 %v1281, %v1304
      %v1334 = vmul.f32 %v1282, %v1304
      %v1335 = vmul.f32 %v1283, %v1304
      %v1336 = vmul.f32 %v1284, %v1304
      %v1337 = vmul.f32 %v1285, %v1308
      %v1338 = vmul.f32 %v1286, %v1308
      %v1339 = vmul.f32 %v1287, %v1308
      %v1340 = vmul.f32 %v1288, %v1308
      %v1341 = vmul.f32 %v1289, %v1308
      %v1342 = vmul.f32 %v1290, %v1308
      %v1343 = vmul.f32 %v1291, %v1308
      %v1344 = vmul.f32 %v1292, %v1308
      %v1345 = vmul.f32 %v1293, %v1308
      %1382 = vrot.lane.b32.xlu0 %v1310, 127
      %v1383 = vpop.permute.xlu0 %1382
      %1384 = vrot.lane.b32.xlu0 %v1311, 127
      %v1385 = vpop.permute.xlu0 %1384
      %1386 = vrot.lane.b32.xlu0 %v1312, 127
      %v1387 = vpop.permute.xlu0 %1386
      %1388 = vrot.lane.b32.xlu0 %v1313, 127
      %v1389 = vpop.permute.xlu0 %1388
      %1390 = vrot.lane.b32.xlu0 %v1314, 127
      %v1391 = vpop.permute.xlu0 %1390
      %1392 = vrot.lane.b32.xlu0 %v1315, 127
      %v1393 = vpop.permute.xlu0 %1392
      %1394 = vrot.lane.b32.xlu0 %v1316, 127
      %v1395 = vpop.permute.xlu0 %1394
      %1396 = vrot.lane.b32.xlu0 %v1317, 127
      %v1397 = vpop.permute.xlu0 %1396
      %1398 = vrot.lane.b32.xlu0 %v1318, 127
      %v1399 = vpop.permute.xlu0 %1398
      %1400 = vrot.lane.b32.xlu0 %v1319, 127
      %v1401 = vpop.permute.xlu0 %1400
      %1402 = vrot.lane.b32.xlu0 %v1320, 127
      %v1403 = vpop.permute.xlu0 %1402
      %1404 = vrot.lane.b32.xlu0 %v1321, 127
      %v1405 = vpop.permute.xlu0 %1404
      %1406 = vrot.lane.b32.xlu0 %v1322, 127
      %v1407 = vpop.permute.xlu0 %1406
      %1408 = vrot.lane.b32.xlu0 %v1323, 127
      %v1409 = vpop.permute.xlu0 %1408
      %1410 = vrot.lane.b32.xlu0 %v1324, 127
      %v1411 = vpop.permute.xlu0 %1410
      %1412 = vrot.lane.b32.xlu0 %v1325, 127
      %v1413 = vpop.permute.xlu0 %1412
      %1414 = vrot.lane.b32.xlu0 %v1326, 127
      %v1415 = vpop.permute.xlu0 %1414
      %1416 = vrot.lane.b32.xlu0 %v1327, 127
      %v1417 = vpop.permute.xlu0 %1416
      %1418 = vrot.lane.b32.xlu0 %v1328, 127
      %v1419 = vpop.permute.xlu0 %1418
      %1420 = vrot.lane.b32.xlu0 %v1329, 127
      %v1421 = vpop.permute.xlu0 %1420
      %1422 = vrot.lane.b32.xlu0 %v1330, 127
      %v1423 = vpop.permute.xlu0 %1422
      %1424 = vrot.lane.b32.xlu0 %v1331, 127
      %v1425 = vpop.permute.xlu0 %1424
      %1426 = vrot.lane.b32.xlu0 %v1332, 127
      %v1427 = vpop.permute.xlu0 %1426
      %1428 = vrot.lane.b32.xlu0 %v1333, 127
      %v1429 = vpop.permute.xlu0 %1428
      %1430 = vrot.lane.b32.xlu0 %v1334, 127
      %v1431 = vpop.permute.xlu0 %1430
      %1432 = vrot.lane.b32.xlu0 %v1335, 127
      %v1433 = vpop.permute.xlu0 %1432
      %1434 = vrot.lane.b32.xlu0 %v1336, 127
      %v1435 = vpop.permute.xlu0 %1434
      %1436 = vrot.lane.b32.xlu0 %v1337, 127
      %v1437 = vpop.permute.xlu0 %1436
      %1438 = vrot.lane.b32.xlu0 %v1338, 127
      %v1439 = vpop.permute.xlu0 %1438
      %1440 = vrot.lane.b32.xlu0 %v1339, 127
      %v1441 = vpop.permute.xlu0 %1440
      %1442 = vrot.lane.b32.xlu0 %v1340, 127
      %v1443 = vpop.permute.xlu0 %1442
      %1444 = vrot.lane.b32.xlu0 %v1341, 127
      %v1445 = vpop.permute.xlu0 %1444
      %1446 = vrot.lane.b32.xlu0 %v1342, 127
      %v1447 = vpop.permute.xlu0 %1446
      %1448 = vrot.lane.b32.xlu0 %v1343, 127
      %v1449 = vpop.permute.xlu0 %1448
      %1450 = vrot.lane.b32.xlu0 %v1344, 127
      %v1451 = vpop.permute.xlu0 %1450
      %1452 = vrot.lane.b32.xlu0 %v1345, 127
      %v1453 = vpop.permute.xlu0 %1452
      %vm1454 = vcmask 1039360
      %v1455 = vsel %vm1454, %v1383, %v1385
      %v1456 = vsel %vm1454, %v1385, %v1387
      %v1457 = vsel %vm1454, %v1387, %v1389
      %v1458 = vsel %vm1454, %v1389, %v1391
      %v1459 = vsel %vm1454, %v1391, %v1393
      %v1460 = vsel %vm1454, %v1393, %v1395
      %v1461 = vsel %vm1454, %v1395, %v1397
      %v1462 = vsel %vm1454, %v1397, %v1399
      %v1463 = vsel %vm1454, %v1401, %v1403
      %v1464 = vsel %vm1454, %v1403, %v1405
      %v1465 = vsel %vm1454, %v1405, %v1407
      %v1466 = vsel %vm1454, %v1407, %v1409
      %v1467 = vsel %vm1454, %v1409, %v1411
      %v1468 = vsel %vm1454, %v1411, %v1413
      %v1469 = vsel %vm1454, %v1413, %v1415
      %v1470 = vsel %vm1454, %v1415, %v1417
      %v1471 = vsel %vm1454, %v1419, %v1421
      %v1472 = vsel %vm1454, %v1421, %v1423
      %v1473 = vsel %vm1454, %v1423, %v1425
      %v1474 = vsel %vm1454, %v1425, %v1427
      %v1475 = vsel %vm1454, %v1427, %v1429
      %v1476 = vsel %vm1454, %v1429, %v1431
      %v1477 = vsel %vm1454, %v1431, %v1433
      %v1478 = vsel %vm1454, %v1433, %v1435
      %v1479 = vsel %vm1454, %v1437, %v1439
      %v1480 = vsel %vm1454, %v1439, %v1441
      %v1481 = vsel %vm1454, %v1441, %v1443
      %v1482 = vsel %vm1454, %v1443, %v1445
      %v1483 = vsel %vm1454, %v1445, %v1447
      %v1484 = vsel %vm1454, %v1447, %v1449
      %v1485 = vsel %vm1454, %v1449, %v1451
      %v1486 = vsel %vm1454, %v1451, %v1453
      %v1519 = vadd.f32 %v1144, %v1455
      %v1520 = vadd.f32 %v1145, %v1456
      %v1521 = vadd.f32 %v1146, %v1457
      %v1522 = vadd.f32 %v1147, %v1458
      %v1523 = vadd.f32 %v1148, %v1459
      %v1524 = vadd.f32 %v1149, %v1460
      %v1525 = vadd.f32 %v1150, %v1461
      %v1526 = vadd.f32 %v1151, %v1462
      %v1527 = vadd.f32 %v1152, %v1463
      %v1528 = vadd.f32 %v1153, %v1464
      %v1529 = vadd.f32 %v1154, %v1465
      %v1530 = vadd.f32 %v1155, %v1466
      %v1531 = vadd.f32 %v1156, %v1467
      %v1532 = vadd.f32 %v1157, %v1468
      %v1533 = vadd.f32 %v1158, %v1469
      %v1534 = vadd.f32 %v1159, %v1470
      %v1535 = vadd.f32 %v1160, %v1471
      %v1536 = vadd.f32 %v1161, %v1472
      %v1537 = vadd.f32 %v1162, %v1473
      %v1538 = vadd.f32 %v1163, %v1474
      %v1539 = vadd.f32 %v1164, %v1475
      %v1540 = vadd.f32 %v1165, %v1476
      %v1541 = vadd.f32 %v1166, %v1477
      %v1542 = vadd.f32 %v1167, %v1478
      %v1543 = vadd.f32 %v1168, %v1479
      %v1544 = vadd.f32 %v1169, %v1480
      %v1545 = vadd.f32 %v1170, %v1481
      %v1546 = vadd.f32 %v1171, %v1482
      %v1547 = vadd.f32 %v1172, %v1483
      %v1548 = vadd.f32 %v1173, %v1484
      %v1549 = vadd.f32 %v1174, %v1485
      %v1550 = vadd.f32 %v1175, %v1486
      %s1551 = scalar_lea.vmem %s7, 2
      %v1552 = vld [vmem:[%s1551] ss:$8 sm:$0xf]
      %v1553 = vld [vmem:[%s1551] ss:$8 sm:$0xf0]
      %v1554 = vor.u32 %v1552, %v1553
      %v1556 = vperm.slane %v1554, 0
      %v1557 = vperm.slane %v1554, 1
      %v1558 = vperm.slane %v1554, 2
      %v1559 = vperm.slane %v1554, 3
      %v1560 = vperm.slane %v1554, 4
      %v1561 = vperm.slane %v1554, 5
      %v1562 = vperm.slane %v1554, 6
      %v1563 = vperm.slane %v1554, 7
      %1564 = vrot.lane.b32.xlu0 %v1556, 2
      %v1565 = vpop.permute.xlu0 %1564
      %1566 = vrot.lane.b32.xlu0 %v1557, 2
      %v1567 = vpop.permute.xlu0 %1566
      %1568 = vrot.lane.b32.xlu0 %v1558, 2
      %v1569 = vpop.permute.xlu0 %1568
      %1570 = vrot.lane.b32.xlu0 %v1559, 2
      %v1571 = vpop.permute.xlu0 %1570
      %1572 = vrot.lane.b32.xlu0 %v1560, 2
      %v1573 = vpop.permute.xlu0 %1572
      %1574 = vrot.lane.b32.xlu0 %v1561, 2
      %v1575 = vpop.permute.xlu0 %1574
      %1576 = vrot.lane.b32.xlu0 %v1562, 2
      %v1577 = vpop.permute.xlu0 %1576
      %1578 = vrot.lane.b32.xlu0 %v1563, 2
      %v1579 = vpop.permute.xlu0 %1578
      %vm1580 = vcmask 15360
      %v1581 = vsel %vm1580, %v1565, %v1567
      %v1582 = vsel %vm1580, %v1567, %v1569
      %v1583 = vsel %vm1580, %v1569, %v1571
      %v1584 = vsel %vm1580, %v1571, %v1573
      %v1585 = vsel %vm1580, %v1573, %v1575
      %v1586 = vsel %vm1580, %v1575, %v1577
      %v1587 = vsel %vm1580, %v1577, %v1579
      %v1597 = vmul.f32 %v1176, %v1565
      %v1598 = vmul.f32 %v1177, %v1581
      %v1599 = vmul.f32 %v1178, %v1582
      %v1600 = vmul.f32 %v1179, %v1583
      %v1601 = vmul.f32 %v1180, %v1584
      %v1602 = vmul.f32 %v1181, %v1585
      %v1603 = vmul.f32 %v1182, %v1586
      %v1604 = vmul.f32 %v1183, %v1587
      %v1605 = vmul.f32 %v1184, %v1579
      %v1606 = vmul.f32 %v1185, %v1565
      %v1607 = vmul.f32 %v1186, %v1581
      %v1608 = vmul.f32 %v1187, %v1582
      %v1609 = vmul.f32 %v1188, %v1583
      %v1610 = vmul.f32 %v1189, %v1584
      %v1611 = vmul.f32 %v1190, %v1585
      %v1612 = vmul.f32 %v1191, %v1586
      %v1613 = vmul.f32 %v1192, %v1587
      %v1614 = vmul.f32 %v1193, %v1579
      %v1615 = vmul.f32 %v1194, %v1565
      %v1616 = vmul.f32 %v1195, %v1581
      %v1617 = vmul.f32 %v1196, %v1582
      %v1618 = vmul.f32 %v1197, %v1583
      %v1619 = vmul.f32 %v1198, %v1584
      %v1620 = vmul.f32 %v1199, %v1585
      %v1621 = vmul.f32 %v1200, %v1586
      %v1622 = vmul.f32 %v1201, %v1587
      %v1623 = vmul.f32 %v1202, %v1579
      %v1624 = vmul.f32 %v1203, %v1565
      %v1625 = vmul.f32 %v1204, %v1581
      %v1626 = vmul.f32 %v1205, %v1582
      %v1627 = vmul.f32 %v1206, %v1583
      %v1628 = vmul.f32 %v1207, %v1584
      %v1629 = vmul.f32 %v1208, %v1585
      %v1630 = vmul.f32 %v1209, %v1586
      %v1631 = vmul.f32 %v1210, %v1587
      %v1632 = vmul.f32 %v1211, %v1579
      %1633 = vset.pattern.permute.xlu0 2
      %1634 = vperm.xlu0 %1633, %v1004
      %v1635 = vpop.permute.xlu0 %1634
      %1637 = vset.pattern.permute.xlu0 2
      %1638 = vperm.xlu0 %1637, %v1005
      %v1639 = vpop.permute.xlu0 %1638
      %1641 = vset.pattern.permute.xlu0 2
      %1642 = vperm.xlu0 %1641, %v1006
      %v1643 = vpop.permute.xlu0 %1642
      %1645 = vset.pattern.permute.xlu0 2
      %1646 = vperm.xlu0 %1645, %v1007
      %v1647 = vpop.permute.xlu0 %1646
      %v1649 = vmul.f32 %v1597, %v1635
      %v1650 = vmul.f32 %v1598, %v1635
      %v1651 = vmul.f32 %v1599, %v1635
      %v1652 = vmul.f32 %v1600, %v1635
      %v1653 = vmul.f32 %v1601, %v1635
      %v1654 = vmul.f32 %v1602, %v1635
      %v1655 = vmul.f32 %v1603, %v1635
      %v1656 = vmul.f32 %v1604, %v1635
      %v1657 = vmul.f32 %v1605, %v1635
      %v1658 = vmul.f32 %v1606, %v1639
      %v1659 = vmul.f32 %v1607, %v1639
      %v1660 = vmul.f32 %v1608, %v1639
      %v1661 = vmul.f32 %v1609, %v1639
      %v1662 = vmul.f32 %v1610, %v1639
      %v1663 = vmul.f32 %v1611, %v1639
      %v1664 = vmul.f32 %v1612, %v1639
      %v1665 = vmul.f32 %v1613, %v1639
      %v1666 = vmul.f32 %v1614, %v1639
      %v1667 = vmul.f32 %v1615, %v1643
      %v1668 = vmul.f32 %v1616, %v1643
      %v1669 = vmul.f32 %v1617, %v1643
      %v1670 = vmul.f32 %v1618, %v1643
      %v1671 = vmul.f32 %v1619, %v1643
      %v1672 = vmul.f32 %v1620, %v1643
      %v1673 = vmul.f32 %v1621, %v1643
      %v1674 = vmul.f32 %v1622, %v1643
      %v1675 = vmul.f32 %v1623, %v1643
      %v1676 = vmul.f32 %v1624, %v1647
      %v1677 = vmul.f32 %v1625, %v1647
      %v1678 = vmul.f32 %v1626, %v1647
      %v1679 = vmul.f32 %v1627, %v1647
      %v1680 = vmul.f32 %v1628, %v1647
      %v1681 = vmul.f32 %v1629, %v1647
      %v1682 = vmul.f32 %v1630, %v1647
      %v1683 = vmul.f32 %v1631, %v1647
      %v1684 = vmul.f32 %v1632, %v1647
      %1721 = vrot.lane.b32.xlu0 %v1649, 126
      %v1722 = vpop.permute.xlu0 %1721
      %1723 = vrot.lane.b32.xlu0 %v1650, 126
      %v1724 = vpop.permute.xlu0 %1723
      %1725 = vrot.lane.b32.xlu0 %v1651, 126
      %v1726 = vpop.permute.xlu0 %1725
      %1727 = vrot.lane.b32.xlu0 %v1652, 126
      %v1728 = vpop.permute.xlu0 %1727
      %1729 = vrot.lane.b32.xlu0 %v1653, 126
      %v1730 = vpop.permute.xlu0 %1729
      %1731 = vrot.lane.b32.xlu0 %v1654, 126
      %v1732 = vpop.permute.xlu0 %1731
      %1733 = vrot.lane.b32.xlu0 %v1655, 126
      %v1734 = vpop.permute.xlu0 %1733
      %1735 = vrot.lane.b32.xlu0 %v1656, 126
      %v1736 = vpop.permute.xlu0 %1735
      %1737 = vrot.lane.b32.xlu0 %v1657, 126
      %v1738 = vpop.permute.xlu0 %1737
      %1739 = vrot.lane.b32.xlu0 %v1658, 126
      %v1740 = vpop.permute.xlu0 %1739
      %1741 = vrot.lane.b32.xlu0 %v1659, 126
      %v1742 = vpop.permute.xlu0 %1741
      %1743 = vrot.lane.b32.xlu0 %v1660, 126
      %v1744 = vpop.permute.xlu0 %1743
      %1745 = vrot.lane.b32.xlu0 %v1661, 126
      %v1746 = vpop.permute.xlu0 %1745
      %1747 = vrot.lane.b32.xlu0 %v1662, 126
      %v1748 = vpop.permute.xlu0 %1747
      %1749 = vrot.lane.b32.xlu0 %v1663, 126
      %v1750 = vpop.permute.xlu0 %1749
      %1751 = vrot.lane.b32.xlu0 %v1664, 126
      %v1752 = vpop.permute.xlu0 %1751
      %1753 = vrot.lane.b32.xlu0 %v1665, 126
      %v1754 = vpop.permute.xlu0 %1753
      %1755 = vrot.lane.b32.xlu0 %v1666, 126
      %v1756 = vpop.permute.xlu0 %1755
      %1757 = vrot.lane.b32.xlu0 %v1667, 126
      %v1758 = vpop.permute.xlu0 %1757
      %1759 = vrot.lane.b32.xlu0 %v1668, 126
      %v1760 = vpop.permute.xlu0 %1759
      %1761 = vrot.lane.b32.xlu0 %v1669, 126
      %v1762 = vpop.permute.xlu0 %1761
      %1763 = vrot.lane.b32.xlu0 %v1670, 126
      %v1764 = vpop.permute.xlu0 %1763
      %1765 = vrot.lane.b32.xlu0 %v1671, 126
      %v1766 = vpop.permute.xlu0 %1765
      %1767 = vrot.lane.b32.xlu0 %v1672, 126
      %v1768 = vpop.permute.xlu0 %1767
      %1769 = vrot.lane.b32.xlu0 %v1673, 126
      %v1770 = vpop.permute.xlu0 %1769
      %1771 = vrot.lane.b32.xlu0 %v1674, 126
      %v1772 = vpop.permute.xlu0 %1771
      %1773 = vrot.lane.b32.xlu0 %v1675, 126
      %v1774 = vpop.permute.xlu0 %1773
      %1775 = vrot.lane.b32.xlu0 %v1676, 126
      %v1776 = vpop.permute.xlu0 %1775
      %1777 = vrot.lane.b32.xlu0 %v1677, 126
      %v1778 = vpop.permute.xlu0 %1777
      %1779 = vrot.lane.b32.xlu0 %v1678, 126
      %v1780 = vpop.permute.xlu0 %1779
      %1781 = vrot.lane.b32.xlu0 %v1679, 126
      %v1782 = vpop.permute.xlu0 %1781
      %1783 = vrot.lane.b32.xlu0 %v1680, 126
      %v1784 = vpop.permute.xlu0 %1783
      %1785 = vrot.lane.b32.xlu0 %v1681, 126
      %v1786 = vpop.permute.xlu0 %1785
      %1787 = vrot.lane.b32.xlu0 %v1682, 126
      %v1788 = vpop.permute.xlu0 %1787
      %1789 = vrot.lane.b32.xlu0 %v1683, 126
      %v1790 = vpop.permute.xlu0 %1789
      %1791 = vrot.lane.b32.xlu0 %v1684, 126
      %v1792 = vpop.permute.xlu0 %1791
      %vm1793 = vcmask 1031168
      %v1794 = vsel %vm1793, %v1722, %v1724
      %v1795 = vsel %vm1793, %v1724, %v1726
      %v1796 = vsel %vm1793, %v1726, %v1728
      %v1797 = vsel %vm1793, %v1728, %v1730
      %v1798 = vsel %vm1793, %v1730, %v1732
      %v1799 = vsel %vm1793, %v1732, %v1734
      %v1800 = vsel %vm1793, %v1734, %v1736
      %v1801 = vsel %vm1793, %v1736, %v1738
      %v1802 = vsel %vm1793, %v1740, %v1742
      %v1803 = vsel %vm1793, %v1742, %v1744
      %v1804 = vsel %vm1793, %v1744, %v1746
      %v1805 = vsel %vm1793, %v1746, %v1748
      %v1806 = vsel %vm1793, %v1748, %v1750
      %v1807 = vsel %vm1793, %v1750, %v1752
      %v1808 = vsel %vm1793, %v1752, %v1754
      %v1809 = vsel %vm1793, %v1754, %v1756
      %v1810 = vsel %vm1793, %v1758, %v1760
      %v1811 = vsel %vm1793, %v1760, %v1762
      %v1812 = vsel %vm1793, %v1762, %v1764
      %v1813 = vsel %vm1793, %v1764, %v1766
      %v1814 = vsel %vm1793, %v1766, %v1768
      %v1815 = vsel %vm1793, %v1768, %v1770
      %v1816 = vsel %vm1793, %v1770, %v1772
      %v1817 = vsel %vm1793, %v1772, %v1774
      %v1818 = vsel %vm1793, %v1776, %v1778
      %v1819 = vsel %vm1793, %v1778, %v1780
      %v1820 = vsel %vm1793, %v1780, %v1782
      %v1821 = vsel %vm1793, %v1782, %v1784
      %v1822 = vsel %vm1793, %v1784, %v1786
      %v1823 = vsel %vm1793, %v1786, %v1788
      %v1824 = vsel %vm1793, %v1788, %v1790
      %v1825 = vsel %vm1793, %v1790, %v1792
      %v1858 = vadd.f32 %v1519, %v1794
      %v1859 = vadd.f32 %v1520, %v1795
      %v1860 = vadd.f32 %v1521, %v1796
      %v1861 = vadd.f32 %v1522, %v1797
      %v1862 = vadd.f32 %v1523, %v1798
      %v1863 = vadd.f32 %v1524, %v1799
      %v1864 = vadd.f32 %v1525, %v1800
      %v1865 = vadd.f32 %v1526, %v1801
      %v1866 = vadd.f32 %v1527, %v1802
      %v1867 = vadd.f32 %v1528, %v1803
      %v1868 = vadd.f32 %v1529, %v1804
      %v1869 = vadd.f32 %v1530, %v1805
      %v1870 = vadd.f32 %v1531, %v1806
      %v1871 = vadd.f32 %v1532, %v1807
      %v1872 = vadd.f32 %v1533, %v1808
      %v1873 = vadd.f32 %v1534, %v1809
      %v1874 = vadd.f32 %v1535, %v1810
      %v1875 = vadd.f32 %v1536, %v1811
      %v1876 = vadd.f32 %v1537, %v1812
      %v1877 = vadd.f32 %v1538, %v1813
      %v1878 = vadd.f32 %v1539, %v1814
      %v1879 = vadd.f32 %v1540, %v1815
      %v1880 = vadd.f32 %v1541, %v1816
      %v1881 = vadd.f32 %v1542, %v1817
      %v1882 = vadd.f32 %v1543, %v1818
      %v1883 = vadd.f32 %v1544, %v1819
      %v1884 = vadd.f32 %v1545, %v1820
      %v1885 = vadd.f32 %v1546, %v1821
      %v1886 = vadd.f32 %v1547, %v1822
      %v1887 = vadd.f32 %v1548, %v1823
      %v1888 = vadd.f32 %v1549, %v1824
      %v1889 = vadd.f32 %v1550, %v1825
      %s1890 = scalar_lea.vmem %s7, 3
      %v1891 = vld [vmem:[%s1890] ss:$8 sm:$0xf]
      %v1892 = vld [vmem:[%s1890] ss:$8 sm:$0xf0]
      %v1893 = vor.u32 %v1891, %v1892
      %v1895 = vperm.slane %v1893, 0
      %v1896 = vperm.slane %v1893, 1
      %v1897 = vperm.slane %v1893, 2
      %v1898 = vperm.slane %v1893, 3
      %v1899 = vperm.slane %v1893, 4
      %v1900 = vperm.slane %v1893, 5
      %v1901 = vperm.slane %v1893, 6
      %v1902 = vperm.slane %v1893, 7
      %1903 = vrot.lane.b32.xlu0 %v1895, 32
      %v1904 = vpop.permute.xlu0 %1903
      %1905 = vrot.lane.b32.xlu0 %v1896, 32
      %v1906 = vpop.permute.xlu0 %1905
      %1907 = vrot.lane.b32.xlu0 %v1897, 32
      %v1908 = vpop.permute.xlu0 %1907
      %1909 = vrot.lane.b32.xlu0 %v1898, 32
      %v1910 = vpop.permute.xlu0 %1909
      %1911 = vrot.lane.b32.xlu0 %v1899, 32
      %v1912 = vpop.permute.xlu0 %1911
      %1913 = vrot.lane.b32.xlu0 %v1900, 32
      %v1914 = vpop.permute.xlu0 %1913
      %1915 = vrot.lane.b32.xlu0 %v1901, 32
      %v1916 = vpop.permute.xlu0 %1915
      %1917 = vrot.lane.b32.xlu0 %v1902, 32
      %v1918 = vpop.permute.xlu0 %1917
      %vm1919 = vcmask 261120
      %v1920 = vsel %vm1919, %v1904, %v1906
      %v1921 = vsel %vm1919, %v1906, %v1908
      %v1922 = vsel %vm1919, %v1908, %v1910
      %v1923 = vsel %vm1919, %v1910, %v1912
      %v1924 = vsel %vm1919, %v1912, %v1914
      %v1925 = vsel %vm1919, %v1914, %v1916
      %v1926 = vsel %vm1919, %v1916, %v1918
      %v1936 = vmul.f32 %v1176, %v1904
      %v1937 = vmul.f32 %v1177, %v1920
      %v1938 = vmul.f32 %v1178, %v1921
      %v1939 = vmul.f32 %v1179, %v1922
      %v1940 = vmul.f32 %v1180, %v1923
      %v1941 = vmul.f32 %v1181, %v1924
      %v1942 = vmul.f32 %v1182, %v1925
      %v1943 = vmul.f32 %v1183, %v1926
      %v1944 = vmul.f32 %v1184, %v1918
      %v1945 = vmul.f32 %v1185, %v1904
      %v1946 = vmul.f32 %v1186, %v1920
      %v1947 = vmul.f32 %v1187, %v1921
      %v1948 = vmul.f32 %v1188, %v1922
      %v1949 = vmul.f32 %v1189, %v1923
      %v1950 = vmul.f32 %v1190, %v1924
      %v1951 = vmul.f32 %v1191, %v1925
      %v1952 = vmul.f32 %v1192, %v1926
      %v1953 = vmul.f32 %v1193, %v1918
      %v1954 = vmul.f32 %v1194, %v1904
      %v1955 = vmul.f32 %v1195, %v1920
      %v1956 = vmul.f32 %v1196, %v1921
      %v1957 = vmul.f32 %v1197, %v1922
      %v1958 = vmul.f32 %v1198, %v1923
      %v1959 = vmul.f32 %v1199, %v1924
      %v1960 = vmul.f32 %v1200, %v1925
      %v1961 = vmul.f32 %v1201, %v1926
      %v1962 = vmul.f32 %v1202, %v1918
      %v1963 = vmul.f32 %v1203, %v1904
      %v1964 = vmul.f32 %v1204, %v1920
      %v1965 = vmul.f32 %v1205, %v1921
      %v1966 = vmul.f32 %v1206, %v1922
      %v1967 = vmul.f32 %v1207, %v1923
      %v1968 = vmul.f32 %v1208, %v1924
      %v1969 = vmul.f32 %v1209, %v1925
      %v1970 = vmul.f32 %v1210, %v1926
      %v1971 = vmul.f32 %v1211, %v1918
      %1972 = vset.pattern.permute.xlu0 3
      %1973 = vperm.xlu0 %1972, %v1004
      %v1974 = vpop.permute.xlu0 %1973
      %1976 = vset.pattern.permute.xlu0 3
      %1977 = vperm.xlu0 %1976, %v1005
      %v1978 = vpop.permute.xlu0 %1977
      %1980 = vset.pattern.permute.xlu0 3
      %1981 = vperm.xlu0 %1980, %v1006
      %v1982 = vpop.permute.xlu0 %1981
      %1984 = vset.pattern.permute.xlu0 3
      %1985 = vperm.xlu0 %1984, %v1007
      %v1986 = vpop.permute.xlu0 %1985
      %v1988 = vmul.f32 %v1936, %v1974
      %v1989 = vmul.f32 %v1937, %v1974
      %v1990 = vmul.f32 %v1938, %v1974
      %v1991 = vmul.f32 %v1939, %v1974
      %v1992 = vmul.f32 %v1940, %v1974
      %v1993 = vmul.f32 %v1941, %v1974
      %v1994 = vmul.f32 %v1942, %v1974
      %v1995 = vmul.f32 %v1943, %v1974
      %v1996 = vmul.f32 %v1944, %v1974
      %v1997 = vmul.f32 %v1945, %v1978
      %v1998 = vmul.f32 %v1946, %v1978
      %v1999 = vmul.f32 %v1947, %v1978
      %v2000 = vmul.f32 %v1948, %v1978
      %v2001 = vmul.f32 %v1949, %v1978
      %v2002 = vmul.f32 %v1950, %v1978
      %v2003 = vmul.f32 %v1951, %v1978
      %v2004 = vmul.f32 %v1952, %v1978
      %v2005 = vmul.f32 %v1953, %v1978
      %v2006 = vmul.f32 %v1954, %v1982
      %v2007 = vmul.f32 %v1955, %v1982
      %v2008 = vmul.f32 %v1956, %v1982
      %v2009 = vmul.f32 %v1957, %v1982
      %v2010 = vmul.f32 %v1958, %v1982
      %v2011 = vmul.f32 %v1959, %v1982
      %v2012 = vmul.f32 %v1960, %v1982
      %v2013 = vmul.f32 %v1961, %v1982
      %v2014 = vmul.f32 %v1962, %v1982
      %v2015 = vmul.f32 %v1963, %v1986
      %v2016 = vmul.f32 %v1964, %v1986
      %v2017 = vmul.f32 %v1965, %v1986
      %v2018 = vmul.f32 %v1966, %v1986
      %v2019 = vmul.f32 %v1967, %v1986
      %v2020 = vmul.f32 %v1968, %v1986
      %v2021 = vmul.f32 %v1969, %v1986
      %v2022 = vmul.f32 %v1970, %v1986
      %v2023 = vmul.f32 %v1971, %v1986
      %2060 = vrot.lane.b32.xlu0 %v1988, 96
      %v2061 = vpop.permute.xlu0 %2060
      %2062 = vrot.lane.b32.xlu0 %v1989, 96
      %v2063 = vpop.permute.xlu0 %2062
      %2064 = vrot.lane.b32.xlu0 %v1990, 96
      %v2065 = vpop.permute.xlu0 %2064
      %2066 = vrot.lane.b32.xlu0 %v1991, 96
      %v2067 = vpop.permute.xlu0 %2066
      %2068 = vrot.lane.b32.xlu0 %v1992, 96
      %v2069 = vpop.permute.xlu0 %2068
      %2070 = vrot.lane.b32.xlu0 %v1993, 96
      %v2071 = vpop.permute.xlu0 %2070
      %2072 = vrot.lane.b32.xlu0 %v1994, 96
      %v2073 = vpop.permute.xlu0 %2072
      %2074 = vrot.lane.b32.xlu0 %v1995, 96
      %v2075 = vpop.permute.xlu0 %2074
      %2076 = vrot.lane.b32.xlu0 %v1996, 96
      %v2077 = vpop.permute.xlu0 %2076
      %2078 = vrot.lane.b32.xlu0 %v1997, 96
      %v2079 = vpop.permute.xlu0 %2078
      %2080 = vrot.lane.b32.xlu0 %v1998, 96
      %v2081 = vpop.permute.xlu0 %2080
      %2082 = vrot.lane.b32.xlu0 %v1999, 96
      %v2083 = vpop.permute.xlu0 %2082
      %2084 = vrot.lane.b32.xlu0 %v2000, 96
      %v2085 = vpop.permute.xlu0 %2084
      %2086 = vrot.lane.b32.xlu0 %v2001, 96
      %v2087 = vpop.permute.xlu0 %2086
      %2088 = vrot.lane.b32.xlu0 %v2002, 96
      %v2089 = vpop.permute.xlu0 %2088
      %2090 = vrot.lane.b32.xlu0 %v2003, 96
      %v2091 = vpop.permute.xlu0 %2090
      %2092 = vrot.lane.b32.xlu0 %v2004, 96
      %v2093 = vpop.permute.xlu0 %2092
      %2094 = vrot.lane.b32.xlu0 %v2005, 96
      %v2095 = vpop.permute.xlu0 %2094
      %2096 = vrot.lane.b32.xlu0 %v2006, 96
      %v2097 = vpop.permute.xlu0 %2096
      %2098 = vrot.lane.b32.xlu0 %v2007, 96
      %v2099 = vpop.permute.xlu0 %2098
      %2100 = vrot.lane.b32.xlu0 %v2008, 96
      %v2101 = vpop.permute.xlu0 %2100
      %2102 = vrot.lane.b32.xlu0 %v2009, 96
      %v2103 = vpop.permute.xlu0 %2102
      %2104 = vrot.lane.b32.xlu0 %v2010, 96
      %v2105 = vpop.permute.xlu0 %2104
      %2106 = vrot.lane.b32.xlu0 %v2011, 96
      %v2107 = vpop.permute.xlu0 %2106
      %2108 = vrot.lane.b32.xlu0 %v2012, 96
      %v2109 = vpop.permute.xlu0 %2108
      %2110 = vrot.lane.b32.xlu0 %v2013, 96
      %v2111 = vpop.permute.xlu0 %2110
      %2112 = vrot.lane.b32.xlu0 %v2014, 96
      %v2113 = vpop.permute.xlu0 %2112
      %2114 = vrot.lane.b32.xlu0 %v2015, 96
      %v2115 = vpop.permute.xlu0 %2114
      %2116 = vrot.lane.b32.xlu0 %v2016, 96
      %v2117 = vpop.permute.xlu0 %2116
      %2118 = vrot.lane.b32.xlu0 %v2017, 96
      %v2119 = vpop.permute.xlu0 %2118
      %2120 = vrot.lane.b32.xlu0 %v2018, 96
      %v2121 = vpop.permute.xlu0 %2120
      %2122 = vrot.lane.b32.xlu0 %v2019, 96
      %v2123 = vpop.permute.xlu0 %2122
      %2124 = vrot.lane.b32.xlu0 %v2020, 96
      %v2125 = vpop.permute.xlu0 %2124
      %2126 = vrot.lane.b32.xlu0 %v2021, 96
      %v2127 = vpop.permute.xlu0 %2126
      %2128 = vrot.lane.b32.xlu0 %v2022, 96
      %v2129 = vpop.permute.xlu0 %2128
      %2130 = vrot.lane.b32.xlu0 %v2023, 96
      %v2131 = vpop.permute.xlu0 %2130
      %vm2132 = vcmask 785408
      %v2133 = vsel %vm2132, %v2061, %v2063
      %v2134 = vsel %vm2132, %v2063, %v2065
      %v2135 = vsel %vm2132, %v2065, %v2067
      %v2136 = vsel %vm2132, %v2067, %v2069
      %v2137 = vsel %vm2132, %v2069, %v2071
      %v2138 = vsel %vm2132, %v2071, %v2073
      %v2139 = vsel %vm2132, %v2073, %v2075
      %v2140 = vsel %vm2132, %v2075, %v2077
      %v2141 = vsel %vm2132, %v2079, %v2081
      %v2142 = vsel %vm2132, %v2081, %v2083
      %v2143 = vsel %vm2132, %v2083, %v2085
      %v2144 = vsel %vm2132, %v2085, %v2087
      %v2145 = vsel %vm2132, %v2087, %v2089
      %v2146 = vsel %vm2132, %v2089, %v2091
      %v2147 = vsel %vm2132, %v2091, %v2093
      %v2148 = vsel %vm2132, %v2093, %v2095
      %v2149 = vsel %vm2132, %v2097, %v2099
      %v2150 = vsel %vm2132, %v2099, %v2101
      %v2151 = vsel %vm2132, %v2101, %v2103
      %v2152 = vsel %vm2132, %v2103, %v2105
      %v2153 = vsel %vm2132, %v2105, %v2107
      %v2154 = vsel %vm2132, %v2107, %v2109
      %v2155 = vsel %vm2132, %v2109, %v2111
      %v2156 = vsel %vm2132, %v2111, %v2113
      %v2157 = vsel %vm2132, %v2115, %v2117
      %v2158 = vsel %vm2132, %v2117, %v2119
      %v2159 = vsel %vm2132, %v2119, %v2121
      %v2160 = vsel %vm2132, %v2121, %v2123
      %v2161 = vsel %vm2132, %v2123, %v2125
      %v2162 = vsel %vm2132, %v2125, %v2127
      %v2163 = vsel %vm2132, %v2127, %v2129
      %v2164 = vsel %vm2132, %v2129, %v2131
      %v2197 = vadd.f32 %v1858, %v2133
      %v2198 = vadd.f32 %v1859, %v2134
      %v2199 = vadd.f32 %v1860, %v2135
      %v2200 = vadd.f32 %v1861, %v2136
      %v2201 = vadd.f32 %v1862, %v2137
      %v2202 = vadd.f32 %v1863, %v2138
      %v2203 = vadd.f32 %v1864, %v2139
      %v2204 = vadd.f32 %v1865, %v2140
      %v2205 = vadd.f32 %v1866, %v2141
      %v2206 = vadd.f32 %v1867, %v2142
      %v2207 = vadd.f32 %v1868, %v2143
      %v2208 = vadd.f32 %v1869, %v2144
      %v2209 = vadd.f32 %v1870, %v2145
      %v2210 = vadd.f32 %v1871, %v2146
      %v2211 = vadd.f32 %v1872, %v2147
      %v2212 = vadd.f32 %v1873, %v2148
      %v2213 = vadd.f32 %v1874, %v2149
      %v2214 = vadd.f32 %v1875, %v2150
      %v2215 = vadd.f32 %v1876, %v2151
      %v2216 = vadd.f32 %v1877, %v2152
      %v2217 = vadd.f32 %v1878, %v2153
      %v2218 = vadd.f32 %v1879, %v2154
      %v2219 = vadd.f32 %v1880, %v2155
      %v2220 = vadd.f32 %v1881, %v2156
      %v2221 = vadd.f32 %v1882, %v2157
      %v2222 = vadd.f32 %v1883, %v2158
      %v2223 = vadd.f32 %v1884, %v2159
      %v2224 = vadd.f32 %v1885, %v2160
      %v2225 = vadd.f32 %v1886, %v2161
      %v2226 = vadd.f32 %v1887, %v2162
      %v2227 = vadd.f32 %v1888, %v2163
      %v2228 = vadd.f32 %v1889, %v2164
      %s2229 = scalar_lea.vmem %s7, 4
      %v2230 = vld [vmem:[%s2229] ss:$8 sm:$0xf]
      %v2231 = vld [vmem:[%s2229] ss:$8 sm:$0xf0]
      %v2232 = vor.u32 %v2230, %v2231
      %v2234 = vperm.slane %v2232, 0
      %v2235 = vperm.slane %v2232, 1
      %v2236 = vperm.slane %v2232, 2
      %v2237 = vperm.slane %v2232, 3
      %v2238 = vperm.slane %v2232, 4
      %v2239 = vperm.slane %v2232, 5
      %v2240 = vperm.slane %v2232, 6
      %v2241 = vperm.slane %v2232, 7
      %v2250 = vmul.f32 %v765, %v2234
      %v2251 = vmul.f32 %v766, %v2235
      %v2252 = vmul.f32 %v767, %v2236
      %v2253 = vmul.f32 %v768, %v2237
      %v2254 = vmul.f32 %v769, %v2238
      %v2255 = vmul.f32 %v770, %v2239
      %v2256 = vmul.f32 %v771, %v2240
      %v2257 = vmul.f32 %v772, %v2241
      %v2258 = vmul.f32 %v773, %v2234
      %v2259 = vmul.f32 %v774, %v2235
      %v2260 = vmul.f32 %v775, %v2236
      %v2261 = vmul.f32 %v776, %v2237
      %v2262 = vmul.f32 %v777, %v2238
      %v2263 = vmul.f32 %v778, %v2239
      %v2264 = vmul.f32 %v779, %v2240
      %v2265 = vmul.f32 %v780, %v2241
      %v2266 = vmul.f32 %v781, %v2234
      %v2267 = vmul.f32 %v782, %v2235
      %v2268 = vmul.f32 %v783, %v2236
      %v2269 = vmul.f32 %v784, %v2237
      %v2270 = vmul.f32 %v785, %v2238
      %v2271 = vmul.f32 %v786, %v2239
      %v2272 = vmul.f32 %v787, %v2240
      %v2273 = vmul.f32 %v788, %v2241
      %v2274 = vmul.f32 %v789, %v2234
      %v2275 = vmul.f32 %v790, %v2235
      %v2276 = vmul.f32 %v791, %v2236
      %v2277 = vmul.f32 %v792, %v2237
      %v2278 = vmul.f32 %v793, %v2238
      %v2279 = vmul.f32 %v794, %v2239
      %v2280 = vmul.f32 %v795, %v2240
      %v2281 = vmul.f32 %v796, %v2241
      %2282 = vset.pattern.permute.xlu0 4
      %2283 = vperm.xlu0 %2282, %v1004
      %v2284 = vpop.permute.xlu0 %2283
      %2286 = vset.pattern.permute.xlu0 4
      %2287 = vperm.xlu0 %2286, %v1005
      %v2288 = vpop.permute.xlu0 %2287
      %2290 = vset.pattern.permute.xlu0 4
      %2291 = vperm.xlu0 %2290, %v1006
      %v2292 = vpop.permute.xlu0 %2291
      %2294 = vset.pattern.permute.xlu0 4
      %2295 = vperm.xlu0 %2294, %v1007
      %v2296 = vpop.permute.xlu0 %2295
      %v2298 = vmul.f32 %v2250, %v2284
      %v2299 = vmul.f32 %v2251, %v2284
      %v2300 = vmul.f32 %v2252, %v2284
      %v2301 = vmul.f32 %v2253, %v2284
      %v2302 = vmul.f32 %v2254, %v2284
      %v2303 = vmul.f32 %v2255, %v2284
      %v2304 = vmul.f32 %v2256, %v2284
      %v2305 = vmul.f32 %v2257, %v2284
      %v2306 = vmul.f32 %v2258, %v2288
      %v2307 = vmul.f32 %v2259, %v2288
      %v2308 = vmul.f32 %v2260, %v2288
      %v2309 = vmul.f32 %v2261, %v2288
      %v2310 = vmul.f32 %v2262, %v2288
      %v2311 = vmul.f32 %v2263, %v2288
      %v2312 = vmul.f32 %v2264, %v2288
      %v2313 = vmul.f32 %v2265, %v2288
      %v2314 = vmul.f32 %v2266, %v2292
      %v2315 = vmul.f32 %v2267, %v2292
      %v2316 = vmul.f32 %v2268, %v2292
      %v2317 = vmul.f32 %v2269, %v2292
      %v2318 = vmul.f32 %v2270, %v2292
      %v2319 = vmul.f32 %v2271, %v2292
      %v2320 = vmul.f32 %v2272, %v2292
      %v2321 = vmul.f32 %v2273, %v2292
      %v2322 = vmul.f32 %v2274, %v2296
      %v2323 = vmul.f32 %v2275, %v2296
      %v2324 = vmul.f32 %v2276, %v2296
      %v2325 = vmul.f32 %v2277, %v2296
      %v2326 = vmul.f32 %v2278, %v2296
      %v2327 = vmul.f32 %v2279, %v2296
      %v2328 = vmul.f32 %v2280, %v2296
      %v2329 = vmul.f32 %v2281, %v2296
      %v2330 = vadd.f32 %v2197, %v2298
      %v2331 = vadd.f32 %v2198, %v2299
      %v2332 = vadd.f32 %v2199, %v2300
      %v2333 = vadd.f32 %v2200, %v2301
      %v2334 = vadd.f32 %v2201, %v2302
      %v2335 = vadd.f32 %v2202, %v2303
      %v2336 = vadd.f32 %v2203, %v2304
      %v2337 = vadd.f32 %v2204, %v2305
      %v2338 = vadd.f32 %v2205, %v2306
      %v2339 = vadd.f32 %v2206, %v2307
      %v2340 = vadd.f32 %v2207, %v2308
      %v2341 = vadd.f32 %v2208, %v2309
      %v2342 = vadd.f32 %v2209, %v2310
      %v2343 = vadd.f32 %v2210, %v2311
      %v2344 = vadd.f32 %v2211, %v2312
      %v2345 = vadd.f32 %v2212, %v2313
      %v2346 = vadd.f32 %v2213, %v2314
      %v2347 = vadd.f32 %v2214, %v2315
      %v2348 = vadd.f32 %v2215, %v2316
      %v2349 = vadd.f32 %v2216, %v2317
      %v2350 = vadd.f32 %v2217, %v2318
      %v2351 = vadd.f32 %v2218, %v2319
      %v2352 = vadd.f32 %v2219, %v2320
      %v2353 = vadd.f32 %v2220, %v2321
      %v2354 = vadd.f32 %v2221, %v2322
      %v2355 = vadd.f32 %v2222, %v2323
      %v2356 = vadd.f32 %v2223, %v2324
      %v2357 = vadd.f32 %v2224, %v2325
      %v2358 = vadd.f32 %v2225, %v2326
      %v2359 = vadd.f32 %v2226, %v2327
      %v2360 = vadd.f32 %v2227, %v2328
      %v2361 = vadd.f32 %v2228, %v2329
      %s2362 = scalar_lea.vmem %s7, 5
      %v2363 = vld [vmem:[%s2362] ss:$8 sm:$0xf]
      %v2364 = vld [vmem:[%s2362] ss:$8 sm:$0xf0]
      %v2365 = vor.u32 %v2363, %v2364
      %v2367 = vperm.slane %v2365, 0
      %v2368 = vperm.slane %v2365, 1
      %v2369 = vperm.slane %v2365, 2
      %v2370 = vperm.slane %v2365, 3
      %v2371 = vperm.slane %v2365, 4
      %v2372 = vperm.slane %v2365, 5
      %v2373 = vperm.slane %v2365, 6
      %v2374 = vperm.slane %v2365, 7
      %2375 = vrot.lane.b32.xlu0 %v2367, 34
      %v2376 = vpop.permute.xlu0 %2375
      %2377 = vrot.lane.b32.xlu0 %v2368, 34
      %v2378 = vpop.permute.xlu0 %2377
      %2379 = vrot.lane.b32.xlu0 %v2369, 34
      %v2380 = vpop.permute.xlu0 %2379
      %2381 = vrot.lane.b32.xlu0 %v2370, 34
      %v2382 = vpop.permute.xlu0 %2381
      %2383 = vrot.lane.b32.xlu0 %v2371, 34
      %v2384 = vpop.permute.xlu0 %2383
      %2385 = vrot.lane.b32.xlu0 %v2372, 34
      %v2386 = vpop.permute.xlu0 %2385
      %2387 = vrot.lane.b32.xlu0 %v2373, 34
      %v2388 = vpop.permute.xlu0 %2387
      %2389 = vrot.lane.b32.xlu0 %v2374, 34
      %v2390 = vpop.permute.xlu0 %2389
      %vm2391 = vcmask 277504
      %v2392 = vsel %vm2391, %v2376, %v2378
      %v2393 = vsel %vm2391, %v2378, %v2380
      %v2394 = vsel %vm2391, %v2380, %v2382
      %v2395 = vsel %vm2391, %v2382, %v2384
      %v2396 = vsel %vm2391, %v2384, %v2386
      %v2397 = vsel %vm2391, %v2386, %v2388
      %v2398 = vsel %vm2391, %v2388, %v2390
      %v2408 = vmul.f32 %v1176, %v2376
      %v2409 = vmul.f32 %v1177, %v2392
      %v2410 = vmul.f32 %v1178, %v2393
      %v2411 = vmul.f32 %v1179, %v2394
      %v2412 = vmul.f32 %v1180, %v2395
      %v2413 = vmul.f32 %v1181, %v2396
      %v2414 = vmul.f32 %v1182, %v2397
      %v2415 = vmul.f32 %v1183, %v2398
      %v2416 = vmul.f32 %v1184, %v2390
      %v2417 = vmul.f32 %v1185, %v2376
      %v2418 = vmul.f32 %v1186, %v2392
      %v2419 = vmul.f32 %v1187, %v2393
      %v2420 = vmul.f32 %v1188, %v2394
      %v2421 = vmul.f32 %v1189, %v2395
      %v2422 = vmul.f32 %v1190, %v2396
      %v2423 = vmul.f32 %v1191, %v2397
      %v2424 = vmul.f32 %v1192, %v2398
      %v2425 = vmul.f32 %v1193, %v2390
      %v2426 = vmul.f32 %v1194, %v2376
      %v2427 = vmul.f32 %v1195, %v2392
      %v2428 = vmul.f32 %v1196, %v2393
      %v2429 = vmul.f32 %v1197, %v2394
      %v2430 = vmul.f32 %v1198, %v2395
      %v2431 = vmul.f32 %v1199, %v2396
      %v2432 = vmul.f32 %v1200, %v2397
      %v2433 = vmul.f32 %v1201, %v2398
      %v2434 = vmul.f32 %v1202, %v2390
      %v2435 = vmul.f32 %v1203, %v2376
      %v2436 = vmul.f32 %v1204, %v2392
      %v2437 = vmul.f32 %v1205, %v2393
      %v2438 = vmul.f32 %v1206, %v2394
      %v2439 = vmul.f32 %v1207, %v2395
      %v2440 = vmul.f32 %v1208, %v2396
      %v2441 = vmul.f32 %v1209, %v2397
      %v2442 = vmul.f32 %v1210, %v2398
      %v2443 = vmul.f32 %v1211, %v2390
      %2444 = vset.pattern.permute.xlu0 5
      %2445 = vperm.xlu0 %2444, %v1004
      %v2446 = vpop.permute.xlu0 %2445
      %2448 = vset.pattern.permute.xlu0 5
      %2449 = vperm.xlu0 %2448, %v1005
      %v2450 = vpop.permute.xlu0 %2449
      %2452 = vset.pattern.permute.xlu0 5
      %2453 = vperm.xlu0 %2452, %v1006
      %v2454 = vpop.permute.xlu0 %2453
      %2456 = vset.pattern.permute.xlu0 5
      %2457 = vperm.xlu0 %2456, %v1007
      %v2458 = vpop.permute.xlu0 %2457
      %v2460 = vmul.f32 %v2408, %v2446
      %v2461 = vmul.f32 %v2409, %v2446
      %v2462 = vmul.f32 %v2410, %v2446
      %v2463 = vmul.f32 %v2411, %v2446
      %v2464 = vmul.f32 %v2412, %v2446
      %v2465 = vmul.f32 %v2413, %v2446
      %v2466 = vmul.f32 %v2414, %v2446
      %v2467 = vmul.f32 %v2415, %v2446
      %v2468 = vmul.f32 %v2416, %v2446
      %v2469 = vmul.f32 %v2417, %v2450
      %v2470 = vmul.f32 %v2418, %v2450
      %v2471 = vmul.f32 %v2419, %v2450
      %v2472 = vmul.f32 %v2420, %v2450
      %v2473 = vmul.f32 %v2421, %v2450
      %v2474 = vmul.f32 %v2422, %v2450
      %v2475 = vmul.f32 %v2423, %v2450
      %v2476 = vmul.f32 %v2424, %v2450
      %v2477 = vmul.f32 %v2425, %v2450
      %v2478 = vmul.f32 %v2426, %v2454
      %v2479 = vmul.f32 %v2427, %v2454
      %v2480 = vmul.f32 %v2428, %v2454
      %v2481 = vmul.f32 %v2429, %v2454
      %v2482 = vmul.f32 %v2430, %v2454
      %v2483 = vmul.f32 %v2431, %v2454
      %v2484 = vmul.f32 %v2432, %v2454
      %v2485 = vmul.f32 %v2433, %v2454
      %v2486 = vmul.f32 %v2434, %v2454
      %v2487 = vmul.f32 %v2435, %v2458
      %v2488 = vmul.f32 %v2436, %v2458
      %v2489 = vmul.f32 %v2437, %v2458
      %v2490 = vmul.f32 %v2438, %v2458
      %v2491 = vmul.f32 %v2439, %v2458
      %v2492 = vmul.f32 %v2440, %v2458
      %v2493 = vmul.f32 %v2441, %v2458
      %v2494 = vmul.f32 %v2442, %v2458
      %v2495 = vmul.f32 %v2443, %v2458
      %2532 = vrot.lane.b32.xlu0 %v2460, 94
      %v2533 = vpop.permute.xlu0 %2532
      %2534 = vrot.lane.b32.xlu0 %v2461, 94
      %v2535 = vpop.permute.xlu0 %2534
      %2536 = vrot.lane.b32.xlu0 %v2462, 94
      %v2537 = vpop.permute.xlu0 %2536
      %2538 = vrot.lane.b32.xlu0 %v2463, 94
      %v2539 = vpop.permute.xlu0 %2538
      %2540 = vrot.lane.b32.xlu0 %v2464, 94
      %v2541 = vpop.permute.xlu0 %2540
      %2542 = vrot.lane.b32.xlu0 %v2465, 94
      %v2543 = vpop.permute.xlu0 %2542
      %2544 = vrot.lane.b32.xlu0 %v2466, 94
      %v2545 = vpop.permute.xlu0 %2544
      %2546 = vrot.lane.b32.xlu0 %v2467, 94
      %v2547 = vpop.permute.xlu0 %2546
      %2548 = vrot.lane.b32.xlu0 %v2468, 94
      %v2549 = vpop.permute.xlu0 %2548
      %2550 = vrot.lane.b32.xlu0 %v2469, 94
      %v2551 = vpop.permute.xlu0 %2550
      %2552 = vrot.lane.b32.xlu0 %v2470, 94
      %v2553 = vpop.permute.xlu0 %2552
      %2554 = vrot.lane.b32.xlu0 %v2471, 94
      %v2555 = vpop.permute.xlu0 %2554
      %2556 = vrot.lane.b32.xlu0 %v2472, 94
      %v2557 = vpop.permute.xlu0 %2556
      %2558 = vrot.lane.b32.xlu0 %v2473, 94
      %v2559 = vpop.permute.xlu0 %2558
      %2560 = vrot.lane.b32.xlu0 %v2474, 94
      %v2561 = vpop.permute.xlu0 %2560
      %2562 = vrot.lane.b32.xlu0 %v2475, 94
      %v2563 = vpop.permute.xlu0 %2562
      %2564 = vrot.lane.b32.xlu0 %v2476, 94
      %v2565 = vpop.permute.xlu0 %2564
      %2566 = vrot.lane.b32.xlu0 %v2477, 94
      %v2567 = vpop.permute.xlu0 %2566
      %2568 = vrot.lane.b32.xlu0 %v2478, 94
      %v2569 = vpop.permute.xlu0 %2568
      %2570 = vrot.lane.b32.xlu0 %v2479, 94
      %v2571 = vpop.permute.xlu0 %2570
      %2572 = vrot.lane.b32.xlu0 %v2480, 94
      %v2573 = vpop.permute.xlu0 %2572
      %2574 = vrot.lane.b32.xlu0 %v2481, 94
      %v2575 = vpop.permute.xlu0 %2574
      %2576 = vrot.lane.b32.xlu0 %v2482, 94
      %v2577 = vpop.permute.xlu0 %2576
      %2578 = vrot.lane.b32.xlu0 %v2483, 94
      %v2579 = vpop.permute.xlu0 %2578
      %2580 = vrot.lane.b32.xlu0 %v2484, 94
      %v2581 = vpop.permute.xlu0 %2580
      %2582 = vrot.lane.b32.xlu0 %v2485, 94
      %v2583 = vpop.permute.xlu0 %2582
      %2584 = vrot.lane.b32.xlu0 %v2486, 94
      %v2585 = vpop.permute.xlu0 %2584
      %2586 = vrot.lane.b32.xlu0 %v2487, 94
      %v2587 = vpop.permute.xlu0 %2586
      %2588 = vrot.lane.b32.xlu0 %v2488, 94
      %v2589 = vpop.permute.xlu0 %2588
      %2590 = vrot.lane.b32.xlu0 %v2489, 94
      %v2591 = vpop.permute.xlu0 %2590
      %2592 = vrot.lane.b32.xlu0 %v2490, 94
      %v2593 = vpop.permute.xlu0 %2592
      %2594 = vrot.lane.b32.xlu0 %v2491, 94
      %v2595 = vpop.permute.xlu0 %2594
      %2596 = vrot.lane.b32.xlu0 %v2492, 94
      %v2597 = vpop.permute.xlu0 %2596
      %2598 = vrot.lane.b32.xlu0 %v2493, 94
      %v2599 = vpop.permute.xlu0 %2598
      %2600 = vrot.lane.b32.xlu0 %v2494, 94
      %v2601 = vpop.permute.xlu0 %2600
      %2602 = vrot.lane.b32.xlu0 %v2495, 94
      %v2603 = vpop.permute.xlu0 %2602
      %vm2604 = vcmask 769024
      %v2605 = vsel %vm2604, %v2533, %v2535
      %v2606 = vsel %vm2604, %v2535, %v2537
      %v2607 = vsel %vm2604, %v2537, %v2539
      %v2608 = vsel %vm2604, %v2539, %v2541
      %v2609 = vsel %vm2604, %v2541, %v2543
      %v2610 = vsel %vm2604, %v2543, %v2545
      %v2611 = vsel %vm2604, %v2545, %v2547
      %v2612 = vsel %vm2604, %v2547, %v2549
      %v2613 = vsel %vm2604, %v2551, %v2553
      %v2614 = vsel %vm2604, %v2553, %v2555
      %v2615 = vsel %vm2604, %v2555, %v2557
      %v2616 = vsel %vm2604, %v2557, %v2559
      %v2617 = vsel %vm2604, %v2559, %v2561
      %v2618 = vsel %vm2604, %v2561, %v2563
      %v2619 = vsel %vm2604, %v2563, %v2565
      %v2620 = vsel %vm2604, %v2565, %v2567
      %v2621 = vsel %vm2604, %v2569, %v2571
      %v2622 = vsel %vm2604, %v2571, %v2573
      %v2623 = vsel %vm2604, %v2573, %v2575
      %v2624 = vsel %vm2604, %v2575, %v2577
      %v2625 = vsel %vm2604, %v2577, %v2579
      %v2626 = vsel %vm2604, %v2579, %v2581
      %v2627 = vsel %vm2604, %v2581, %v2583
      %v2628 = vsel %vm2604, %v2583, %v2585
      %v2629 = vsel %vm2604, %v2587, %v2589
      %v2630 = vsel %vm2604, %v2589, %v2591
      %v2631 = vsel %vm2604, %v2591, %v2593
      %v2632 = vsel %vm2604, %v2593, %v2595
      %v2633 = vsel %vm2604, %v2595, %v2597
      %v2634 = vsel %vm2604, %v2597, %v2599
      %v2635 = vsel %vm2604, %v2599, %v2601
      %v2636 = vsel %vm2604, %v2601, %v2603
      %v2669 = vadd.f32 %v2330, %v2605
      %v2670 = vadd.f32 %v2331, %v2606
      %v2671 = vadd.f32 %v2332, %v2607
      %v2672 = vadd.f32 %v2333, %v2608
      %v2673 = vadd.f32 %v2334, %v2609
      %v2674 = vadd.f32 %v2335, %v2610
      %v2675 = vadd.f32 %v2336, %v2611
      %v2676 = vadd.f32 %v2337, %v2612
      %v2677 = vadd.f32 %v2338, %v2613
      %v2678 = vadd.f32 %v2339, %v2614
      %v2679 = vadd.f32 %v2340, %v2615
      %v2680 = vadd.f32 %v2341, %v2616
      %v2681 = vadd.f32 %v2342, %v2617
      %v2682 = vadd.f32 %v2343, %v2618
      %v2683 = vadd.f32 %v2344, %v2619
      %v2684 = vadd.f32 %v2345, %v2620
      %v2685 = vadd.f32 %v2346, %v2621
      %v2686 = vadd.f32 %v2347, %v2622
      %v2687 = vadd.f32 %v2348, %v2623
      %v2688 = vadd.f32 %v2349, %v2624
      %v2689 = vadd.f32 %v2350, %v2625
      %v2690 = vadd.f32 %v2351, %v2626
      %v2691 = vadd.f32 %v2352, %v2627
      %v2692 = vadd.f32 %v2353, %v2628
      %v2693 = vadd.f32 %v2354, %v2629
      %v2694 = vadd.f32 %v2355, %v2630
      %v2695 = vadd.f32 %v2356, %v2631
      %v2696 = vadd.f32 %v2357, %v2632
      %v2697 = vadd.f32 %v2358, %v2633
      %v2698 = vadd.f32 %v2359, %v2634
      %v2699 = vadd.f32 %v2360, %v2635
      %v2700 = vadd.f32 %v2361, %v2636
      %s2701 = scalar_lea.vmem %s7, 6
      %v2702 = vld [vmem:[%s2701] ss:$8 sm:$0xf]
      %v2703 = vld [vmem:[%s2701] ss:$8 sm:$0xf0]
      %v2704 = vor.u32 %v2702, %v2703
      %v2706 = vperm.slane %v2704, 0
      %v2707 = vperm.slane %v2704, 1
      %v2708 = vperm.slane %v2704, 2
      %v2709 = vperm.slane %v2704, 3
      %v2710 = vperm.slane %v2704, 4
      %v2711 = vperm.slane %v2704, 5
      %v2712 = vperm.slane %v2704, 6
      %v2713 = vperm.slane %v2704, 7
      %2714 = vrot.lane.b32.xlu0 %v2706, 64
      %v2715 = vpop.permute.xlu0 %2714
      %2716 = vrot.lane.b32.xlu0 %v2707, 64
      %v2717 = vpop.permute.xlu0 %2716
      %2718 = vrot.lane.b32.xlu0 %v2708, 64
      %v2719 = vpop.permute.xlu0 %2718
      %2720 = vrot.lane.b32.xlu0 %v2709, 64
      %v2721 = vpop.permute.xlu0 %2720
      %2722 = vrot.lane.b32.xlu0 %v2710, 64
      %v2723 = vpop.permute.xlu0 %2722
      %2724 = vrot.lane.b32.xlu0 %v2711, 64
      %v2725 = vpop.permute.xlu0 %2724
      %2726 = vrot.lane.b32.xlu0 %v2712, 64
      %v2727 = vpop.permute.xlu0 %2726
      %2728 = vrot.lane.b32.xlu0 %v2713, 64
      %v2729 = vpop.permute.xlu0 %2728
      %vm2730 = vcmask 523264
      %v2731 = vsel %vm2730, %v2715, %v2717
      %v2732 = vsel %vm2730, %v2717, %v2719
      %v2733 = vsel %vm2730, %v2719, %v2721
      %v2734 = vsel %vm2730, %v2721, %v2723
      %v2735 = vsel %vm2730, %v2723, %v2725
      %v2736 = vsel %vm2730, %v2725, %v2727
      %v2737 = vsel %vm2730, %v2727, %v2729
      %v2747 = vmul.f32 %v1176, %v2715
      %v2748 = vmul.f32 %v1177, %v2731
      %v2749 = vmul.f32 %v1178, %v2732
      %v2750 = vmul.f32 %v1179, %v2733
      %v2751 = vmul.f32 %v1180, %v2734
      %v2752 = vmul.f32 %v1181, %v2735
      %v2753 = vmul.f32 %v1182, %v2736
      %v2754 = vmul.f32 %v1183, %v2737
      %v2755 = vmul.f32 %v1184, %v2729
      %v2756 = vmul.f32 %v1185, %v2715
      %v2757 = vmul.f32 %v1186, %v2731
      %v2758 = vmul.f32 %v1187, %v2732
      %v2759 = vmul.f32 %v1188, %v2733
      %v2760 = vmul.f32 %v1189, %v2734
      %v2761 = vmul.f32 %v1190, %v2735
      %v2762 = vmul.f32 %v1191, %v2736
      %v2763 = vmul.f32 %v1192, %v2737
      %v2764 = vmul.f32 %v1193, %v2729
      %v2765 = vmul.f32 %v1194, %v2715
      %v2766 = vmul.f32 %v1195, %v2731
      %v2767 = vmul.f32 %v1196, %v2732
      %v2768 = vmul.f32 %v1197, %v2733
      %v2769 = vmul.f32 %v1198, %v2734
      %v2770 = vmul.f32 %v1199, %v2735
      %v2771 = vmul.f32 %v1200, %v2736
      %v2772 = vmul.f32 %v1201, %v2737
      %v2773 = vmul.f32 %v1202, %v2729
      %v2774 = vmul.f32 %v1203, %v2715
      %v2775 = vmul.f32 %v1204, %v2731
      %v2776 = vmul.f32 %v1205, %v2732
      %v2777 = vmul.f32 %v1206, %v2733
      %v2778 = vmul.f32 %v1207, %v2734
      %v2779 = vmul.f32 %v1208, %v2735
      %v2780 = vmul.f32 %v1209, %v2736
      %v2781 = vmul.f32 %v1210, %v2737
      %v2782 = vmul.f32 %v1211, %v2729
      %2783 = vset.pattern.permute.xlu0 6
      %2784 = vperm.xlu0 %2783, %v1004
      %v2785 = vpop.permute.xlu0 %2784
      %2787 = vset.pattern.permute.xlu0 6
      %2788 = vperm.xlu0 %2787, %v1005
      %v2789 = vpop.permute.xlu0 %2788
      %2791 = vset.pattern.permute.xlu0 6
      %2792 = vperm.xlu0 %2791, %v1006
      %v2793 = vpop.permute.xlu0 %2792
      %2795 = vset.pattern.permute.xlu0 6
      %2796 = vperm.xlu0 %2795, %v1007
      %v2797 = vpop.permute.xlu0 %2796
      %v2799 = vmul.f32 %v2747, %v2785
      %v2800 = vmul.f32 %v2748, %v2785
      %v2801 = vmul.f32 %v2749, %v2785
      %v2802 = vmul.f32 %v2750, %v2785
      %v2803 = vmul.f32 %v2751, %v2785
      %v2804 = vmul.f32 %v2752, %v2785
      %v2805 = vmul.f32 %v2753, %v2785
      %v2806 = vmul.f32 %v2754, %v2785
      %v2807 = vmul.f32 %v2755, %v2785
      %v2808 = vmul.f32 %v2756, %v2789
      %v2809 = vmul.f32 %v2757, %v2789
      %v2810 = vmul.f32 %v2758, %v2789
      %v2811 = vmul.f32 %v2759, %v2789
      %v2812 = vmul.f32 %v2760, %v2789
      %v2813 = vmul.f32 %v2761, %v2789
      %v2814 = vmul.f32 %v2762, %v2789
      %v2815 = vmul.f32 %v2763, %v2789
      %v2816 = vmul.f32 %v2764, %v2789
      %v2817 = vmul.f32 %v2765, %v2793
      %v2818 = vmul.f32 %v2766, %v2793
      %v2819 = vmul.f32 %v2767, %v2793
      %v2820 = vmul.f32 %v2768, %v2793
      %v2821 = vmul.f32 %v2769, %v2793
      %v2822 = vmul.f32 %v2770, %v2793
      %v2823 = vmul.f32 %v2771, %v2793
      %v2824 = vmul.f32 %v2772, %v2793
      %v2825 = vmul.f32 %v2773, %v2793
      %v2826 = vmul.f32 %v2774, %v2797
      %v2827 = vmul.f32 %v2775, %v2797
      %v2828 = vmul.f32 %v2776, %v2797
      %v2829 = vmul.f32 %v2777, %v2797
      %v2830 = vmul.f32 %v2778, %v2797
      %v2831 = vmul.f32 %v2779, %v2797
      %v2832 = vmul.f32 %v2780, %v2797
      %v2833 = vmul.f32 %v2781, %v2797
      %v2834 = vmul.f32 %v2782, %v2797
      %2871 = vrot.lane.b32.xlu0 %v2799, 64
      %v2872 = vpop.permute.xlu0 %2871
      %2873 = vrot.lane.b32.xlu0 %v2800, 64
      %v2874 = vpop.permute.xlu0 %2873
      %2875 = vrot.lane.b32.xlu0 %v2801, 64
      %v2876 = vpop.permute.xlu0 %2875
      %2877 = vrot.lane.b32.xlu0 %v2802, 64
      %v2878 = vpop.permute.xlu0 %2877
      %2879 = vrot.lane.b32.xlu0 %v2803, 64
      %v2880 = vpop.permute.xlu0 %2879
      %2881 = vrot.lane.b32.xlu0 %v2804, 64
      %v2882 = vpop.permute.xlu0 %2881
      %2883 = vrot.lane.b32.xlu0 %v2805, 64
      %v2884 = vpop.permute.xlu0 %2883
      %2885 = vrot.lane.b32.xlu0 %v2806, 64
      %v2886 = vpop.permute.xlu0 %2885
      %2887 = vrot.lane.b32.xlu0 %v2807, 64
      %v2888 = vpop.permute.xlu0 %2887
      %2889 = vrot.lane.b32.xlu0 %v2808, 64
      %v2890 = vpop.permute.xlu0 %2889
      %2891 = vrot.lane.b32.xlu0 %v2809, 64
      %v2892 = vpop.permute.xlu0 %2891
      %2893 = vrot.lane.b32.xlu0 %v2810, 64
      %v2894 = vpop.permute.xlu0 %2893
      %2895 = vrot.lane.b32.xlu0 %v2811, 64
      %v2896 = vpop.permute.xlu0 %2895
      %2897 = vrot.lane.b32.xlu0 %v2812, 64
      %v2898 = vpop.permute.xlu0 %2897
      %2899 = vrot.lane.b32.xlu0 %v2813, 64
      %v2900 = vpop.permute.xlu0 %2899
      %2901 = vrot.lane.b32.xlu0 %v2814, 64
      %v2902 = vpop.permute.xlu0 %2901
      %2903 = vrot.lane.b32.xlu0 %v2815, 64
      %v2904 = vpop.permute.xlu0 %2903
      %2905 = vrot.lane.b32.xlu0 %v2816, 64
      %v2906 = vpop.permute.xlu0 %2905
      %2907 = vrot.lane.b32.xlu0 %v2817, 64
      %v2908 = vpop.permute.xlu0 %2907
      %2909 = vrot.lane.b32.xlu0 %v2818, 64
      %v2910 = vpop.permute.xlu0 %2909
      %2911 = vrot.lane.b32.xlu0 %v2819, 64
      %v2912 = vpop.permute.xlu0 %2911
      %2913 = vrot.lane.b32.xlu0 %v2820, 64
      %v2914 = vpop.permute.xlu0 %2913
      %2915 = vrot.lane.b32.xlu0 %v2821, 64
      %v2916 = vpop.permute.xlu0 %2915
      %2917 = vrot.lane.b32.xlu0 %v2822, 64
      %v2918 = vpop.permute.xlu0 %2917
      %2919 = vrot.lane.b32.xlu0 %v2823, 64
      %v2920 = vpop.permute.xlu0 %2919
      %2921 = vrot.lane.b32.xlu0 %v2824, 64
      %v2922 = vpop.permute.xlu0 %2921
      %2923 = vrot.lane.b32.xlu0 %v2825, 64
      %v2924 = vpop.permute.xlu0 %2923
      %2925 = vrot.lane.b32.xlu0 %v2826, 64
      %v2926 = vpop.permute.xlu0 %2925
      %2927 = vrot.lane.b32.xlu0 %v2827, 64
      %v2928 = vpop.permute.xlu0 %2927
      %2929 = vrot.lane.b32.xlu0 %v2828, 64
      %v2930 = vpop.permute.xlu0 %2929
      %2931 = vrot.lane.b32.xlu0 %v2829, 64
      %v2932 = vpop.permute.xlu0 %2931
      %2933 = vrot.lane.b32.xlu0 %v2830, 64
      %v2934 = vpop.permute.xlu0 %2933
      %2935 = vrot.lane.b32.xlu0 %v2831, 64
      %v2936 = vpop.permute.xlu0 %2935
      %2937 = vrot.lane.b32.xlu0 %v2832, 64
      %v2938 = vpop.permute.xlu0 %2937
      %2939 = vrot.lane.b32.xlu0 %v2833, 64
      %v2940 = vpop.permute.xlu0 %2939
      %2941 = vrot.lane.b32.xlu0 %v2834, 64
      %v2942 = vpop.permute.xlu0 %2941
      %v2943 = vsel %vm2730, %v2872, %v2874
      %v2944 = vsel %vm2730, %v2874, %v2876
      %v2945 = vsel %vm2730, %v2876, %v2878
      %v2946 = vsel %vm2730, %v2878, %v2880
      %v2947 = vsel %vm2730, %v2880, %v2882
      %v2948 = vsel %vm2730, %v2882, %v2884
      %v2949 = vsel %vm2730, %v2884, %v2886
      %v2950 = vsel %vm2730, %v2886, %v2888
      %v2951 = vsel %vm2730, %v2890, %v2892
      %v2952 = vsel %vm2730, %v2892, %v2894
      %v2953 = vsel %vm2730, %v2894, %v2896
      %v2954 = vsel %vm2730, %v2896, %v2898
      %v2955 = vsel %vm2730, %v2898, %v2900
      %v2956 = vsel %vm2730, %v2900, %v2902
      %v2957 = vsel %vm2730, %v2902, %v2904
      %v2958 = vsel %vm2730, %v2904, %v2906
      %v2959 = vsel %vm2730, %v2908, %v2910
      %v2960 = vsel %vm2730, %v2910, %v2912
      %v2961 = vsel %vm2730, %v2912, %v2914
      %v2962 = vsel %vm2730, %v2914, %v2916
      %v2963 = vsel %vm2730, %v2916, %v2918
      %v2964 = vsel %vm2730, %v2918, %v2920
      %v2965 = vsel %vm2730, %v2920, %v2922
      %v2966 = vsel %vm2730, %v2922, %v2924
      %v2967 = vsel %vm2730, %v2926, %v2928
      %v2968 = vsel %vm2730, %v2928, %v2930
      %v2969 = vsel %vm2730, %v2930, %v2932
      %v2970 = vsel %vm2730, %v2932, %v2934
      %v2971 = vsel %vm2730, %v2934, %v2936
      %v2972 = vsel %vm2730, %v2936, %v2938
      %v2973 = vsel %vm2730, %v2938, %v2940
      %v2974 = vsel %vm2730, %v2940, %v2942
      %v3007 = vadd.f32 %v2669, %v2943
      %v3008 = vadd.f32 %v2670, %v2944
      %v3009 = vadd.f32 %v2671, %v2945
      %v3010 = vadd.f32 %v2672, %v2946
      %v3011 = vadd.f32 %v2673, %v2947
      %v3012 = vadd.f32 %v2674, %v2948
      %v3013 = vadd.f32 %v2675, %v2949
      %v3014 = vadd.f32 %v2676, %v2950
      %v3015 = vadd.f32 %v2677, %v2951
      %v3016 = vadd.f32 %v2678, %v2952
      %v3017 = vadd.f32 %v2679, %v2953
      %v3018 = vadd.f32 %v2680, %v2954
      %v3019 = vadd.f32 %v2681, %v2955
      %v3020 = vadd.f32 %v2682, %v2956
      %v3021 = vadd.f32 %v2683, %v2957
      %v3022 = vadd.f32 %v2684, %v2958
      %v3023 = vadd.f32 %v2685, %v2959
      %v3024 = vadd.f32 %v2686, %v2960
      %v3025 = vadd.f32 %v2687, %v2961
      %v3026 = vadd.f32 %v2688, %v2962
      %v3027 = vadd.f32 %v2689, %v2963
      %v3028 = vadd.f32 %v2690, %v2964
      %v3029 = vadd.f32 %v2691, %v2965
      %v3030 = vadd.f32 %v2692, %v2966
      %v3031 = vadd.f32 %v2693, %v2967
      %v3032 = vadd.f32 %v2694, %v2968
      %v3033 = vadd.f32 %v2695, %v2969
      %v3034 = vadd.f32 %v2696, %v2970
      %v3035 = vadd.f32 %v2697, %v2971
      %v3036 = vadd.f32 %v2698, %v2972
      %v3037 = vadd.f32 %v2699, %v2973
      %v3038 = vadd.f32 %v2700, %v2974
      %s3039 = scalar_lea.vmem %s7, 7
      %v3040 = vld [vmem:[%s3039] ss:$8 sm:$0xf]
      %v3041 = vld [vmem:[%s3039] ss:$8 sm:$0xf0]
      %v3042 = vor.u32 %v3040, %v3041
      %v3044 = vperm.slane %v3042, 0
      %v3045 = vperm.slane %v3042, 1
      %v3046 = vperm.slane %v3042, 2
      %v3047 = vperm.slane %v3042, 3
      %v3048 = vperm.slane %v3042, 4
      %v3049 = vperm.slane %v3042, 5
      %v3050 = vperm.slane %v3042, 6
      %v3051 = vperm.slane %v3042, 7
      %3052 = vrot.lane.b32.xlu0 %v3044, 65
      %v3053 = vpop.permute.xlu0 %3052
      %3054 = vrot.lane.b32.xlu0 %v3045, 65
      %v3055 = vpop.permute.xlu0 %3054
      %3056 = vrot.lane.b32.xlu0 %v3046, 65
      %v3057 = vpop.permute.xlu0 %3056
      %3058 = vrot.lane.b32.xlu0 %v3047, 65
      %v3059 = vpop.permute.xlu0 %3058
      %3060 = vrot.lane.b32.xlu0 %v3048, 65
      %v3061 = vpop.permute.xlu0 %3060
      %3062 = vrot.lane.b32.xlu0 %v3049, 65
      %v3063 = vpop.permute.xlu0 %3062
      %3064 = vrot.lane.b32.xlu0 %v3050, 65
      %v3065 = vpop.permute.xlu0 %3064
      %3066 = vrot.lane.b32.xlu0 %v3051, 65
      %v3067 = vpop.permute.xlu0 %3066
      %vm3068 = vcmask 531456
      %v3069 = vsel %vm3068, %v3053, %v3055
      %v3070 = vsel %vm3068, %v3055, %v3057
      %v3071 = vsel %vm3068, %v3057, %v3059
      %v3072 = vsel %vm3068, %v3059, %v3061
      %v3073 = vsel %vm3068, %v3061, %v3063
      %v3074 = vsel %vm3068, %v3063, %v3065
      %v3075 = vsel %vm3068, %v3065, %v3067
      %v3085 = vmul.f32 %v1176, %v3053
      %v3086 = vmul.f32 %v1177, %v3069
      %v3087 = vmul.f32 %v1178, %v3070
      %v3088 = vmul.f32 %v1179, %v3071
      %v3089 = vmul.f32 %v1180, %v3072
      %v3090 = vmul.f32 %v1181, %v3073
      %v3091 = vmul.f32 %v1182, %v3074
      %v3092 = vmul.f32 %v1183, %v3075
      %v3093 = vmul.f32 %v1184, %v3067
      %v3094 = vmul.f32 %v1185, %v3053
      %v3095 = vmul.f32 %v1186, %v3069
      %v3096 = vmul.f32 %v1187, %v3070
      %v3097 = vmul.f32 %v1188, %v3071
      %v3098 = vmul.f32 %v1189, %v3072
      %v3099 = vmul.f32 %v1190, %v3073
      %v3100 = vmul.f32 %v1191, %v3074
      %v3101 = vmul.f32 %v1192, %v3075
      %v3102 = vmul.f32 %v1193, %v3067
      %v3103 = vmul.f32 %v1194, %v3053
      %v3104 = vmul.f32 %v1195, %v3069
      %v3105 = vmul.f32 %v1196, %v3070
      %v3106 = vmul.f32 %v1197, %v3071
      %v3107 = vmul.f32 %v1198, %v3072
      %v3108 = vmul.f32 %v1199, %v3073
      %v3109 = vmul.f32 %v1200, %v3074
      %v3110 = vmul.f32 %v1201, %v3075
      %v3111 = vmul.f32 %v1202, %v3067
      %v3112 = vmul.f32 %v1203, %v3053
      %v3113 = vmul.f32 %v1204, %v3069
      %v3114 = vmul.f32 %v1205, %v3070
      %v3115 = vmul.f32 %v1206, %v3071
      %v3116 = vmul.f32 %v1207, %v3072
      %v3117 = vmul.f32 %v1208, %v3073
      %v3118 = vmul.f32 %v1209, %v3074
      %v3119 = vmul.f32 %v1210, %v3075
      %v3120 = vmul.f32 %v1211, %v3067
      %3121 = vset.pattern.permute.xlu0 7
      %3122 = vperm.xlu0 %3121, %v1004
      %v3123 = vpop.permute.xlu0 %3122
      %3125 = vset.pattern.permute.xlu0 7
      %3126 = vperm.xlu0 %3125, %v1005
      %v3127 = vpop.permute.xlu0 %3126
      %3129 = vset.pattern.permute.xlu0 7
      %3130 = vperm.xlu0 %3129, %v1006
      %v3131 = vpop.permute.xlu0 %3130
      %3133 = vset.pattern.permute.xlu0 7
      %3134 = vperm.xlu0 %3133, %v1007
      %v3135 = vpop.permute.xlu0 %3134
      %v3137 = vmul.f32 %v3085, %v3123
      %v3138 = vmul.f32 %v3086, %v3123
      %v3139 = vmul.f32 %v3087, %v3123
      %v3140 = vmul.f32 %v3088, %v3123
      %v3141 = vmul.f32 %v3089, %v3123
      %v3142 = vmul.f32 %v3090, %v3123
      %v3143 = vmul.f32 %v3091, %v3123
      %v3144 = vmul.f32 %v3092, %v3123
      %v3145 = vmul.f32 %v3093, %v3123
      %v3146 = vmul.f32 %v3094, %v3127
      %v3147 = vmul.f32 %v3095, %v3127
      %v3148 = vmul.f32 %v3096, %v3127
      %v3149 = vmul.f32 %v3097, %v3127
      %v3150 = vmul.f32 %v3098, %v3127
      %v3151 = vmul.f32 %v3099, %v3127
      %v3152 = vmul.f32 %v3100, %v3127
      %v3153 = vmul.f32 %v3101, %v3127
      %v3154 = vmul.f32 %v3102, %v3127
      %v3155 = vmul.f32 %v3103, %v3131
      %v3156 = vmul.f32 %v3104, %v3131
      %v3157 = vmul.f32 %v3105, %v3131
      %v3158 = vmul.f32 %v3106, %v3131
      %v3159 = vmul.f32 %v3107, %v3131
      %v3160 = vmul.f32 %v3108, %v3131
      %v3161 = vmul.f32 %v3109, %v3131
      %v3162 = vmul.f32 %v3110, %v3131
      %v3163 = vmul.f32 %v3111, %v3131
      %v3164 = vmul.f32 %v3112, %v3135
      %v3165 = vmul.f32 %v3113, %v3135
      %v3166 = vmul.f32 %v3114, %v3135
      %v3167 = vmul.f32 %v3115, %v3135
      %v3168 = vmul.f32 %v3116, %v3135
      %v3169 = vmul.f32 %v3117, %v3135
      %v3170 = vmul.f32 %v3118, %v3135
      %v3171 = vmul.f32 %v3119, %v3135
      %v3172 = vmul.f32 %v3120, %v3135
      %3209 = vrot.lane.b32.xlu0 %v3137, 63
      %v3210 = vpop.permute.xlu0 %3209
      %3211 = vrot.lane.b32.xlu0 %v3138, 63
      %v3212 = vpop.permute.xlu0 %3211
      %3213 = vrot.lane.b32.xlu0 %v3139, 63
      %v3214 = vpop.permute.xlu0 %3213
      %3215 = vrot.lane.b32.xlu0 %v3140, 63
      %v3216 = vpop.permute.xlu0 %3215
      %3217 = vrot.lane.b32.xlu0 %v3141, 63
      %v3218 = vpop.permute.xlu0 %3217
      %3219 = vrot.lane.b32.xlu0 %v3142, 63
      %v3220 = vpop.permute.xlu0 %3219
      %3221 = vrot.lane.b32.xlu0 %v3143, 63
      %v3222 = vpop.permute.xlu0 %3221
      %3223 = vrot.lane.b32.xlu0 %v3144, 63
      %v3224 = vpop.permute.xlu0 %3223
      %3225 = vrot.lane.b32.xlu0 %v3145, 63
      %v3226 = vpop.permute.xlu0 %3225
      %3227 = vrot.lane.b32.xlu0 %v3146, 63
      %v3228 = vpop.permute.xlu0 %3227
      %3229 = vrot.lane.b32.xlu0 %v3147, 63
      %v3230 = vpop.permute.xlu0 %3229
      %3231 = vrot.lane.b32.xlu0 %v3148, 63
      %v3232 = vpop.permute.xlu0 %3231
      %3233 = vrot.lane.b32.xlu0 %v3149, 63
      %v3234 = vpop.permute.xlu0 %3233
      %3235 = vrot.lane.b32.xlu0 %v3150, 63
      %v3236 = vpop.permute.xlu0 %3235
      %3237 = vrot.lane.b32.xlu0 %v3151, 63
      %v3238 = vpop.permute.xlu0 %3237
      %3239 = vrot.lane.b32.xlu0 %v3152, 63
      %v3240 = vpop.permute.xlu0 %3239
      %3241 = vrot.lane.b32.xlu0 %v3153, 63
      %v3242 = vpop.permute.xlu0 %3241
      %3243 = vrot.lane.b32.xlu0 %v3154, 63
      %v3244 = vpop.permute.xlu0 %3243
      %3245 = vrot.lane.b32.xlu0 %v3155, 63
      %v3246 = vpop.permute.xlu0 %3245
      %3247 = vrot.lane.b32.xlu0 %v3156, 63
      %v3248 = vpop.permute.xlu0 %3247
      %3249 = vrot.lane.b32.xlu0 %v3157, 63
      %v3250 = vpop.permute.xlu0 %3249
      %3251 = vrot.lane.b32.xlu0 %v3158, 63
      %v3252 = vpop.permute.xlu0 %3251
      %3253 = vrot.lane.b32.xlu0 %v3159, 63
      %v3254 = vpop.permute.xlu0 %3253
      %3255 = vrot.lane.b32.xlu0 %v3160, 63
      %v3256 = vpop.permute.xlu0 %3255
      %3257 = vrot.lane.b32.xlu0 %v3161, 63
      %v3258 = vpop.permute.xlu0 %3257
      %3259 = vrot.lane.b32.xlu0 %v3162, 63
      %v3260 = vpop.permute.xlu0 %3259
      %3261 = vrot.lane.b32.xlu0 %v3163, 63
      %v3262 = vpop.permute.xlu0 %3261
      %3263 = vrot.lane.b32.xlu0 %v3164, 63
      %v3264 = vpop.permute.xlu0 %3263
      %3265 = vrot.lane.b32.xlu0 %v3165, 63
      %v3266 = vpop.permute.xlu0 %3265
      %3267 = vrot.lane.b32.xlu0 %v3166, 63
      %v3268 = vpop.permute.xlu0 %3267
      %3269 = vrot.lane.b32.xlu0 %v3167, 63
      %v3270 = vpop.permute.xlu0 %3269
      %3271 = vrot.lane.b32.xlu0 %v3168, 63
      %v3272 = vpop.permute.xlu0 %3271
      %3273 = vrot.lane.b32.xlu0 %v3169, 63
      %v3274 = vpop.permute.xlu0 %3273
      %3275 = vrot.lane.b32.xlu0 %v3170, 63
      %v3276 = vpop.permute.xlu0 %3275
      %3277 = vrot.lane.b32.xlu0 %v3171, 63
      %v3278 = vpop.permute.xlu0 %3277
      %3279 = vrot.lane.b32.xlu0 %v3172, 63
      %v3280 = vpop.permute.xlu0 %3279
      %vm3281 = vcmask 515072
      %v3282 = vsel %vm3281, %v3210, %v3212
      %v3283 = vsel %vm3281, %v3212, %v3214
      %v3284 = vsel %vm3281, %v3214, %v3216
      %v3285 = vsel %vm3281, %v3216, %v3218
      %v3286 = vsel %vm3281, %v3218, %v3220
      %v3287 = vsel %vm3281, %v3220, %v3222
      %v3288 = vsel %vm3281, %v3222, %v3224
      %v3289 = vsel %vm3281, %v3224, %v3226
      %v3290 = vsel %vm3281, %v3228, %v3230
      %v3291 = vsel %vm3281, %v3230, %v3232
      %v3292 = vsel %vm3281, %v3232, %v3234
      %v3293 = vsel %vm3281, %v3234, %v3236
      %v3294 = vsel %vm3281, %v3236, %v3238
      %v3295 = vsel %vm3281, %v3238, %v3240
      %v3296 = vsel %vm3281, %v3240, %v3242
      %v3297 = vsel %vm3281, %v3242, %v3244
      %v3298 = vsel %vm3281, %v3246, %v3248
      %v3299 = vsel %vm3281, %v3248, %v3250
      %v3300 = vsel %vm3281, %v3250, %v3252
      %v3301 = vsel %vm3281, %v3252, %v3254
      %v3302 = vsel %vm3281, %v3254, %v3256
      %v3303 = vsel %vm3281, %v3256, %v3258
      %v3304 = vsel %vm3281, %v3258, %v3260
      %v3305 = vsel %vm3281, %v3260, %v3262
      %v3306 = vsel %vm3281, %v3264, %v3266
      %v3307 = vsel %vm3281, %v3266, %v3268
      %v3308 = vsel %vm3281, %v3268, %v3270
      %v3309 = vsel %vm3281, %v3270, %v3272
      %v3310 = vsel %vm3281, %v3272, %v3274
      %v3311 = vsel %vm3281, %v3274, %v3276
      %v3312 = vsel %vm3281, %v3276, %v3278
      %v3313 = vsel %vm3281, %v3278, %v3280
      %v3346 = vadd.f32 %v3007, %v3282
      %v3347 = vadd.f32 %v3008, %v3283
      %v3348 = vadd.f32 %v3009, %v3284
      %v3349 = vadd.f32 %v3010, %v3285
      %v3350 = vadd.f32 %v3011, %v3286
      %v3351 = vadd.f32 %v3012, %v3287
      %v3352 = vadd.f32 %v3013, %v3288
      %v3353 = vadd.f32 %v3014, %v3289
      %v3354 = vadd.f32 %v3015, %v3290
      %v3355 = vadd.f32 %v3016, %v3291
      %v3356 = vadd.f32 %v3017, %v3292
      %v3357 = vadd.f32 %v3018, %v3293
      %v3358 = vadd.f32 %v3019, %v3294
      %v3359 = vadd.f32 %v3020, %v3295
      %v3360 = vadd.f32 %v3021, %v3296
      %v3361 = vadd.f32 %v3022, %v3297
      %v3362 = vadd.f32 %v3023, %v3298
      %v3363 = vadd.f32 %v3024, %v3299
      %v3364 = vadd.f32 %v3025, %v3300
      %v3365 = vadd.f32 %v3026, %v3301
      %v3366 = vadd.f32 %v3027, %v3302
      %v3367 = vadd.f32 %v3028, %v3303
      %v3368 = vadd.f32 %v3029, %v3304
      %v3369 = vadd.f32 %v3030, %v3305
      %v3370 = vadd.f32 %v3031, %v3306
      %v3371 = vadd.f32 %v3032, %v3307
      %v3372 = vadd.f32 %v3033, %v3308
      %v3373 = vadd.f32 %v3034, %v3309
      %v3374 = vadd.f32 %v3035, %v3310
      %v3375 = vadd.f32 %v3036, %v3311
      %v3376 = vadd.f32 %v3037, %v3312
      %v3377 = vadd.f32 %v3038, %v3313
      %s3378 = scalar_lea.vmem %s7, 64
      %v3379 = vld [vmem:[%s3378] ss:$8 sm:$0xf]
      %v3380 = vld [vmem:[%s3378] ss:$8 sm:$0xf0]
      %v3381 = vor.u32 %v3379, %v3380
      %v3383 = vperm.slane %v3381, 0
      %v3384 = vperm.slane %v3381, 1
      %v3385 = vperm.slane %v3381, 2
      %v3386 = vperm.slane %v3381, 3
      %v3387 = vperm.slane %v3381, 4
      %v3388 = vperm.slane %v3381, 5
      %v3389 = vperm.slane %v3381, 6
      %v3390 = vperm.slane %v3381, 7
      %3391 = vrot.lane.b32.xlu0 %v3383, 66
      %v3392 = vpop.permute.xlu0 %3391
      %3393 = vrot.lane.b32.xlu0 %v3384, 66
      %v3394 = vpop.permute.xlu0 %3393
      %3395 = vrot.lane.b32.xlu0 %v3385, 66
      %v3396 = vpop.permute.xlu0 %3395
      %3397 = vrot.lane.b32.xlu0 %v3386, 66
      %v3398 = vpop.permute.xlu0 %3397
      %3399 = vrot.lane.b32.xlu0 %v3387, 66
      %v3400 = vpop.permute.xlu0 %3399
      %3401 = vrot.lane.b32.xlu0 %v3388, 66
      %v3402 = vpop.permute.xlu0 %3401
      %3403 = vrot.lane.b32.xlu0 %v3389, 66
      %v3404 = vpop.permute.xlu0 %3403
      %3405 = vrot.lane.b32.xlu0 %v3390, 66
      %v3406 = vpop.permute.xlu0 %3405
      %vm3407 = vcmask 539648
      %v3408 = vsel %vm3407, %v3392, %v3394
      %v3409 = vsel %vm3407, %v3394, %v3396
      %v3410 = vsel %vm3407, %v3396, %v3398
      %v3411 = vsel %vm3407, %v3398, %v3400
      %v3412 = vsel %vm3407, %v3400, %v3402
      %v3413 = vsel %vm3407, %v3402, %v3404
      %v3414 = vsel %vm3407, %v3404, %v3406
      %v3424 = vmul.f32 %v1176, %v3392
      %v3425 = vmul.f32 %v1177, %v3408
      %v3426 = vmul.f32 %v1178, %v3409
      %v3427 = vmul.f32 %v1179, %v3410
      %v3428 = vmul.f32 %v1180, %v3411
      %v3429 = vmul.f32 %v1181, %v3412
      %v3430 = vmul.f32 %v1182, %v3413
      %v3431 = vmul.f32 %v1183, %v3414
      %v3432 = vmul.f32 %v1184, %v3406
      %v3433 = vmul.f32 %v1185, %v3392
      %v3434 = vmul.f32 %v1186, %v3408
      %v3435 = vmul.f32 %v1187, %v3409
      %v3436 = vmul.f32 %v1188, %v3410
      %v3437 = vmul.f32 %v1189, %v3411
      %v3438 = vmul.f32 %v1190, %v3412
      %v3439 = vmul.f32 %v1191, %v3413
      %v3440 = vmul.f32 %v1192, %v3414
      %v3441 = vmul.f32 %v1193, %v3406
      %v3442 = vmul.f32 %v1194, %v3392
      %v3443 = vmul.f32 %v1195, %v3408
      %v3444 = vmul.f32 %v1196, %v3409
      %v3445 = vmul.f32 %v1197, %v3410
      %v3446 = vmul.f32 %v1198, %v3411
      %v3447 = vmul.f32 %v1199, %v3412
      %v3448 = vmul.f32 %v1200, %v3413
      %v3449 = vmul.f32 %v1201, %v3414
      %v3450 = vmul.f32 %v1202, %v3406
      %v3451 = vmul.f32 %v1203, %v3392
      %v3452 = vmul.f32 %v1204, %v3408
      %v3453 = vmul.f32 %v1205, %v3409
      %v3454 = vmul.f32 %v1206, %v3410
      %v3455 = vmul.f32 %v1207, %v3411
      %v3456 = vmul.f32 %v1208, %v3412
      %v3457 = vmul.f32 %v1209, %v3413
      %v3458 = vmul.f32 %v1210, %v3414
      %v3459 = vmul.f32 %v1211, %v3406
      %3460 = vset.pattern.permute.xlu0 8
      %3461 = vperm.xlu0 %3460, %v1004
      %v3462 = vpop.permute.xlu0 %3461
      %3464 = vset.pattern.permute.xlu0 8
      %3465 = vperm.xlu0 %3464, %v1005
      %v3466 = vpop.permute.xlu0 %3465
      %3468 = vset.pattern.permute.xlu0 8
      %3469 = vperm.xlu0 %3468, %v1006
      %v3470 = vpop.permute.xlu0 %3469
      %3472 = vset.pattern.permute.xlu0 8
      %3473 = vperm.xlu0 %3472, %v1007
      %v3474 = vpop.permute.xlu0 %3473
      %v3476 = vmul.f32 %v3424, %v3462
      %v3477 = vmul.f32 %v3425, %v3462
      %v3478 = vmul.f32 %v3426, %v3462
      %v3479 = vmul.f32 %v3427, %v3462
      %v3480 = vmul.f32 %v3428, %v3462
      %v3481 = vmul.f32 %v3429, %v3462
      %v3482 = vmul.f32 %v3430, %v3462
      %v3483 = vmul.f32 %v3431, %v3462
      %v3484 = vmul.f32 %v3432, %v3462
      %v3485 = vmul.f32 %v3433, %v3466
      %v3486 = vmul.f32 %v3434, %v3466
      %v3487 = vmul.f32 %v3435, %v3466
      %v3488 = vmul.f32 %v3436, %v3466
      %v3489 = vmul.f32 %v3437, %v3466
      %v3490 = vmul.f32 %v3438, %v3466
      %v3491 = vmul.f32 %v3439, %v3466
      %v3492 = vmul.f32 %v3440, %v3466
      %v3493 = vmul.f32 %v3441, %v3466
      %v3494 = vmul.f32 %v3442, %v3470
      %v3495 = vmul.f32 %v3443, %v3470
      %v3496 = vmul.f32 %v3444, %v3470
      %v3497 = vmul.f32 %v3445, %v3470
      %v3498 = vmul.f32 %v3446, %v3470
      %v3499 = vmul.f32 %v3447, %v3470
      %v3500 = vmul.f32 %v3448, %v3470
      %v3501 = vmul.f32 %v3449, %v3470
      %v3502 = vmul.f32 %v3450, %v3470
      %v3503 = vmul.f32 %v3451, %v3474
      %v3504 = vmul.f32 %v3452, %v3474
      %v3505 = vmul.f32 %v3453, %v3474
      %v3506 = vmul.f32 %v3454, %v3474
      %v3507 = vmul.f32 %v3455, %v3474
      %v3508 = vmul.f32 %v3456, %v3474
      %v3509 = vmul.f32 %v3457, %v3474
      %v3510 = vmul.f32 %v3458, %v3474
      %v3511 = vmul.f32 %v3459, %v3474
      %3548 = vrot.lane.b32.xlu0 %v3476, 62
      %v3549 = vpop.permute.xlu0 %3548
      %3550 = vrot.lane.b32.xlu0 %v3477, 62
      %v3551 = vpop.permute.xlu0 %3550
      %3552 = vrot.lane.b32.xlu0 %v3478, 62
      %v3553 = vpop.permute.xlu0 %3552
      %3554 = vrot.lane.b32.xlu0 %v3479, 62
      %v3555 = vpop.permute.xlu0 %3554
      %3556 = vrot.lane.b32.xlu0 %v3480, 62
      %v3557 = vpop.permute.xlu0 %3556
      %3558 = vrot.lane.b32.xlu0 %v3481, 62
      %v3559 = vpop.permute.xlu0 %3558
      %3560 = vrot.lane.b32.xlu0 %v3482, 62
      %v3561 = vpop.permute.xlu0 %3560
      %3562 = vrot.lane.b32.xlu0 %v3483, 62
      %v3563 = vpop.permute.xlu0 %3562
      %3564 = vrot.lane.b32.xlu0 %v3484, 62
      %v3565 = vpop.permute.xlu0 %3564
      %3566 = vrot.lane.b32.xlu0 %v3485, 62
      %v3567 = vpop.permute.xlu0 %3566
      %3568 = vrot.lane.b32.xlu0 %v3486, 62
      %v3569 = vpop.permute.xlu0 %3568
      %3570 = vrot.lane.b32.xlu0 %v3487, 62
      %v3571 = vpop.permute.xlu0 %3570
      %3572 = vrot.lane.b32.xlu0 %v3488, 62
      %v3573 = vpop.permute.xlu0 %3572
      %3574 = vrot.lane.b32.xlu0 %v3489, 62
      %v3575 = vpop.permute.xlu0 %3574
      %3576 = vrot.lane.b32.xlu0 %v3490, 62
      %v3577 = vpop.permute.xlu0 %3576
      %3578 = vrot.lane.b32.xlu0 %v3491, 62
      %v3579 = vpop.permute.xlu0 %3578
      %3580 = vrot.lane.b32.xlu0 %v3492, 62
      %v3581 = vpop.permute.xlu0 %3580
      %3582 = vrot.lane.b32.xlu0 %v3493, 62
      %v3583 = vpop.permute.xlu0 %3582
      %3584 = vrot.lane.b32.xlu0 %v3494, 62
      %v3585 = vpop.permute.xlu0 %3584
      %3586 = vrot.lane.b32.xlu0 %v3495, 62
      %v3587 = vpop.permute.xlu0 %3586
      %3588 = vrot.lane.b32.xlu0 %v3496, 62
      %v3589 = vpop.permute.xlu0 %3588
      %3590 = vrot.lane.b32.xlu0 %v3497, 62
      %v3591 = vpop.permute.xlu0 %3590
      %3592 = vrot.lane.b32.xlu0 %v3498, 62
      %v3593 = vpop.permute.xlu0 %3592
      %3594 = vrot.lane.b32.xlu0 %v3499, 62
      %v3595 = vpop.permute.xlu0 %3594
      %3596 = vrot.lane.b32.xlu0 %v3500, 62
      %v3597 = vpop.permute.xlu0 %3596
      %3598 = vrot.lane.b32.xlu0 %v3501, 62
      %v3599 = vpop.permute.xlu0 %3598
      %3600 = vrot.lane.b32.xlu0 %v3502, 62
      %v3601 = vpop.permute.xlu0 %3600
      %3602 = vrot.lane.b32.xlu0 %v3503, 62
      %v3603 = vpop.permute.xlu0 %3602
      %3604 = vrot.lane.b32.xlu0 %v3504, 62
      %v3605 = vpop.permute.xlu0 %3604
      %3606 = vrot.lane.b32.xlu0 %v3505, 62
      %v3607 = vpop.permute.xlu0 %3606
      %3608 = vrot.lane.b32.xlu0 %v3506, 62
      %v3609 = vpop.permute.xlu0 %3608
      %3610 = vrot.lane.b32.xlu0 %v3507, 62
      %v3611 = vpop.permute.xlu0 %3610
      %3612 = vrot.lane.b32.xlu0 %v3508, 62
      %v3613 = vpop.permute.xlu0 %3612
      %3614 = vrot.lane.b32.xlu0 %v3509, 62
      %v3615 = vpop.permute.xlu0 %3614
      %3616 = vrot.lane.b32.xlu0 %v3510, 62
      %v3617 = vpop.permute.xlu0 %3616
      %3618 = vrot.lane.b32.xlu0 %v3511, 62
      %v3619 = vpop.permute.xlu0 %3618
      %vm3620 = vcmask 506880
      %v3621 = vsel %vm3620, %v3549, %v3551
      %v3622 = vsel %vm3620, %v3551, %v3553
      %v3623 = vsel %vm3620, %v3553, %v3555
      %v3624 = vsel %vm3620, %v3555, %v3557
      %v3625 = vsel %vm3620, %v3557, %v3559
      %v3626 = vsel %vm3620, %v3559, %v3561
      %v3627 = vsel %vm3620, %v3561, %v3563
      %v3628 = vsel %vm3620, %v3563, %v3565
      %v3629 = vsel %vm3620, %v3567, %v3569
      %v3630 = vsel %vm3620, %v3569, %v3571
      %v3631 = vsel %vm3620, %v3571, %v3573
      %v3632 = vsel %vm3620, %v3573, %v3575
      %v3633 = vsel %vm3620, %v3575, %v3577
      %v3634 = vsel %vm3620, %v3577, %v3579
      %v3635 = vsel %vm3620, %v3579, %v3581
      %v3636 = vsel %vm3620, %v3581, %v3583
      %v3637 = vsel %vm3620, %v3585, %v3587
      %v3638 = vsel %vm3620, %v3587, %v3589
      %v3639 = vsel %vm3620, %v3589, %v3591
      %v3640 = vsel %vm3620, %v3591, %v3593
      %v3641 = vsel %vm3620, %v3593, %v3595
      %v3642 = vsel %vm3620, %v3595, %v3597
      %v3643 = vsel %vm3620, %v3597, %v3599
      %v3644 = vsel %vm3620, %v3599, %v3601
      %v3645 = vsel %vm3620, %v3603, %v3605
      %v3646 = vsel %vm3620, %v3605, %v3607
      %v3647 = vsel %vm3620, %v3607, %v3609
      %v3648 = vsel %vm3620, %v3609, %v3611
      %v3649 = vsel %vm3620, %v3611, %v3613
      %v3650 = vsel %vm3620, %v3613, %v3615
      %v3651 = vsel %vm3620, %v3615, %v3617
      %v3652 = vsel %vm3620, %v3617, %v3619
      %v3685 = vadd.f32 %v3346, %v3621
      %v3686 = vadd.f32 %v3347, %v3622
      %v3687 = vadd.f32 %v3348, %v3623
      %v3688 = vadd.f32 %v3349, %v3624
      %v3689 = vadd.f32 %v3350, %v3625
      %v3690 = vadd.f32 %v3351, %v3626
      %v3691 = vadd.f32 %v3352, %v3627
      %v3692 = vadd.f32 %v3353, %v3628
      %v3693 = vadd.f32 %v3354, %v3629
      %v3694 = vadd.f32 %v3355, %v3630
      %v3695 = vadd.f32 %v3356, %v3631
      %v3696 = vadd.f32 %v3357, %v3632
      %v3697 = vadd.f32 %v3358, %v3633
      %v3698 = vadd.f32 %v3359, %v3634
      %v3699 = vadd.f32 %v3360, %v3635
      %v3700 = vadd.f32 %v3361, %v3636
      %v3701 = vadd.f32 %v3362, %v3637
      %v3702 = vadd.f32 %v3363, %v3638
      %v3703 = vadd.f32 %v3364, %v3639
      %v3704 = vadd.f32 %v3365, %v3640
      %v3705 = vadd.f32 %v3366, %v3641
      %v3706 = vadd.f32 %v3367, %v3642
      %v3707 = vadd.f32 %v3368, %v3643
      %v3708 = vadd.f32 %v3369, %v3644
      %v3709 = vadd.f32 %v3370, %v3645
      %v3710 = vadd.f32 %v3371, %v3646
      %v3711 = vadd.f32 %v3372, %v3647
      %v3712 = vadd.f32 %v3373, %v3648
      %v3713 = vadd.f32 %v3374, %v3649
      %v3714 = vadd.f32 %v3375, %v3650
      %v3715 = vadd.f32 %v3376, %v3651
      %v3716 = vadd.f32 %v3377, %v3652
      %v3717 = vld [vmem:[%s444] sm:$0xff]
      %v3718 = vld [vmem:[%s444 + $0x8] sm:$0xff]
      %v3719 = vld [vmem:[%s444 + $0x10] sm:$0xff]
      %v3720 = vld [vmem:[%s444 + $0x18] sm:$0xff]
      %3722 = vset.pattern.permute.xlu0 0
      %3723 = vperm.xlu0 %3722, %v3717
      %v3724 = vpop.permute.xlu0 %3723
      %3727 = vset.pattern.permute.xlu0 0
      %3728 = vperm.xlu0 %3727, %v3718
      %v3729 = vpop.permute.xlu0 %3728
      %3732 = vset.pattern.permute.xlu0 0
      %3733 = vperm.xlu0 %3732, %v3719
      %v3734 = vpop.permute.xlu0 %3733
      %3737 = vset.pattern.permute.xlu0 0
      %3738 = vperm.xlu0 %3737, %v3720
      %v3739 = vpop.permute.xlu0 %3738
      %v3741 = vmul.f32 %v3685, %v3724
      %v3742 = vmul.f32 %v3686, %v3724
      %v3743 = vmul.f32 %v3687, %v3724
      %v3744 = vmul.f32 %v3688, %v3724
      %v3745 = vmul.f32 %v3689, %v3724
      %v3746 = vmul.f32 %v3690, %v3724
      %v3747 = vmul.f32 %v3691, %v3724
      %v3748 = vmul.f32 %v3692, %v3724
      %v3749 = vmul.f32 %v3693, %v3729
      %v3750 = vmul.f32 %v3694, %v3729
      %v3751 = vmul.f32 %v3695, %v3729
      %v3752 = vmul.f32 %v3696, %v3729
      %v3753 = vmul.f32 %v3697, %v3729
      %v3754 = vmul.f32 %v3698, %v3729
      %v3755 = vmul.f32 %v3699, %v3729
      %v3756 = vmul.f32 %v3700, %v3729
      %v3757 = vmul.f32 %v3701, %v3734
      %v3758 = vmul.f32 %v3702, %v3734
      %v3759 = vmul.f32 %v3703, %v3734
      %v3760 = vmul.f32 %v3704, %v3734
      %v3761 = vmul.f32 %v3705, %v3734
      %v3762 = vmul.f32 %v3706, %v3734
      %v3763 = vmul.f32 %v3707, %v3734
      %v3764 = vmul.f32 %v3708, %v3734
      %v3765 = vmul.f32 %v3709, %v3739
      %v3766 = vmul.f32 %v3710, %v3739
      %v3767 = vmul.f32 %v3711, %v3739
      %v3768 = vmul.f32 %v3712, %v3739
      %v3769 = vmul.f32 %v3713, %v3739
      %v3770 = vmul.f32 %v3714, %v3739
      %v3771 = vmul.f32 %v3715, %v3739
      %v3772 = vmul.f32 %v3716, %v3739
      %v3773 = vld [vmem:[%s450] sm:$0xff]
      %v3774 = vld [vmem:[%s450 + $0x8] sm:$0xff]
      %v3775 = vld [vmem:[%s450 + $0x10] sm:$0xff]
      %v3776 = vld [vmem:[%s450 + $0x18] sm:$0xff]
      %3778 = vset.pattern.permute.xlu0 0
      %3779 = vperm.xlu0 %3778, %v3773
      %v3780 = vpop.permute.xlu0 %3779
      %3783 = vset.pattern.permute.xlu0 0
      %3784 = vperm.xlu0 %3783, %v3774
      %v3785 = vpop.permute.xlu0 %3784
      %3788 = vset.pattern.permute.xlu0 0
      %3789 = vperm.xlu0 %3788, %v3775
      %v3790 = vpop.permute.xlu0 %3789
      %3793 = vset.pattern.permute.xlu0 0
      %3794 = vperm.xlu0 %3793, %v3776
      %v3795 = vpop.permute.xlu0 %3794
      %v3797 = vadd.f32 %v3741, %v3780
      %v3798 = vadd.f32 %v3742, %v3780
      %v3799 = vadd.f32 %v3743, %v3780
      %v3800 = vadd.f32 %v3744, %v3780
      %v3801 = vadd.f32 %v3745, %v3780
      %v3802 = vadd.f32 %v3746, %v3780
      %v3803 = vadd.f32 %v3747, %v3780
      %v3804 = vadd.f32 %v3748, %v3780
      %v3805 = vadd.f32 %v3749, %v3785
      %v3806 = vadd.f32 %v3750, %v3785
      %v3807 = vadd.f32 %v3751, %v3785
      %v3808 = vadd.f32 %v3752, %v3785
      %v3809 = vadd.f32 %v3753, %v3785
      %v3810 = vadd.f32 %v3754, %v3785
      %v3811 = vadd.f32 %v3755, %v3785
      %v3812 = vadd.f32 %v3756, %v3785
      %v3813 = vadd.f32 %v3757, %v3790
      %v3814 = vadd.f32 %v3758, %v3790
      %v3815 = vadd.f32 %v3759, %v3790
      %v3816 = vadd.f32 %v3760, %v3790
      %v3817 = vadd.f32 %v3761, %v3790
      %v3818 = vadd.f32 %v3762, %v3790
      %v3819 = vadd.f32 %v3763, %v3790
      %v3820 = vadd.f32 %v3764, %v3790
      %v3821 = vadd.f32 %v3765, %v3795
      %v3822 = vadd.f32 %v3766, %v3795
      %v3823 = vadd.f32 %v3767, %v3795
      %v3824 = vadd.f32 %v3768, %v3795
      %v3825 = vadd.f32 %v3769, %v3795
      %v3826 = vadd.f32 %v3770, %v3795
      %v3827 = vadd.f32 %v3771, %v3795
      %v3828 = vadd.f32 %v3772, %v3795
      %v3829 = vmax.f32 %v3797, 0.0
      %v3830 = vmax.f32 %v3798, 0.0
      %v3831 = vmax.f32 %v3799, 0.0
      %v3832 = vmax.f32 %v3800, 0.0
      %v3833 = vmax.f32 %v3801, 0.0
      %v3834 = vmax.f32 %v3802, 0.0
      %v3835 = vmax.f32 %v3803, 0.0
      %v3836 = vmax.f32 %v3804, 0.0
      %v3837 = vmax.f32 %v3805, 0.0
      %v3838 = vmax.f32 %v3806, 0.0
      %v3839 = vmax.f32 %v3807, 0.0
      %v3840 = vmax.f32 %v3808, 0.0
      %v3841 = vmax.f32 %v3809, 0.0
      %v3842 = vmax.f32 %v3810, 0.0
      %v3843 = vmax.f32 %v3811, 0.0
      %v3844 = vmax.f32 %v3812, 0.0
      %v3845 = vmax.f32 %v3813, 0.0
      %v3846 = vmax.f32 %v3814, 0.0
      %v3847 = vmax.f32 %v3815, 0.0
      %v3848 = vmax.f32 %v3816, 0.0
      %v3849 = vmax.f32 %v3817, 0.0
      %v3850 = vmax.f32 %v3818, 0.0
      %v3851 = vmax.f32 %v3819, 0.0
      %v3852 = vmax.f32 %v3820, 0.0
      %v3853 = vmax.f32 %v3821, 0.0
      %v3854 = vmax.f32 %v3822, 0.0
      %v3855 = vmax.f32 %v3823, 0.0
      %v3856 = vmax.f32 %v3824, 0.0
      %v3857 = vmax.f32 %v3825, 0.0
      %v3858 = vmax.f32 %v3826, 0.0
      %v3859 = vmax.f32 %v3827, 0.0
      %v3860 = vmax.f32 %v3828, 0.0
      %3861 = vst [vmem:[%s461] sm:$0xff] %v3829
      %3862 = vst [vmem:[%s461 + $0x8] sm:$0xff] %v3830
      %3863 = vst [vmem:[%s461 + $0x10] sm:$0xff] %v3831
      %3864 = vst [vmem:[%s461 + $0x18] sm:$0xff] %v3832
      %3865 = vst [vmem:[%s461 + $0x20] sm:$0xff] %v3833
      %3866 = vst [vmem:[%s461 + $0x28] sm:$0xff] %v3834
      %3867 = vst [vmem:[%s461 + $0x30] sm:$0xff] %v3835
      %3868 = vst [vmem:[%s461 + $0x38] sm:$0xff] %v3836
      %3869 = vst [vmem:[%s461 + $0x40] sm:$0xff] %v3837
      %3870 = vst [vmem:[%s461 + $0x48] sm:$0xff] %v3838
      %3871 = vst [vmem:[%s461 + $0x50] sm:$0xff] %v3839
      %3872 = vst [vmem:[%s461 + $0x58] sm:$0xff] %v3840
      %3873 = vst [vmem:[%s461 + $0x60] sm:$0xff] %v3841
      %3874 = vst [vmem:[%s461 + $0x68] sm:$0xff] %v3842
      %3875 = vst [vmem:[%s461 + $0x70] sm:$0xff] %v3843
      %3876 = vst [vmem:[%s461 + $0x78] sm:$0xff] %v3844
      %3877 = vst [vmem:[%s461 + $0x80] sm:$0xff] %v3845
      %3878 = vst [vmem:[%s461 + $0x88] sm:$0xff] %v3846
      %3879 = vst [vmem:[%s461 + $0x90] sm:$0xff] %v3847
      %3880 = vst [vmem:[%s461 + $0x98] sm:$0xff] %v3848
      %3881 = vst [vmem:[%s461 + $0xa0] sm:$0xff] %v3849
      %3882 = vst [vmem:[%s461 + $0xa8] sm:$0xff] %v3850
      %3883 = vst [vmem:[%s461 + $0xb0] sm:$0xff] %v3851
      %3884 = vst [vmem:[%s461 + $0xb8] sm:$0xff] %v3852
      %3885 = vst [vmem:[%s461 + $0xc0] sm:$0xff] %v3853
      %3886 = vst [vmem:[%s461 + $0xc8] sm:$0xff] %v3854
      %3887 = vst [vmem:[%s461 + $0xd0] sm:$0xff] %v3855
      %3888 = vst [vmem:[%s461 + $0xd8] sm:$0xff] %v3856
      %3889 = vst [vmem:[%s461 + $0xe0] sm:$0xff] %v3857
      %3890 = vst [vmem:[%s461 + $0xe8] sm:$0xff] %v3858
      %3891 = vst [vmem:[%s461 + $0xf0] sm:$0xff] %v3859
      %3892 = vst [vmem:[%s461 + $0xf8] sm:$0xff] %v3860
      %s3893 = smul.u32 4, %s24
      %p3894 = scmp.lt.s32.totalorder %s23, 1
      %s3895 = scalar_select %p3894, %s23, 1
      %p3896 = scmp.lt.s32.totalorder %s3893, 3
      %s3897 = scalar_select %p3896, %s3893, 3
      %s3898 = smul.addr %s3897, 8
      %s3899 = smul.addr %s3895, 32
      %s3900 = sadd.s32 %s3898, %s3899
      %s3901 = smul.addr %s3900, 8
      %s3902 = scalar_lea.vmem %s8, %s3901
      // Predicated region
      $region53: #{light_conv_forward.1} parent=51 // pred_check
        %p3903 = pneg %p254
      $region54: #{light_conv_forward.1} parent=51 // pred_check_branch
        %3905 = sbr.rel (%p3903) target = $region56
      $region55: #{light_conv_forward.1} parent=51 // pred_region
        %s3906 = smul.u32 4, %s24
      $region56: #{light_conv_forward.1} parent=51 // pred_fallthru
        _
    $region52: #{light_conv_forward.1} parent=5 // pred_fallthru
      _
    %p3907 = scmp.le.s32.totalorder 2, %s14
    // Predicated region
    $region57: #{light_conv_forward.1} parent=5 // pred_check
      %p3908 = pneg %p3907
    $region58: #{light_conv_forward.1} parent=5 // pred_check_branch
      %3910 = sbr.rel (%p3908) target = $region60
    $region59: #{light_conv_forward.1} parent=5 // pred_region
      %s3911 = ssub.s32 %s14, 2
      // Predicated region
      $region61: #{light_conv_forward.1} parent=59 // pred_check
        %p3912 = pneg %p260
      $region62: #{light_conv_forward.1} parent=59 // pred_check_branch
        %3914 = sbr.rel (%p3912) target = $region64
      $region63: #{light_conv_forward.1} parent=59 // pred_region
        %s3915 = smul.u32 4, %s26
        %p3916 = scmp.lt.s32.totalorder %s25, 1
        %s3917 = scalar_select %p3916, %s25, 1
        %p3918 = scmp.lt.s32.totalorder %s3915, 3
        %s3919 = scalar_select %p3918, %s3915, 3
        %s3920 = smul.addr %s3919, 8
        %s3921 = smul.addr %s3917, 32
        %s3922 = sadd.s32 %s3920, %s3921
        %s3923 = smul.addr %s3922, 8
        %s3924 = scalar_lea.vmem %s8, %s3923
      $region64: #{light_conv_forward.1} parent=59 // pred_fallthru
        _
    $region60: #{light_conv_forward.1} parent=5 // pred_fallthru
      _
  $region6: #{light_conv_forward.1} parent=0 // loop_footer
    %s18 = sadd.s32 1, %s14
  $region7: #{light_conv_forward.1} parent=0 // loop_footer_branch
    %13 = sbr.rel target = $region3
  $region8: #{light_conv_forward.1} parent=0 // loop_exit
    _

</llo_original>
